<compile_context>
chip_gen: v7x
topology: tpu7x:2x2x1
jax: 0.10.0
libtpu: 0.0.40
codegen_flags: <defaults>
</compile_context>

<pallas_src>
import jax
import jax.numpy as jnp
from jax.experimental import pallas as pl
from jax.experimental.pallas import tpu as pltpu

NUM_ACTIONS = 6          # Overcooked Action.NUM_ACTIONS
HIDDEN_DIM = 64
CONV_CH = 16
KSIZE = 3                # 'same' padding 3x3 convs


# ---------------------------------------------------------------------------
# Fused Pallas kernel: conv1 + conv2 + MLP + action head
# ---------------------------------------------------------------------------
def _bc_fused_kernel(vis_ref, agent_ref,
                     wc1_ref, bc1_ref, wc2_ref, bc2_ref,
                     w1s_ref, w1a_ref, b1_ref, w2_ref, b2_ref, wh_ref, bh_ref,
                     logits_ref,
                     pad1_ref, col1_ref, pad2_ref, col2_ref, h1c_ref):
    """Whole BC-policy forward in one kernel invocation.

    vis_ref:    (N, H, W, Cin) float32 NHWC visual obs
    agent_ref:  (N, A)         float32 vector obs
    wc1/bc1:    (9*Cin, CC), (1, CC)   conv1 weights in im2col layout
    wc2/bc2:    (9*CC, CC),  (1, CC)   conv2 weights in im2col layout
    w1s:        (H*W, CC*HID)          MLP layer-1 cnn rows, NCHW-flatten folded in
    w1a/b1:     (A, HID), (1, HID)     MLP layer-1 agent rows + bias
    w2/b2:      (HID, HID), (1, HID)
    wh/bh:      (HID, NUM_ACTIONS), (1, NUM_ACTIONS)
    logits_ref: (N, NUM_ACTIONS)
    scratch:    pad1 (N,H+2,W+2,Cin), col1 (N*H*W, 9*Cin),
                pad2 (N,H+2,W+2,CC),  col2 (N*H*W, 9*CC), h1c (N, HID)
    """
    N, H, W, Cin = vis_ref.shape
    HW = H * W
    M = N * HW
    CC = wc1_ref.shape[1]          # conv channels
    HID = w2_ref.shape[0]          # MLP hidden dim

    def conv_relu(pad_ref, col_ref, x, w_ref, b_ref, cin):
        # zero 'same' padding directly in VMEM, then im2col -> one MXU matmul -> ReLU
        pad_ref[...] = jnp.zeros(pad_ref.shape, jnp.float32)
        pad_ref[:, 1:H + 1, 1:W + 1, :] = x
        xp = pad_ref[...]
        for t in range(KSIZE * KSIZE):
            kh, kw = t // KSIZE, t % KSIZE
            col_ref[:, t * cin:(t + 1) * cin] = (
                xp[:, kh:kh + H, kw:kw + W, :].reshape(M, cin))
        y = jnp.dot(col_ref[...], w_ref[...],
                    preferred_element_type=jnp.float32)
        return jnp.maximum(y + b_ref[...], 0.0)          # (M, Cout)

    # ---- GridEncoder: conv1 -> conv2 (activations never leave VMEM) ------
    h1 = conv_relu(pad1_ref, col1_ref, vis_ref[...], wc1_ref, bc1_ref, Cin)
    h2 = conv_relu(pad2_ref, col2_ref, h1.reshape(N, H, W, CC),
                   wc2_ref, bc2_ref, CC)                 # (M, CC)

    # ---- MLP layer 1, CNN half (torch NCHW Flatten folded into w1s) ------
    # h1_cnn[n, k] = sum_{c, hw} h2[n*HW + hw, c] * w1_cnn[c*HW + hw, k]
    # computed as one lane-dense (CC, CC*HID) matmul per batch row followed by
    # a block-diagonal extraction (avoids any lane-folding reshape).
    h2_t = h2.T                                          # (CC, M)
    for n in range(N):
        a_n = h2_t[:, n * HW:(n + 1) * HW]               # (CC, HW)
        q_n = jnp.dot(a_n, w1s_ref[...],
                      preferred_element_type=jnp.float32)   # (CC, CC*HID)
        acc = jnp.zeros((1, HID), jnp.float32)
        for c in range(CC):
            acc = acc + q_n[c:c + 1, c * HID:(c + 1) * HID]
        h1c_ref[n:n + 1, :] = acc

    # ---- MLP layer 1 agent half + layer 2 + action_predictor head --------
    z1 = (h1c_ref[...]
          + jnp.dot(agent_ref[...], w1a_ref[...],
                    preferred_element_type=jnp.float32)
          + b1_ref[...])
    z1 = jnp.maximum(z1, 0.0)
    z2 = jnp.dot(z1, w2_ref[...], preferred_element_type=jnp.float32) + b2_ref[...]
    z2 = jnp.maximum(z2, 0.0)
    logits_ref[...] = (jnp.dot(z2, wh_ref[...],
                               preferred_element_type=jnp.float32)
                       + bh_ref[...])


# ---------------------------------------------------------------------------
# Wrapper (single pallas_call)
# ---------------------------------------------------------------------------
_VMEM = pl.BlockSpec(memory_space=pltpu.MemorySpace.VMEM)


def bc_policy_forward(params, visual_obs_nchw, agent_obs):
    """Forward pass of BehaviouralCloningPolicy -> action logits (N, NUM_ACTIONS)."""
    N, C, H, W = visual_obs_nchw.shape
    M = N * H * W
    # int grid obs -> float, NCHW -> NHWC (channels on the TPU lane axis).
    vis = visual_obs_nchw.astype(jnp.float32).transpose(0, 2, 3, 1)
    agent = agent_obs.astype(jnp.float32)
    return pl.pallas_call(
        _bc_fused_kernel,
        out_shape=jax.ShapeDtypeStruct((N, NUM_ACTIONS), jnp.float32),
        in_specs=[_VMEM] * 13,
        out_specs=_VMEM,
        scratch_shapes=[
            pltpu.VMEM((N, H + 2, W + 2, C), jnp.float32),          # pad1
            pltpu.VMEM((M, KSIZE * KSIZE * C), jnp.float32),        # col1 (im2col)
            pltpu.VMEM((N, H + 2, W + 2, CONV_CH), jnp.float32),    # pad2
            pltpu.VMEM((M, KSIZE * KSIZE * CONV_CH), jnp.float32),  # col2 (im2col)
            pltpu.VMEM((N, HIDDEN_DIM), jnp.float32),               # h1 cnn half
        ],
    )(vis, agent,
      params["conv1_w"], params["conv1_b"],
      params["conv2_w"], params["conv2_b"],
      params["mlp_w1_cnn"], params["mlp_w1_agent"], params["mlp_b1"],
      params["mlp_w2"], params["mlp_b2"],
      params["head_w"], params["head_b"])


# ---------------------------------------------------------------------------
# Deterministic parameter init (synthetic stand-in for weights_init_)
# ---------------------------------------------------------------------------
def init_params(key, c_in, h, w, agent_dim):
    ks = jax.random.split(key, 5)
    hw = h * w
    cnn_flat_dim = CONV_CH * hw            # torch nn.Flatten on NCHW conv output
    mlp_in_dim = cnn_flat_dim + agent_dim

    def lin(k, fan_in, fan_out):
        return jax.random.normal(k, (fan_in, fan_out), jnp.float32) / jnp.sqrt(
            jnp.float32(fan_in))

    # Conv weights kept directly in im2col layout (KH*KW*Cin, Cout).  Real torch
    # Conv2d weights (Cout, Cin, KH, KW) convert via
    #   w.transpose(2, 3, 1, 0).reshape(KH*KW*Cin, Cout).
    conv1_w = jax.random.normal(ks[0], (KSIZE * KSIZE * c_in, CONV_CH),
                                jnp.float32) * 0.1
    conv2_w = jax.random.normal(ks[1], (KSIZE * KSIZE * CONV_CH, CONV_CH),
                                jnp.float32) * 0.1

    # MLP layer 1 generated in the torch layout (rows = [NCHW-flattened cnn feats;
    # agent obs]); the flatten permutation is folded host-side into the "stacked"
    # layout the kernel consumes:  w1s[hw, c*HIDDEN + k] = w1_cnn[c*hw_dim + hw, k].
    w1_full = lin(ks[2], mlp_in_dim, HIDDEN_DIM)
    w1_cnn = w1_full[:cnn_flat_dim]
    w1_agent = w1_full[cnn_flat_dim:]
    w1_cnn_stacked = (w1_cnn.reshape(CONV_CH, hw, HIDDEN_DIM)
                      .transpose(1, 0, 2)
                      .reshape(hw, CONV_CH * HIDDEN_DIM))

    return {
        "conv1_w": conv1_w,
        "conv1_b": jnp.zeros((1, CONV_CH), jnp.float32),
        "conv2_w": conv2_w,
        "conv2_b": jnp.zeros((1, CONV_CH), jnp.float32),
        "mlp_w1_cnn": w1_cnn_stacked,
        "mlp_w1_agent": w1_agent,
        "mlp_b1": jnp.zeros((1, HIDDEN_DIM), jnp.float32),
        "mlp_w2": lin(ks[3], HIDDEN_DIM, HIDDEN_DIM),
        "mlp_b2": jnp.zeros((1, HIDDEN_DIM), jnp.float32),
        "head_w": lin(ks[4], HIDDEN_DIM, NUM_ACTIONS),
        "head_b": jnp.zeros((1, NUM_ACTIONS), jnp.float32),
    }


if __name__ == "__main__":
    key = jax.random.PRNGKey(0)
    k_vis, k_agent, k_param = jax.random.split(key, 3)

    # small shapes consistent with the module: visual grid obs + vector agent obs
    N, C, H, W = 2, 4, 8, 8
    AGENT_DIM = 16

    visual_obs = jax.random.randint(k_vis, (N, C, H, W), 0, 21, jnp.int32)
    agent_obs = jax.random.randint(k_agent, (N, AGENT_DIM), 0, 401, jnp.int32)
    params = init_params(k_param, C, H, W, AGENT_DIM)

    logits = jax.jit(bc_policy_forward)(params, visual_obs, agent_obs)
    logits = jax.block_until_ready(logits)
    assert logits.shape == (N, NUM_ACTIONS)
    assert logits.dtype == jnp.float32
    print("KERNEL_OK")
</pallas_src>

<mosaic_0001>
module attributes {stable_mosaic.version = 11 : i64} {
  func.func @_bc_fused_kernel(%arg0: memref<2x8x8x4xf32, #tpu.memory_space<vmem>>, %arg1: memref<2x16xf32, #tpu.memory_space<vmem>>, %arg2: memref<36x16xf32, #tpu.memory_space<vmem>>, %arg3: memref<1x16xf32, #tpu.memory_space<vmem>>, %arg4: memref<144x16xf32, #tpu.memory_space<vmem>>, %arg5: memref<1x16xf32, #tpu.memory_space<vmem>>, %arg6: memref<64x1024xf32, #tpu.memory_space<vmem>>, %arg7: memref<16x64xf32, #tpu.memory_space<vmem>>, %arg8: memref<1x64xf32, #tpu.memory_space<vmem>>, %arg9: memref<64x64xf32, #tpu.memory_space<vmem>>, %arg10: memref<1x64xf32, #tpu.memory_space<vmem>>, %arg11: memref<64x6xf32, #tpu.memory_space<vmem>>, %arg12: memref<1x6xf32, #tpu.memory_space<vmem>>, %arg13: memref<2x6xf32, #tpu.memory_space<vmem>>, %arg14: memref<2x10x10x4xf32, #tpu.memory_space<vmem>>, %arg15: memref<128x36xf32, #tpu.memory_space<vmem>>, %arg16: memref<2x10x10x16xf32, #tpu.memory_space<vmem>>, %arg17: memref<128x144xf32, #tpu.memory_space<vmem>>, %arg18: memref<2x64xf32, #tpu.memory_space<vmem>>) attributes {dimension_semantics = [], scalar_prefetch = 0 : i64, scratch_operands = 5 : i64, tpu.core_type = #tpu.core_type<tc>} {
    %c0 = arith.constant 0 : index
    %c0_0 = arith.constant 0 : index
    %c0_1 = arith.constant 0 : index
    %c0_2 = arith.constant 0 : index
    %0 = vector.load %arg0[%c0, %c0_0, %c0_1, %c0_2] : memref<2x8x8x4xf32, #tpu.memory_space<vmem>>, vector<2x8x8x4xf32>
    %cst = arith.constant 0.000000e+00 : f32
    %1 = vector.broadcast %cst : f32 to vector<2x10x10x4xf32>
    %c0_3 = arith.constant 0 : index
    %c0_4 = arith.constant 0 : index
    %c0_5 = arith.constant 0 : index
    %c0_6 = arith.constant 0 : index
    %2 = vector.load %arg14[%c0_3, %c0_4, %c0_5, %c0_6] : memref<2x10x10x4xf32, #tpu.memory_space<vmem>>, vector<2x10x10x4xf32>
    tpu.vector_store %arg14[%c0_3, %c0_4, %c0_5, %c0_6], %1 {strides = array<i32>} : memref<2x10x10x4xf32, #tpu.memory_space<vmem>>, vector<2x10x10x4xf32>,
    %c0_7 = arith.constant 0 : index
    %c1 = arith.constant 1 : index
    %c1_8 = arith.constant 1 : index
    %c0_9 = arith.constant 0 : index
    %3 = vector.load %arg14[%c0_7, %c1, %c1_8, %c0_9] : memref<2x10x10x4xf32, #tpu.memory_space<vmem>>, vector<2x8x8x4xf32>
    tpu.vector_store %arg14[%c0_7, %c1, %c1_8, %c0_9], %0 {strides = array<i32>} : memref<2x10x10x4xf32, #tpu.memory_space<vmem>>, vector<2x8x8x4xf32>,
    %c0_10 = arith.constant 0 : index
    %c0_11 = arith.constant 0 : index
    %c0_12 = arith.constant 0 : index
    %c0_13 = arith.constant 0 : index
    %4 = vector.load %arg14[%c0_10, %c0_11, %c0_12, %c0_13] : memref<2x10x10x4xf32, #tpu.memory_space<vmem>>, vector<2x10x10x4xf32>
    %5 = vector.extract_strided_slice %4 {offsets = [0, 0, 0, 0], sizes = [2, 8, 8, 4], strides = [1, 1, 1, 1]} : vector<2x10x10x4xf32> to vector<2x8x8x4xf32>
    %6 = vector.shape_cast %5 : vector<2x8x8x4xf32> to vector<128x4xf32>
    %c0_14 = arith.constant 0 : index
    %c0_15 = arith.constant 0 : index
    %7 = vector.load %arg15[%c0_14, %c0_15] : memref<128x36xf32, #tpu.memory_space<vmem>>, vector<128x4xf32>
    tpu.vector_store %arg15[%c0_14, %c0_15], %6 {strides = array<i32>} : memref<128x36xf32, #tpu.memory_space<vmem>>, vector<128x4xf32>,
    %8 = vector.extract_strided_slice %4 {offsets = [0, 0, 1, 0], sizes = [2, 8, 8, 4], strides = [1, 1, 1, 1]} : vector<2x10x10x4xf32> to vector<2x8x8x4xf32>
    %9 = vector.shape_cast %8 : vector<2x8x8x4xf32> to vector<128x4xf32>
    %c0_16 = arith.constant 0 : index
    %c4 = arith.constant 4 : index
    %10 = vector.load %arg15[%c0_16, %c4] : memref<128x36xf32, #tpu.memory_space<vmem>>, vector<128x4xf32>
    tpu.vector_store %arg15[%c0_16, %c4], %9 {strides = array<i32>} : memref<128x36xf32, #tpu.memory_space<vmem>>, vector<128x4xf32>,
    %11 = vector.extract_strided_slice %4 {offsets = [0, 0, 2, 0], sizes = [2, 8, 8, 4], strides = [1, 1, 1, 1]} : vector<2x10x10x4xf32> to vector<2x8x8x4xf32>
    %12 = vector.shape_cast %11 : vector<2x8x8x4xf32> to vector<128x4xf32>
    %c0_17 = arith.constant 0 : index
    %c8 = arith.constant 8 : index
    %13 = vector.load %arg15[%c0_17, %c8] : memref<128x36xf32, #tpu.memory_space<vmem>>, vector<128x4xf32>
    tpu.vector_store %arg15[%c0_17, %c8], %12 {strides = array<i32>} : memref<128x36xf32, #tpu.memory_space<vmem>>, vector<128x4xf32>,
    %14 = vector.extract_strided_slice %4 {offsets = [0, 1, 0, 0], sizes = [2, 8, 8, 4], strides = [1, 1, 1, 1]} : vector<2x10x10x4xf32> to vector<2x8x8x4xf32>
    %15 = vector.shape_cast %14 : vector<2x8x8x4xf32> to vector<128x4xf32>
    %c0_18 = arith.constant 0 : index
    %c12 = arith.constant 12 : index
    %16 = vector.load %arg15[%c0_18, %c12] : memref<128x36xf32, #tpu.memory_space<vmem>>, vector<128x4xf32>
    tpu.vector_store %arg15[%c0_18, %c12], %15 {strides = array<i32>} : memref<128x36xf32, #tpu.memory_space<vmem>>, vector<128x4xf32>,
    %17 = vector.extract_strided_slice %4 {offsets = [0, 1, 1, 0], sizes = [2, 8, 8, 4], strides = [1, 1, 1, 1]} : vector<2x10x10x4xf32> to vector<2x8x8x4xf32>
    %18 = vector.shape_cast %17 : vector<2x8x8x4xf32> to vector<128x4xf32>
    %c0_19 = arith.constant 0 : index
    %c16 = arith.constant 16 : index
    %19 = vector.load %arg15[%c0_19, %c16] : memref<128x36xf32, #tpu.memory_space<vmem>>, vector<128x4xf32>
    tpu.vector_store %arg15[%c0_19, %c16], %18 {strides = array<i32>} : memref<128x36xf32, #tpu.memory_space<vmem>>, vector<128x4xf32>,
    %20 = vector.extract_strided_slice %4 {offsets = [0, 1, 2, 0], sizes = [2, 8, 8, 4], strides = [1, 1, 1, 1]} : vector<2x10x10x4xf32> to vector<2x8x8x4xf32>
    %21 = vector.shape_cast %20 : vector<2x8x8x4xf32> to vector<128x4xf32>
    %c0_20 = arith.constant 0 : index
    %c20 = arith.constant 20 : index
    %22 = vector.load %arg15[%c0_20, %c20] : memref<128x36xf32, #tpu.memory_space<vmem>>, vector<128x4xf32>
    tpu.vector_store %arg15[%c0_20, %c20], %21 {strides = array<i32>} : memref<128x36xf32, #tpu.memory_space<vmem>>, vector<128x4xf32>,
    %23 = vector.extract_strided_slice %4 {offsets = [0, 2, 0, 0], sizes = [2, 8, 8, 4], strides = [1, 1, 1, 1]} : vector<2x10x10x4xf32> to vector<2x8x8x4xf32>
    %24 = vector.shape_cast %23 : vector<2x8x8x4xf32> to vector<128x4xf32>
    %c0_21 = arith.constant 0 : index
    %c24 = arith.constant 24 : index
    %25 = vector.load %arg15[%c0_21, %c24] : memref<128x36xf32, #tpu.memory_space<vmem>>, vector<128x4xf32>
    tpu.vector_store %arg15[%c0_21, %c24], %24 {strides = array<i32>} : memref<128x36xf32, #tpu.memory_space<vmem>>, vector<128x4xf32>,
    %26 = vector.extract_strided_slice %4 {offsets = [0, 2, 1, 0], sizes = [2, 8, 8, 4], strides = [1, 1, 1, 1]} : vector<2x10x10x4xf32> to vector<2x8x8x4xf32>
    %27 = vector.shape_cast %26 : vector<2x8x8x4xf32> to vector<128x4xf32>
    %c0_22 = arith.constant 0 : index
    %c28 = arith.constant 28 : index
    %28 = vector.load %arg15[%c0_22, %c28] : memref<128x36xf32, #tpu.memory_space<vmem>>, vector<128x4xf32>
    tpu.vector_store %arg15[%c0_22, %c28], %27 {strides = array<i32>} : memref<128x36xf32, #tpu.memory_space<vmem>>, vector<128x4xf32>,
    %29 = vector.extract_strided_slice %4 {offsets = [0, 2, 2, 0], sizes = [2, 8, 8, 4], strides = [1, 1, 1, 1]} : vector<2x10x10x4xf32> to vector<2x8x8x4xf32>
    %30 = vector.shape_cast %29 : vector<2x8x8x4xf32> to vector<128x4xf32>
    %c0_23 = arith.constant 0 : index
    %c32 = arith.constant 32 : index
    %31 = vector.load %arg15[%c0_23, %c32] : memref<128x36xf32, #tpu.memory_space<vmem>>, vector<128x4xf32>
    tpu.vector_store %arg15[%c0_23, %c32], %30 {strides = array<i32>} : memref<128x36xf32, #tpu.memory_space<vmem>>, vector<128x4xf32>,
    %c0_24 = arith.constant 0 : index
    %c0_25 = arith.constant 0 : index
    %32 = vector.load %arg15[%c0_24, %c0_25] : memref<128x36xf32, #tpu.memory_space<vmem>>, vector<128x36xf32>
    %c0_26 = arith.constant 0 : index
    %c0_27 = arith.constant 0 : index
    %33 = vector.load %arg2[%c0_26, %c0_27] : memref<36x16xf32, #tpu.memory_space<vmem>>, vector<36x16xf32>
    %cst_28 = arith.constant dense<0.000000e+00> : vector<128x16xf32>
    %34 = tpu.matmul %32, %33, %cst_28 {dimension_numbers = #tpu.dot_dimension_numbers<[1], [0], [0], [1], [0, 0, 1, 1], [], []>} : vector<128x36xf32>, vector<36x16xf32>, vector<128x16xf32> -> vector<128x16xf32>
    %c0_29 = arith.constant 0 : index
    %c0_30 = arith.constant 0 : index
    %35 = vector.load %arg3[%c0_29, %c0_30] : memref<1x16xf32, #tpu.memory_space<vmem>>, vector<1x16xf32>
    %36 = vector.broadcast %35 : vector<1x16xf32> to vector<128x16xf32>
    %37 = arith.addf %34, %36 : vector<128x16xf32>
    %cst_31 = arith.constant 0.000000e+00 : f32
    %38 = vector.broadcast %cst_31 : f32 to vector<128x16xf32>
    %39 = arith.maximumf %37, %38 : vector<128x16xf32>
    %40 = vector.shape_cast %39 : vector<128x16xf32> to vector<2x8x8x16xf32>
    %cst_32 = arith.constant 0.000000e+00 : f32
    %41 = vector.broadcast %cst_32 : f32 to vector<2x10x10x16xf32>
    %c0_33 = arith.constant 0 : index
    %c0_34 = arith.constant 0 : index
    %c0_35 = arith.constant 0 : index
    %c0_36 = arith.constant 0 : index
    %42 = vector.load %arg16[%c0_33, %c0_34, %c0_35, %c0_36] : memref<2x10x10x16xf32, #tpu.memory_space<vmem>>, vector<2x10x10x16xf32>
    tpu.vector_store %arg16[%c0_33, %c0_34, %c0_35, %c0_36], %41 {strides = array<i32>} : memref<2x10x10x16xf32, #tpu.memory_space<vmem>>, vector<2x10x10x16xf32>,
    %c0_37 = arith.constant 0 : index
    %c1_38 = arith.constant 1 : index
    %c1_39 = arith.constant 1 : index
    %c0_40 = arith.constant 0 : index
    %43 = vector.load %arg16[%c0_37, %c1_38, %c1_39, %c0_40] : memref<2x10x10x16xf32, #tpu.memory_space<vmem>>, vector<2x8x8x16xf32>
    tpu.vector_store %arg16[%c0_37, %c1_38, %c1_39, %c0_40], %40 {strides = array<i32>} : memref<2x10x10x16xf32, #tpu.memory_space<vmem>>, vector<2x8x8x16xf32>,
    %c0_41 = arith.constant 0 : index
    %c0_42 = arith.constant 0 : index
    %c0_43 = arith.constant 0 : index
    %c0_44 = arith.constant 0 : index
    %44 = vector.load %arg16[%c0_41, %c0_42, %c0_43, %c0_44] : memref<2x10x10x16xf32, #tpu.memory_space<vmem>>, vector<2x10x10x16xf32>
    %45 = vector.extract_strided_slice %44 {offsets = [0, 0, 0, 0], sizes = [2, 8, 8, 16], strides = [1, 1, 1, 1]} : vector<2x10x10x16xf32> to vector<2x8x8x16xf32>
    %46 = vector.shape_cast %45 : vector<2x8x8x16xf32> to vector<128x16xf32>
    %c0_45 = arith.constant 0 : index
    %c0_46 = arith.constant 0 : index
    %47 = vector.load %arg17[%c0_45, %c0_46] : memref<128x144xf32, #tpu.memory_space<vmem>>, vector<128x16xf32>
    tpu.vector_store %arg17[%c0_45, %c0_46], %46 {strides = array<i32>} : memref<128x144xf32, #tpu.memory_space<vmem>>, vector<128x16xf32>,
    %48 = vector.extract_strided_slice %44 {offsets = [0, 0, 1, 0], sizes = [2, 8, 8, 16], strides = [1, 1, 1, 1]} : vector<2x10x10x16xf32> to vector<2x8x8x16xf32>
    %49 = vector.shape_cast %48 : vector<2x8x8x16xf32> to vector<128x16xf32>
    %c0_47 = arith.constant 0 : index
    %c16_48 = arith.constant 16 : index
    %50 = vector.load %arg17[%c0_47, %c16_48] : memref<128x144xf32, #tpu.memory_space<vmem>>, vector<128x16xf32>
    tpu.vector_store %arg17[%c0_47, %c16_48], %49 {strides = array<i32>} : memref<128x144xf32, #tpu.memory_space<vmem>>, vector<128x16xf32>,
    %51 = vector.extract_strided_slice %44 {offsets = [0, 0, 2, 0], sizes = [2, 8, 8, 16], strides = [1, 1, 1, 1]} : vector<2x10x10x16xf32> to vector<2x8x8x16xf32>
    %52 = vector.shape_cast %51 : vector<2x8x8x16xf32> to vector<128x16xf32>
    %c0_49 = arith.constant 0 : index
    %c32_50 = arith.constant 32 : index
    %53 = vector.load %arg17[%c0_49, %c32_50] : memref<128x144xf32, #tpu.memory_space<vmem>>, vector<128x16xf32>
    tpu.vector_store %arg17[%c0_49, %c32_50], %52 {strides = array<i32>} : memref<128x144xf32, #tpu.memory_space<vmem>>, vector<128x16xf32>,
    %54 = vector.extract_strided_slice %44 {offsets = [0, 1, 0, 0], sizes = [2, 8, 8, 16], strides = [1, 1, 1, 1]} : vector<2x10x10x16xf32> to vector<2x8x8x16xf32>
    %55 = vector.shape_cast %54 : vector<2x8x8x16xf32> to vector<128x16xf32>
    %c0_51 = arith.constant 0 : index
    %c48 = arith.constant 48 : index
    %56 = vector.load %arg17[%c0_51, %c48] : memref<128x144xf32, #tpu.memory_space<vmem>>, vector<128x16xf32>
    tpu.vector_store %arg17[%c0_51, %c48], %55 {strides = array<i32>} : memref<128x144xf32, #tpu.memory_space<vmem>>, vector<128x16xf32>,
    %57 = vector.extract_strided_slice %44 {offsets = [0, 1, 1, 0], sizes = [2, 8, 8, 16], strides = [1, 1, 1, 1]} : vector<2x10x10x16xf32> to vector<2x8x8x16xf32>
    %58 = vector.shape_cast %57 : vector<2x8x8x16xf32> to vector<128x16xf32>
    %c0_52 = arith.constant 0 : index
    %c64 = arith.constant 64 : index
    %59 = vector.load %arg17[%c0_52, %c64] : memref<128x144xf32, #tpu.memory_space<vmem>>, vector<128x16xf32>
    tpu.vector_store %arg17[%c0_52, %c64], %58 {strides = array<i32>} : memref<128x144xf32, #tpu.memory_space<vmem>>, vector<128x16xf32>,
    %60 = vector.extract_strided_slice %44 {offsets = [0, 1, 2, 0], sizes = [2, 8, 8, 16], strides = [1, 1, 1, 1]} : vector<2x10x10x16xf32> to vector<2x8x8x16xf32>
    %61 = vector.shape_cast %60 : vector<2x8x8x16xf32> to vector<128x16xf32>
    %c0_53 = arith.constant 0 : index
    %c80 = arith.constant 80 : index
    %62 = vector.load %arg17[%c0_53, %c80] : memref<128x144xf32, #tpu.memory_space<vmem>>, vector<128x16xf32>
    tpu.vector_store %arg17[%c0_53, %c80], %61 {strides = array<i32>} : memref<128x144xf32, #tpu.memory_space<vmem>>, vector<128x16xf32>,
    %63 = vector.extract_strided_slice %44 {offsets = [0, 2, 0, 0], sizes = [2, 8, 8, 16], strides = [1, 1, 1, 1]} : vector<2x10x10x16xf32> to vector<2x8x8x16xf32>
    %64 = vector.shape_cast %63 : vector<2x8x8x16xf32> to vector<128x16xf32>
    %c0_54 = arith.constant 0 : index
    %c96 = arith.constant 96 : index
    %65 = vector.load %arg17[%c0_54, %c96] : memref<128x144xf32, #tpu.memory_space<vmem>>, vector<128x16xf32>
    tpu.vector_store %arg17[%c0_54, %c96], %64 {strides = array<i32>} : memref<128x144xf32, #tpu.memory_space<vmem>>, vector<128x16xf32>,
    %66 = vector.extract_strided_slice %44 {offsets = [0, 2, 1, 0], sizes = [2, 8, 8, 16], strides = [1, 1, 1, 1]} : vector<2x10x10x16xf32> to vector<2x8x8x16xf32>
    %67 = vector.shape_cast %66 : vector<2x8x8x16xf32> to vector<128x16xf32>
    %c0_55 = arith.constant 0 : index
    %c112 = arith.constant 112 : index
    %68 = vector.load %arg17[%c0_55, %c112] : memref<128x144xf32, #tpu.memory_space<vmem>>, vector<128x16xf32>
    tpu.vector_store %arg17[%c0_55, %c112], %67 {strides = array<i32>} : memref<128x144xf32, #tpu.memory_space<vmem>>, vector<128x16xf32>,
    %69 = vector.extract_strided_slice %44 {offsets = [0, 2, 2, 0], sizes = [2, 8, 8, 16], strides = [1, 1, 1, 1]} : vector<2x10x10x16xf32> to vector<2x8x8x16xf32>
    %70 = vector.shape_cast %69 : vector<2x8x8x16xf32> to vector<128x16xf32>
    %c0_56 = arith.constant 0 : index
    %c128 = arith.constant 128 : index
    %71 = vector.load %arg17[%c0_56, %c128] : memref<128x144xf32, #tpu.memory_space<vmem>>, vector<128x16xf32>
    tpu.vector_store %arg17[%c0_56, %c128], %70 {strides = array<i32>} : memref<128x144xf32, #tpu.memory_space<vmem>>, vector<128x16xf32>,
    %c0_57 = arith.constant 0 : index
    %c0_58 = arith.constant 0 : index
    %72 = vector.load %arg17[%c0_57, %c0_58] : memref<128x144xf32, #tpu.memory_space<vmem>>, vector<128x144xf32>
    %c0_59 = arith.constant 0 : index
    %c0_60 = arith.constant 0 : index
    %73 = vector.load %arg4[%c0_59, %c0_60] : memref<144x16xf32, #tpu.memory_space<vmem>>, vector<144x16xf32>
    %cst_61 = arith.constant dense<0.000000e+00> : vector<128x16xf32>
    %74 = tpu.matmul %72, %73, %cst_61 {dimension_numbers = #tpu.dot_dimension_numbers<[1], [0], [0], [1], [0, 0, 1, 1], [], []>} : vector<128x144xf32>, vector<144x16xf32>, vector<128x16xf32> -> vector<128x16xf32>
    %c0_62 = arith.constant 0 : index
    %c0_63 = arith.constant 0 : index
    %75 = vector.load %arg5[%c0_62, %c0_63] : memref<1x16xf32, #tpu.memory_space<vmem>>, vector<1x16xf32>
    %76 = vector.broadcast %75 : vector<1x16xf32> to vector<128x16xf32>
    %77 = arith.addf %74, %76 : vector<128x16xf32>
    %cst_64 = arith.constant 0.000000e+00 : f32
    %78 = vector.broadcast %cst_64 : f32 to vector<128x16xf32>
    %79 = arith.maximumf %77, %78 : vector<128x16xf32>
    %80 = tpu.transpose %79, [1, 0] : vector<128x16xf32> -> vector<16x128xf32>
    %81 = vector.extract_strided_slice %80 {offsets = [0, 0], sizes = [16, 64], strides = [1, 1]} : vector<16x128xf32> to vector<16x64xf32>
    %c0_65 = arith.constant 0 : index
    %c0_66 = arith.constant 0 : index
    %82 = vector.load %arg6[%c0_65, %c0_66] : memref<64x1024xf32, #tpu.memory_space<vmem>>, vector<64x1024xf32>
    %cst_67 = arith.constant dense<0.000000e+00> : vector<16x1024xf32>
    %83 = tpu.matmul %81, %82, %cst_67 {dimension_numbers = #tpu.dot_dimension_numbers<[1], [0], [0], [1], [0, 0, 1, 1], [], []>} : vector<16x64xf32>, vector<64x1024xf32>, vector<16x1024xf32> -> vector<16x1024xf32>
    %cst_68 = arith.constant 0.000000e+00 : f32
    %84 = vector.broadcast %cst_68 : f32 to vector<1x64xf32>
    %85 = vector.extract_strided_slice %83 {offsets = [0, 0], sizes = [1, 64], strides = [1, 1]} : vector<16x1024xf32> to vector<1x64xf32>
    %86 = arith.addf %84, %85 : vector<1x64xf32>
    %87 = vector.extract_strided_slice %83 {offsets = [1, 64], sizes = [1, 64], strides = [1, 1]} : vector<16x1024xf32> to vector<1x64xf32>
    %88 = arith.addf %86, %87 : vector<1x64xf32>
    %89 = vector.extract_strided_slice %83 {offsets = [2, 128], sizes = [1, 64], strides = [1, 1]} : vector<16x1024xf32> to vector<1x64xf32>
    %90 = arith.addf %88, %89 : vector<1x64xf32>
    %91 = vector.extract_strided_slice %83 {offsets = [3, 192], sizes = [1, 64], strides = [1, 1]} : vector<16x1024xf32> to vector<1x64xf32>
    %92 = arith.addf %90, %91 : vector<1x64xf32>
    %93 = vector.extract_strided_slice %83 {offsets = [4, 256], sizes = [1, 64], strides = [1, 1]} : vector<16x1024xf32> to vector<1x64xf32>
    %94 = arith.addf %92, %93 : vector<1x64xf32>
    %95 = vector.extract_strided_slice %83 {offsets = [5, 320], sizes = [1, 64], strides = [1, 1]} : vector<16x1024xf32> to vector<1x64xf32>
    %96 = arith.addf %94, %95 : vector<1x64xf32>
    %97 = vector.extract_strided_slice %83 {offsets = [6, 384], sizes = [1, 64], strides = [1, 1]} : vector<16x1024xf32> to vector<1x64xf32>
    %98 = arith.addf %96, %97 : vector<1x64xf32>
    %99 = vector.extract_strided_slice %83 {offsets = [7, 448], sizes = [1, 64], strides = [1, 1]} : vector<16x1024xf32> to vector<1x64xf32>
    %100 = arith.addf %98, %99 : vector<1x64xf32>
    %101 = vector.extract_strided_slice %83 {offsets = [8, 512], sizes = [1, 64], strides = [1, 1]} : vector<16x1024xf32> to vector<1x64xf32>
    %102 = arith.addf %100, %101 : vector<1x64xf32>
    %103 = vector.extract_strided_slice %83 {offsets = [9, 576], sizes = [1, 64], strides = [1, 1]} : vector<16x1024xf32> to vector<1x64xf32>
    %104 = arith.addf %102, %103 : vector<1x64xf32>
    %105 = vector.extract_strided_slice %83 {offsets = [10, 640], sizes = [1, 64], strides = [1, 1]} : vector<16x1024xf32> to vector<1x64xf32>
    %106 = arith.addf %104, %105 : vector<1x64xf32>
    %107 = vector.extract_strided_slice %83 {offsets = [11, 704], sizes = [1, 64], strides = [1, 1]} : vector<16x1024xf32> to vector<1x64xf32>
    %108 = arith.addf %106, %107 : vector<1x64xf32>
    %109 = vector.extract_strided_slice %83 {offsets = [12, 768], sizes = [1, 64], strides = [1, 1]} : vector<16x1024xf32> to vector<1x64xf32>
    %110 = arith.addf %108, %109 : vector<1x64xf32>
    %111 = vector.extract_strided_slice %83 {offsets = [13, 832], sizes = [1, 64], strides = [1, 1]} : vector<16x1024xf32> to vector<1x64xf32>
    %112 = arith.addf %110, %111 : vector<1x64xf32>
    %113 = vector.extract_strided_slice %83 {offsets = [14, 896], sizes = [1, 64], strides = [1, 1]} : vector<16x1024xf32> to vector<1x64xf32>
    %114 = arith.addf %112, %113 : vector<1x64xf32>
    %115 = vector.extract_strided_slice %83 {offsets = [15, 960], sizes = [1, 64], strides = [1, 1]} : vector<16x1024xf32> to vector<1x64xf32>
    %116 = arith.addf %114, %115 : vector<1x64xf32>
    %c0_69 = arith.constant 0 : index
    %c0_70 = arith.constant 0 : index
    %117 = vector.load %arg18[%c0_69, %c0_70] : memref<2x64xf32, #tpu.memory_space<vmem>>, vector<1x64xf32>
    tpu.vector_store %arg18[%c0_69, %c0_70], %116 {strides = array<i32>} : memref<2x64xf32, #tpu.memory_space<vmem>>, vector<1x64xf32>,
    %118 = vector.extract_strided_slice %80 {offsets = [0, 64], sizes = [16, 64], strides = [1, 1]} : vector<16x128xf32> to vector<16x64xf32>
    %c0_71 = arith.constant 0 : index
    %c0_72 = arith.constant 0 : index
    %119 = vector.load %arg6[%c0_71, %c0_72] : memref<64x1024xf32, #tpu.memory_space<vmem>>, vector<64x1024xf32>
    %cst_73 = arith.constant dense<0.000000e+00> : vector<16x1024xf32>
    %120 = tpu.matmul %118, %119, %cst_73 {dimension_numbers = #tpu.dot_dimension_numbers<[1], [0], [0], [1], [0, 0, 1, 1], [], []>} : vector<16x64xf32>, vector<64x1024xf32>, vector<16x1024xf32> -> vector<16x1024xf32>
    %cst_74 = arith.constant 0.000000e+00 : f32
    %121 = vector.broadcast %cst_74 : f32 to vector<1x64xf32>
    %122 = vector.extract_strided_slice %120 {offsets = [0, 0], sizes = [1, 64], strides = [1, 1]} : vector<16x1024xf32> to vector<1x64xf32>
    %123 = arith.addf %121, %122 : vector<1x64xf32>
    %124 = vector.extract_strided_slice %120 {offsets = [1, 64], sizes = [1, 64], strides = [1, 1]} : vector<16x1024xf32> to vector<1x64xf32>
    %125 = arith.addf %123, %124 : vector<1x64xf32>
    %126 = vector.extract_strided_slice %120 {offsets = [2, 128], sizes = [1, 64], strides = [1, 1]} : vector<16x1024xf32> to vector<1x64xf32>
    %127 = arith.addf %125, %126 : vector<1x64xf32>
    %128 = vector.extract_strided_slice %120 {offsets = [3, 192], sizes = [1, 64], strides = [1, 1]} : vector<16x1024xf32> to vector<1x64xf32>
    %129 = arith.addf %127, %128 : vector<1x64xf32>
    %130 = vector.extract_strided_slice %120 {offsets = [4, 256], sizes = [1, 64], strides = [1, 1]} : vector<16x1024xf32> to vector<1x64xf32>
    %131 = arith.addf %129, %130 : vector<1x64xf32>
    %132 = vector.extract_strided_slice %120 {offsets = [5, 320], sizes = [1, 64], strides = [1, 1]} : vector<16x1024xf32> to vector<1x64xf32>
    %133 = arith.addf %131, %132 : vector<1x64xf32>
    %134 = vector.extract_strided_slice %120 {offsets = [6, 384], sizes = [1, 64], strides = [1, 1]} : vector<16x1024xf32> to vector<1x64xf32>
    %135 = arith.addf %133, %134 : vector<1x64xf32>
    %136 = vector.extract_strided_slice %120 {offsets = [7, 448], sizes = [1, 64], strides = [1, 1]} : vector<16x1024xf32> to vector<1x64xf32>
    %137 = arith.addf %135, %136 : vector<1x64xf32>
    %138 = vector.extract_strided_slice %120 {offsets = [8, 512], sizes = [1, 64], strides = [1, 1]} : vector<16x1024xf32> to vector<1x64xf32>
    %139 = arith.addf %137, %138 : vector<1x64xf32>
    %140 = vector.extract_strided_slice %120 {offsets = [9, 576], sizes = [1, 64], strides = [1, 1]} : vector<16x1024xf32> to vector<1x64xf32>
    %141 = arith.addf %139, %140 : vector<1x64xf32>
    %142 = vector.extract_strided_slice %120 {offsets = [10, 640], sizes = [1, 64], strides = [1, 1]} : vector<16x1024xf32> to vector<1x64xf32>
    %143 = arith.addf %141, %142 : vector<1x64xf32>
    %144 = vector.extract_strided_slice %120 {offsets = [11, 704], sizes = [1, 64], strides = [1, 1]} : vector<16x1024xf32> to vector<1x64xf32>
    %145 = arith.addf %143, %144 : vector<1x64xf32>
    %146 = vector.extract_strided_slice %120 {offsets = [12, 768], sizes = [1, 64], strides = [1, 1]} : vector<16x1024xf32> to vector<1x64xf32>
    %147 = arith.addf %145, %146 : vector<1x64xf32>
    %148 = vector.extract_strided_slice %120 {offsets = [13, 832], sizes = [1, 64], strides = [1, 1]} : vector<16x1024xf32> to vector<1x64xf32>
    %149 = arith.addf %147, %148 : vector<1x64xf32>
    %150 = vector.extract_strided_slice %120 {offsets = [14, 896], sizes = [1, 64], strides = [1, 1]} : vector<16x1024xf32> to vector<1x64xf32>
    %151 = arith.addf %149, %150 : vector<1x64xf32>
    %152 = vector.extract_strided_slice %120 {offsets = [15, 960], sizes = [1, 64], strides = [1, 1]} : vector<16x1024xf32> to vector<1x64xf32>
    %153 = arith.addf %151, %152 : vector<1x64xf32>
    %c1_75 = arith.constant 1 : index
    %c0_76 = arith.constant 0 : index
    %154 = vector.load %arg18[%c1_75, %c0_76] : memref<2x64xf32, #tpu.memory_space<vmem>>, vector<1x64xf32>
    tpu.vector_store %arg18[%c1_75, %c0_76], %153 {strides = array<i32>} : memref<2x64xf32, #tpu.memory_space<vmem>>, vector<1x64xf32>,
    %c0_77 = arith.constant 0 : index
    %c0_78 = arith.constant 0 : index
    %155 = vector.load %arg18[%c0_77, %c0_78] : memref<2x64xf32, #tpu.memory_space<vmem>>, vector<2x64xf32>
    %c0_79 = arith.constant 0 : index
    %c0_80 = arith.constant 0 : index
    %156 = vector.load %arg1[%c0_79, %c0_80] : memref<2x16xf32, #tpu.memory_space<vmem>>, vector<2x16xf32>
    %c0_81 = arith.constant 0 : index
    %c0_82 = arith.constant 0 : index
    %157 = vector.load %arg7[%c0_81, %c0_82] : memref<16x64xf32, #tpu.memory_space<vmem>>, vector<16x64xf32>
    %cst_83 = arith.constant dense<0.000000e+00> : vector<2x64xf32>
    %158 = tpu.matmul %156, %157, %cst_83 {dimension_numbers = #tpu.dot_dimension_numbers<[1], [0], [0], [1], [0, 0, 1, 1], [], []>} : vector<2x16xf32>, vector<16x64xf32>, vector<2x64xf32> -> vector<2x64xf32>
    %159 = arith.addf %155, %158 : vector<2x64xf32>
    %c0_84 = arith.constant 0 : index
    %c0_85 = arith.constant 0 : index
    %160 = vector.load %arg8[%c0_84, %c0_85] : memref<1x64xf32, #tpu.memory_space<vmem>>, vector<1x64xf32>
    %161 = vector.broadcast %160 : vector<1x64xf32> to vector<2x64xf32>
    %162 = arith.addf %159, %161 : vector<2x64xf32>
    %cst_86 = arith.constant 0.000000e+00 : f32
    %163 = vector.broadcast %cst_86 : f32 to vector<2x64xf32>
    %164 = arith.maximumf %162, %163 : vector<2x64xf32>
    %c0_87 = arith.constant 0 : index
    %c0_88 = arith.constant 0 : index
    %165 = vector.load %arg9[%c0_87, %c0_88] : memref<64x64xf32, #tpu.memory_space<vmem>>, vector<64x64xf32>
    %cst_89 = arith.constant dense<0.000000e+00> : vector<2x64xf32>
    %166 = tpu.matmul %164, %165, %cst_89 {dimension_numbers = #tpu.dot_dimension_numbers<[1], [0], [0], [1], [0, 0, 1, 1], [], []>} : vector<2x64xf32>, vector<64x64xf32>, vector<2x64xf32> -> vector<2x64xf32>
    %c0_90 = arith.constant 0 : index
    %c0_91 = arith.constant 0 : index
    %167 = vector.load %arg10[%c0_90, %c0_91] : memref<1x64xf32, #tpu.memory_space<vmem>>, vector<1x64xf32>
    %168 = vector.broadcast %167 : vector<1x64xf32> to vector<2x64xf32>
    %169 = arith.addf %166, %168 : vector<2x64xf32>
    %cst_92 = arith.constant 0.000000e+00 : f32
    %170 = vector.broadcast %cst_92 : f32 to vector<2x64xf32>
    %171 = arith.maximumf %169, %170 : vector<2x64xf32>
    %c0_93 = arith.constant 0 : index
    %c0_94 = arith.constant 0 : index
    %172 = vector.load %arg11[%c0_93, %c0_94] : memref<64x6xf32, #tpu.memory_space<vmem>>, vector<64x6xf32>
    %cst_95 = arith.constant dense<0.000000e+00> : vector<2x6xf32>
    %173 = tpu.matmul %171, %172, %cst_95 {dimension_numbers = #tpu.dot_dimension_numbers<[1], [0], [0], [1], [0, 0, 1, 1], [], []>} : vector<2x64xf32>, vector<64x6xf32>, vector<2x6xf32> -> vector<2x6xf32>
    %c0_96 = arith.constant 0 : index
    %c0_97 = arith.constant 0 : index
    %174 = vector.load %arg12[%c0_96, %c0_97] : memref<1x6xf32, #tpu.memory_space<vmem>>, vector<1x6xf32>
    %175 = vector.broadcast %174 : vector<1x6xf32> to vector<2x6xf32>
    %176 = arith.addf %173, %175 : vector<2x6xf32>
    %c0_98 = arith.constant 0 : index
    %c0_99 = arith.constant 0 : index
    %177 = vector.load %arg13[%c0_98, %c0_99] : memref<2x6xf32, #tpu.memory_space<vmem>>, vector<2x6xf32>
    tpu.vector_store %arg13[%c0_98, %c0_99], %176 {strides = array<i32>} : memref<2x6xf32, #tpu.memory_space<vmem>>, vector<2x6xf32>,
    return
  }
}

</mosaic_0001>

<llo_original>
// kernel: bc_policy_forward.1
$region0: #{bc_policy_forward.1}
  #allocation0 [shape = 'u32[]', space=smem, size = 0x4, offset = 0x4, fixed_abs, tag = 'smem constant byte address 0x4 - core index']
  #allocation1 [shape = 'u32[144,128]{1,0:T(1,128)}', space=vmem, size = 0x12000, scoped, tag = 'internal scratch']
  #allocation2 [shape = 'f32[2,10,10,4]{3,2,1,0:T(8,128)}', space=vmem, size = 0x28000, scoped, tag = 'scratch operand']
  #allocation3 [shape = 'f32[128,36]{1,0:T(8,128)}', space=vmem, size = 0x10000, scoped, tag = 'scratch operand']
  #allocation4 [shape = 'f32[2,10,10,16]{3,2,1,0:T(8,128)}', space=vmem, size = 0x28000, scoped, tag = 'scratch operand']
  #allocation5 [shape = 'f32[128,144]{1,0:T(8,128)}', space=vmem, size = 0x20000, scoped, tag = 'scratch operand']
  #allocation6 [shape = 'f32[2,64]{1,0:T(2,128)}', space=vmem, size = 0x400, scoped, tag = 'scratch operand']
  %s0 = inlined_call_operand.vmem [shape: f32[2,8,8,4], index: 0, kind: input, shape index: {}]
  %s1 = inlined_call_operand.vmem [shape: f32[2,16], index: 1, kind: input, shape index: {}]
  %s2 = inlined_call_operand.vmem [shape: f32[36,16], index: 2, kind: input, shape index: {}]
  %s3 = inlined_call_operand.vmem [shape: f32[1,16], index: 3, kind: input, shape index: {}]
  %s4 = inlined_call_operand.vmem [shape: f32[144,16], index: 4, kind: input, shape index: {}]
  %s5 = inlined_call_operand.vmem [shape: f32[1,16], index: 5, kind: input, shape index: {}]
  %s6 = inlined_call_operand.vmem [shape: f32[64,1024], index: 6, kind: input, shape index: {}]
  %s7 = inlined_call_operand.vmem [shape: f32[16,64], index: 7, kind: input, shape index: {}]
  %s8 = inlined_call_operand.vmem [shape: f32[1,64], index: 8, kind: input, shape index: {}]
  %s9 = inlined_call_operand.vmem [shape: f32[64,64], index: 9, kind: input, shape index: {}]
  %s10 = inlined_call_operand.vmem [shape: f32[1,64], index: 10, kind: input, shape index: {}]
  %s11 = inlined_call_operand.vmem [shape: f32[64,6], index: 11, kind: input, shape index: {}]
  %s12 = inlined_call_operand.vmem [shape: f32[1,6], index: 12, kind: input, shape index: {}]
  %s13 = inlined_call_operand.hbm [shape: f32[2,6], index: 13, kind: output, shape index: {}]
  %s14 = sld [smem:[#allocation0]]
  $region62: #{bc_policy_forward.1} parent=0
    _
  %s16 = ssub.s32 1, %s14
  %s17 = scalar_select 0, %s16, %s14
  $region1: #{bc_policy_forward.1} parent=0
    #allocation7 [shape = 'u8[1024]{0}', space=vmem, size = 0x400, scoped, tag = 'output window, operand 0, single buffered']
    #allocation8 [shape = 's32[1]{0}', space=sflag, size = 0x4, scoped, tag = 'scoped memory for bc_policy_forward.1']
    %18 = vsyncpa [#allocation8], 0
    // Predicated region
    $region2: #{bc_policy_forward.1} parent=1 // pred_check
      _
    $region3: #{bc_policy_forward.1} parent=1 // pred_check_branch
      %20 = sbr.rel (0) target = $region5
    $region4: #{bc_policy_forward.1} parent=1 // pred_region
      _
    $region5: #{bc_policy_forward.1} parent=1 // pred_fallthru
      _
    // Predicated region
    $region6: #{bc_policy_forward.1} parent=1 // pred_check
      _
    $region7: #{bc_policy_forward.1} parent=1 // pred_check_branch
      %22 = sbr.rel (0) target = $region9
    $region8: #{bc_policy_forward.1} parent=1 // pred_region
      _
    $region9: #{bc_policy_forward.1} parent=1 // pred_fallthru
      _
    // Predicated region
    $region10: #{bc_policy_forward.1} parent=1 // pred_check
      _
    $region11: #{bc_policy_forward.1} parent=1 // pred_check_branch
      %24 = sbr.rel (0) target = $region13
    $region12: #{bc_policy_forward.1} parent=1 // pred_region
      _
    $region13: #{bc_policy_forward.1} parent=1 // pred_fallthru
      _
    // Predicated region
    $region14: #{bc_policy_forward.1} parent=1 // pred_check
      _
    $region15: #{bc_policy_forward.1} parent=1 // pred_check_branch
      %26 = sbr.rel (0) target = $region17
    $region16: #{bc_policy_forward.1} parent=1 // pred_region
      _
    $region17: #{bc_policy_forward.1} parent=1 // pred_fallthru
      _
    // Predicated region
    $region18: #{bc_policy_forward.1} parent=1 // pred_check
      _
    $region19: #{bc_policy_forward.1} parent=1 // pred_check_branch
      %28 = sbr.rel (0) target = $region21
    $region20: #{bc_policy_forward.1} parent=1 // pred_region
      _
    $region21: #{bc_policy_forward.1} parent=1 // pred_fallthru
      _
    // Predicated region
    $region22: #{bc_policy_forward.1} parent=1 // pred_check
      _
    $region23: #{bc_policy_forward.1} parent=1 // pred_check_branch
      %30 = sbr.rel (0) target = $region25
    $region24: #{bc_policy_forward.1} parent=1 // pred_region
      _
    $region25: #{bc_policy_forward.1} parent=1 // pred_fallthru
      _
    // Predicated region
    $region26: #{bc_policy_forward.1} parent=1 // pred_check
      _
    $region27: #{bc_policy_forward.1} parent=1 // pred_check_branch
      %32 = sbr.rel (0) target = $region29
    $region28: #{bc_policy_forward.1} parent=1 // pred_region
      _
    $region29: #{bc_policy_forward.1} parent=1 // pred_fallthru
      _
    // Predicated region
    $region30: #{bc_policy_forward.1} parent=1 // pred_check
      _
    $region31: #{bc_policy_forward.1} parent=1 // pred_check_branch
      %34 = sbr.rel (0) target = $region33
    $region32: #{bc_policy_forward.1} parent=1 // pred_region
      _
    $region33: #{bc_policy_forward.1} parent=1 // pred_fallthru
      _
    // Predicated region
    $region34: #{bc_policy_forward.1} parent=1 // pred_check
      _
    $region35: #{bc_policy_forward.1} parent=1 // pred_check_branch
      %36 = sbr.rel (0) target = $region37
    $region36: #{bc_policy_forward.1} parent=1 // pred_region
      _
    $region37: #{bc_policy_forward.1} parent=1 // pred_fallthru
      _
    // Predicated region
    $region38: #{bc_policy_forward.1} parent=1 // pred_check
      _
    $region39: #{bc_policy_forward.1} parent=1 // pred_check_branch
      %38 = sbr.rel (0) target = $region41
    $region40: #{bc_policy_forward.1} parent=1 // pred_region
      _
    $region41: #{bc_policy_forward.1} parent=1 // pred_fallthru
      _
    // Predicated region
    $region42: #{bc_policy_forward.1} parent=1 // pred_check
      _
    $region43: #{bc_policy_forward.1} parent=1 // pred_check_branch
      %40 = sbr.rel (0) target = $region45
    $region44: #{bc_policy_forward.1} parent=1 // pred_region
      _
    $region45: #{bc_policy_forward.1} parent=1 // pred_fallthru
      _
    // Predicated region
    $region46: #{bc_policy_forward.1} parent=1 // pred_check
      _
    $region47: #{bc_policy_forward.1} parent=1 // pred_check_branch
      %42 = sbr.rel (0) target = $region49
    $region48: #{bc_policy_forward.1} parent=1 // pred_region
      _
    $region49: #{bc_policy_forward.1} parent=1 // pred_fallthru
      _
    // Predicated region
    $region50: #{bc_policy_forward.1} parent=1 // pred_check
      _
    $region51: #{bc_policy_forward.1} parent=1 // pred_check_branch
      %44 = sbr.rel (0) target = $region53
    $region52: #{bc_policy_forward.1} parent=1 // pred_region
      _
    $region53: #{bc_policy_forward.1} parent=1 // pred_fallthru
      _
    %v45 = vld [vmem:[%s0] sm:$0xff]
    %v46 = vld [vmem:[%s0 + $0x8] sm:$0xff]
    %v47 = vld [vmem:[%s0 + $0x10] sm:$0xff]
    %v48 = vld [vmem:[%s0 + $0x18] sm:$0xff]
    %v49 = vld [vmem:[%s0 + $0x20] sm:$0xff]
    %v50 = vld [vmem:[%s0 + $0x28] sm:$0xff]
    %v51 = vld [vmem:[%s0 + $0x30] sm:$0xff]
    %v52 = vld [vmem:[%s0 + $0x38] sm:$0xff]
    %v53 = vld [vmem:[%s0 + $0x40] sm:$0xff]
    %v54 = vld [vmem:[%s0 + $0x48] sm:$0xff]
    %v55 = vld [vmem:[%s0 + $0x50] sm:$0xff]
    %v56 = vld [vmem:[%s0 + $0x58] sm:$0xff]
    %v57 = vld [vmem:[%s0 + $0x60] sm:$0xff]
    %v58 = vld [vmem:[%s0 + $0x68] sm:$0xff]
    %v59 = vld [vmem:[%s0 + $0x70] sm:$0xff]
    %v60 = vld [vmem:[%s0 + $0x78] sm:$0xff]
    %vm61 = vcmask 31744
    %62 = vst.msk [vmem:[#allocation2] sm:$0xff] %vm61, 0.0
    %vm63 = vcmask 25600
    %64 = vst.msk [vmem:[#allocation2 + $0x8] sm:$0x3] %vm63, 0.0
    %65 = vst.msk [vmem:[#allocation2 + $0x10] sm:$0xff] %vm61, 0.0
    %66 = vst.msk [vmem:[#allocation2 + $0x18] sm:$0x3] %vm63, 0.0
    %67 = vst.msk [vmem:[#allocation2 + $0x20] sm:$0xff] %vm61, 0.0
    %68 = vst.msk [vmem:[#allocation2 + $0x28] sm:$0x3] %vm63, 0.0
    %69 = vst.msk [vmem:[#allocation2 + $0x30] sm:$0xff] %vm61, 0.0
    %70 = vst.msk [vmem:[#allocation2 + $0x38] sm:$0x3] %vm63, 0.0
    %71 = vst.msk [vmem:[#allocation2 + $0x40] sm:$0xff] %vm61, 0.0
    %72 = vst.msk [vmem:[#allocation2 + $0x48] sm:$0x3] %vm63, 0.0
    %73 = vst.msk [vmem:[#allocation2 + $0x50] sm:$0xff] %vm61, 0.0
    %74 = vst.msk [vmem:[#allocation2 + $0x58] sm:$0x3] %vm63, 0.0
    %75 = vst.msk [vmem:[#allocation2 + $0x60] sm:$0xff] %vm61, 0.0
    %76 = vst.msk [vmem:[#allocation2 + $0x68] sm:$0x3] %vm63, 0.0
    %77 = vst.msk [vmem:[#allocation2 + $0x70] sm:$0xff] %vm61, 0.0
    %78 = vst.msk [vmem:[#allocation2 + $0x78] sm:$0x3] %vm63, 0.0
    %79 = vst.msk [vmem:[#allocation2 + $0x80] sm:$0xff] %vm61, 0.0
    %80 = vst.msk [vmem:[#allocation2 + $0x88] sm:$0x3] %vm63, 0.0
    %81 = vst.msk [vmem:[#allocation2 + $0x90] sm:$0xff] %vm61, 0.0
    %82 = vst.msk [vmem:[#allocation2 + $0x98] sm:$0x3] %vm63, 0.0
    %83 = vst.msk [vmem:[#allocation2 + $0xa0] sm:$0xff] %vm61, 0.0
    %84 = vst.msk [vmem:[#allocation2 + $0xa8] sm:$0x3] %vm63, 0.0
    %85 = vst.msk [vmem:[#allocation2 + $0xb0] sm:$0xff] %vm61, 0.0
    %86 = vst.msk [vmem:[#allocation2 + $0xb8] sm:$0x3] %vm63, 0.0
    %87 = vst.msk [vmem:[#allocation2 + $0xc0] sm:$0xff] %vm61, 0.0
    %88 = vst.msk [vmem:[#allocation2 + $0xc8] sm:$0x3] %vm63, 0.0
    %89 = vst.msk [vmem:[#allocation2 + $0xd0] sm:$0xff] %vm61, 0.0
    %90 = vst.msk [vmem:[#allocation2 + $0xd8] sm:$0x3] %vm63, 0.0
    %91 = vst.msk [vmem:[#allocation2 + $0xe0] sm:$0xff] %vm61, 0.0
    %92 = vst.msk [vmem:[#allocation2 + $0xe8] sm:$0x3] %vm63, 0.0
    %93 = vst.msk [vmem:[#allocation2 + $0xf0] sm:$0xff] %vm61, 0.0
    %94 = vst.msk [vmem:[#allocation2 + $0xf8] sm:$0x3] %vm63, 0.0
    %95 = vst.msk [vmem:[#allocation2 + $0x100] sm:$0xff] %vm61, 0.0
    %96 = vst.msk [vmem:[#allocation2 + $0x108] sm:$0x3] %vm63, 0.0
    %97 = vst.msk [vmem:[#allocation2 + $0x110] sm:$0xff] %vm61, 0.0
    %98 = vst.msk [vmem:[#allocation2 + $0x118] sm:$0x3] %vm63, 0.0
    %99 = vst.msk [vmem:[#allocation2 + $0x120] sm:$0xff] %vm61, 0.0
    %100 = vst.msk [vmem:[#allocation2 + $0x128] sm:$0x3] %vm63, 0.0
    %101 = vst.msk [vmem:[#allocation2 + $0x130] sm:$0xff] %vm61, 0.0
    %102 = vst.msk [vmem:[#allocation2 + $0x138] sm:$0x3] %vm63, 0.0
    %s103 = scalar_lea.vmem [#allocation2], 16
    %104 = vst.msk [vmem:[%s103 + $0x1] sm:$0xff] %vm61, %v45
    %105 = vst.msk [vmem:[%s103 + $0x11] sm:$0xff] %vm61, %v46
    %106 = vst.msk [vmem:[%s103 + $0x21] sm:$0xff] %vm61, %v47
    %107 = vst.msk [vmem:[%s103 + $0x31] sm:$0xff] %vm61, %v48
    %108 = vst.msk [vmem:[%s103 + $0x41] sm:$0xff] %vm61, %v49
    %109 = vst.msk [vmem:[%s103 + $0x51] sm:$0xff] %vm61, %v50
    %110 = vst.msk [vmem:[%s103 + $0x61] sm:$0xff] %vm61, %v51
    %111 = vst.msk [vmem:[%s103 + $0x71] sm:$0xff] %vm61, %v52
    %112 = vst.msk [vmem:[%s103 + $0xa1] sm:$0xff] %vm61, %v53
    %113 = vst.msk [vmem:[%s103 + $0xb1] sm:$0xff] %vm61, %v54
    %114 = vst.msk [vmem:[%s103 + $0xc1] sm:$0xff] %vm61, %v55
    %115 = vst.msk [vmem:[%s103 + $0xd1] sm:$0xff] %vm61, %v56
    %116 = vst.msk [vmem:[%s103 + $0xe1] sm:$0xff] %vm61, %v57
    %117 = vst.msk [vmem:[%s103 + $0xf1] sm:$0xff] %vm61, %v58
    %118 = vst.msk [vmem:[%s103 + $0x101] sm:$0xff] %vm61, %v59
    %119 = vst.msk [vmem:[%s103 + $0x111] sm:$0xff] %vm61, %v60
    %v120 = vld [vmem:[#allocation2] sm:$0xff]
    %v121 = vld [vmem:[#allocation2 + $0x8] sm:$0x3]
    %v122 = vld [vmem:[#allocation2 + $0x10] sm:$0xff]
    %v123 = vld [vmem:[#allocation2 + $0x18] sm:$0x3]
    %v124 = vld [vmem:[#allocation2 + $0x20] sm:$0xff]
    %v125 = vld [vmem:[#allocation2 + $0x28] sm:$0x3]
    %v126 = vld [vmem:[#allocation2 + $0x30] sm:$0xff]
    %v127 = vld [vmem:[#allocation2 + $0x38] sm:$0x3]
    %v128 = vld [vmem:[#allocation2 + $0x40] sm:$0xff]
    %v129 = vld [vmem:[#allocation2 + $0x48] sm:$0x3]
    %v130 = vld [vmem:[#allocation2 + $0x50] sm:$0xff]
    %v131 = vld [vmem:[#allocation2 + $0x58] sm:$0x3]
    %v132 = vld [vmem:[#allocation2 + $0x60] sm:$0xff]
    %v133 = vld [vmem:[#allocation2 + $0x68] sm:$0x3]
    %v134 = vld [vmem:[#allocation2 + $0x70] sm:$0xff]
    %v135 = vld [vmem:[#allocation2 + $0x78] sm:$0x3]
    %v136 = vld [vmem:[#allocation2 + $0x80] sm:$0xff]
    %v137 = vld [vmem:[#allocation2 + $0x88] sm:$0x3]
    %v138 = vld [vmem:[#allocation2 + $0x90] sm:$0xff]
    %v139 = vld [vmem:[#allocation2 + $0x98] sm:$0x3]
    %v140 = vld [vmem:[#allocation2 + $0xa0] sm:$0xff]
    %v141 = vld [vmem:[#allocation2 + $0xa8] sm:$0x3]
    %v142 = vld [vmem:[#allocation2 + $0xb0] sm:$0xff]
    %v143 = vld [vmem:[#allocation2 + $0xb8] sm:$0x3]
    %v144 = vld [vmem:[#allocation2 + $0xc0] sm:$0xff]
    %v145 = vld [vmem:[#allocation2 + $0xc8] sm:$0x3]
    %v146 = vld [vmem:[#allocation2 + $0xd0] sm:$0xff]
    %v147 = vld [vmem:[#allocation2 + $0xd8] sm:$0x3]
    %v148 = vld [vmem:[#allocation2 + $0xe0] sm:$0xff]
    %v149 = vld [vmem:[#allocation2 + $0xe8] sm:$0x3]
    %v150 = vld [vmem:[#allocation2 + $0xf0] sm:$0xff]
    %v151 = vld [vmem:[#allocation2 + $0xf8] sm:$0x3]
    %v152 = vld [vmem:[#allocation2 + $0x100] sm:$0xff]
    %v153 = vld [vmem:[#allocation2 + $0x108] sm:$0x3]
    %v154 = vld [vmem:[#allocation2 + $0x110] sm:$0xff]
    %v155 = vld [vmem:[#allocation2 + $0x118] sm:$0x3]
    %v156 = vld [vmem:[#allocation2 + $0x120] sm:$0xff]
    %v157 = vld [vmem:[#allocation2 + $0x128] sm:$0x3]
    %v158 = vld [vmem:[#allocation2 + $0x130] sm:$0xff]
    %v159 = vld [vmem:[#allocation2 + $0x138] sm:$0x3]
    %160 = vst.msk [vmem:[#allocation3] sm:$0xff] %vm61, %v120
    %161 = vst.msk [vmem:[#allocation3 + $0x8] sm:$0xff] %vm61, %v122
    %162 = vst.msk [vmem:[#allocation3 + $0x10] sm:$0xff] %vm61, %v124
    %163 = vst.msk [vmem:[#allocation3 + $0x18] sm:$0xff] %vm61, %v126
    %164 = vst.msk [vmem:[#allocation3 + $0x20] sm:$0xff] %vm61, %v128
    %165 = vst.msk [vmem:[#allocation3 + $0x28] sm:$0xff] %vm61, %v130
    %166 = vst.msk [vmem:[#allocation3 + $0x30] sm:$0xff] %vm61, %v132
    %167 = vst.msk [vmem:[#allocation3 + $0x38] sm:$0xff] %vm61, %v134
    %168 = vst.msk [vmem:[#allocation3 + $0x40] sm:$0xff] %vm61, %v140
    %169 = vst.msk [vmem:[#allocation3 + $0x48] sm:$0xff] %vm61, %v142
    %170 = vst.msk [vmem:[#allocation3 + $0x50] sm:$0xff] %vm61, %v144
    %171 = vst.msk [vmem:[#allocation3 + $0x58] sm:$0xff] %vm61, %v146
    %172 = vst.msk [vmem:[#allocation3 + $0x60] sm:$0xff] %vm61, %v148
    %173 = vst.msk [vmem:[#allocation3 + $0x68] sm:$0xff] %vm61, %v150
    %174 = vst.msk [vmem:[#allocation3 + $0x70] sm:$0xff] %vm61, %v152
    %175 = vst.msk [vmem:[#allocation3 + $0x78] sm:$0xff] %vm61, %v154
    %vm208 = vcmask 1046528
    %v209 = vrot.slane %v120, 1
    %v210 = vrot.slane %v121, 1
    %v211 = vsel %vm208, %v209, %v210
    %v212 = vrot.slane %v122, 1
    %v213 = vrot.slane %v123, 1
    %v214 = vsel %vm208, %v212, %v213
    %v215 = vrot.slane %v124, 1
    %v216 = vrot.slane %v125, 1
    %v217 = vsel %vm208, %v215, %v216
    %v218 = vrot.slane %v126, 1
    %v219 = vrot.slane %v127, 1
    %v220 = vsel %vm208, %v218, %v219
    %v221 = vrot.slane %v128, 1
    %v222 = vrot.slane %v129, 1
    %v223 = vsel %vm208, %v221, %v222
    %v224 = vrot.slane %v130, 1
    %v225 = vrot.slane %v131, 1
    %v226 = vsel %vm208, %v224, %v225
    %v227 = vrot.slane %v132, 1
    %v228 = vrot.slane %v133, 1
    %v229 = vsel %vm208, %v227, %v228
    %v230 = vrot.slane %v134, 1
    %v231 = vrot.slane %v135, 1
    %v232 = vsel %vm208, %v230, %v231
    %v233 = vrot.slane %v140, 1
    %v234 = vrot.slane %v141, 1
    %v235 = vsel %vm208, %v233, %v234
    %v236 = vrot.slane %v142, 1
    %v237 = vrot.slane %v143, 1
    %v238 = vsel %vm208, %v236, %v237
    %v239 = vrot.slane %v144, 1
    %v240 = vrot.slane %v145, 1
    %v241 = vsel %vm208, %v239, %v240
    %v242 = vrot.slane %v146, 1
    %v243 = vrot.slane %v147, 1
    %v244 = vsel %vm208, %v242, %v243
    %v245 = vrot.slane %v148, 1
    %v246 = vrot.slane %v149, 1
    %v247 = vsel %vm208, %v245, %v246
    %v248 = vrot.slane %v150, 1
    %v249 = vrot.slane %v151, 1
    %v250 = vsel %vm208, %v248, %v249
    %v251 = vrot.slane %v152, 1
    %v252 = vrot.slane %v153, 1
    %v253 = vsel %vm208, %v251, %v252
    %v254 = vrot.slane %v154, 1
    %v255 = vrot.slane %v155, 1
    %v256 = vsel %vm208, %v254, %v255
    %257 = vrot.lane.b32.xlu0 %v211, 4
    %v258 = vpop.permute.xlu0 %257
    %259 = vrot.lane.b32.xlu0 %v214, 4
    %v260 = vpop.permute.xlu0 %259
    %261 = vrot.lane.b32.xlu0 %v217, 4
    %v262 = vpop.permute.xlu0 %261
    %263 = vrot.lane.b32.xlu0 %v220, 4
    %v264 = vpop.permute.xlu0 %263
    %265 = vrot.lane.b32.xlu0 %v223, 4
    %v266 = vpop.permute.xlu0 %265
    %267 = vrot.lane.b32.xlu0 %v226, 4
    %v268 = vpop.permute.xlu0 %267
    %269 = vrot.lane.b32.xlu0 %v229, 4
    %v270 = vpop.permute.xlu0 %269
    %271 = vrot.lane.b32.xlu0 %v232, 4
    %v272 = vpop.permute.xlu0 %271
    %273 = vrot.lane.b32.xlu0 %v235, 4
    %v274 = vpop.permute.xlu0 %273
    %275 = vrot.lane.b32.xlu0 %v238, 4
    %v276 = vpop.permute.xlu0 %275
    %277 = vrot.lane.b32.xlu0 %v241, 4
    %v278 = vpop.permute.xlu0 %277
    %279 = vrot.lane.b32.xlu0 %v244, 4
    %v280 = vpop.permute.xlu0 %279
    %281 = vrot.lane.b32.xlu0 %v247, 4
    %v282 = vpop.permute.xlu0 %281
    %283 = vrot.lane.b32.xlu0 %v250, 4
    %v284 = vpop.permute.xlu0 %283
    %285 = vrot.lane.b32.xlu0 %v253, 4
    %v286 = vpop.permute.xlu0 %285
    %287 = vrot.lane.b32.xlu0 %v256, 4
    %v288 = vpop.permute.xlu0 %287
    %vm305 = vcmask 64544
    %306 = vst.msk [vmem:[#allocation3] sm:$0xff] %vm305, %v258
    %307 = vst.msk [vmem:[#allocation3 + $0x8] sm:$0xff] %vm305, %v260
    %308 = vst.msk [vmem:[#allocation3 + $0x10] sm:$0xff] %vm305, %v262
    %309 = vst.msk [vmem:[#allocation3 + $0x18] sm:$0xff] %vm305, %v264
    %310 = vst.msk [vmem:[#allocation3 + $0x20] sm:$0xff] %vm305, %v266
    %311 = vst.msk [vmem:[#allocation3 + $0x28] sm:$0xff] %vm305, %v268
    %312 = vst.msk [vmem:[#allocation3 + $0x30] sm:$0xff] %vm305, %v270
    %313 = vst.msk [vmem:[#allocation3 + $0x38] sm:$0xff] %vm305, %v272
    %314 = vst.msk [vmem:[#allocation3 + $0x40] sm:$0xff] %vm305, %v274
    %315 = vst.msk [vmem:[#allocation3 + $0x48] sm:$0xff] %vm305, %v276
    %316 = vst.msk [vmem:[#allocation3 + $0x50] sm:$0xff] %vm305, %v278
    %317 = vst.msk [vmem:[#allocation3 + $0x58] sm:$0xff] %vm305, %v280
    %318 = vst.msk [vmem:[#allocation3 + $0x60] sm:$0xff] %vm305, %v282
    %319 = vst.msk [vmem:[#allocation3 + $0x68] sm:$0xff] %vm305, %v284
    %320 = vst.msk [vmem:[#allocation3 + $0x70] sm:$0xff] %vm305, %v286
    %321 = vst.msk [vmem:[#allocation3 + $0x78] sm:$0xff] %vm305, %v288
    %vm322 = vcmask 1045504
    %v323 = vrot.slane %v120, 2
    %v324 = vrot.slane %v121, 2
    %v325 = vsel %vm322, %v323, %v324
    %v326 = vrot.slane %v122, 2
    %v327 = vrot.slane %v123, 2
    %v328 = vsel %vm322, %v326, %v327
    %v329 = vrot.slane %v124, 2
    %v330 = vrot.slane %v125, 2
    %v331 = vsel %vm322, %v329, %v330
    %v332 = vrot.slane %v126, 2
    %v333 = vrot.slane %v127, 2
    %v334 = vsel %vm322, %v332, %v333
    %v335 = vrot.slane %v128, 2
    %v336 = vrot.slane %v129, 2
    %v337 = vsel %vm322, %v335, %v336
    %v338 = vrot.slane %v130, 2
    %v339 = vrot.slane %v131, 2
    %v340 = vsel %vm322, %v338, %v339
    %v341 = vrot.slane %v132, 2
    %v342 = vrot.slane %v133, 2
    %v343 = vsel %vm322, %v341, %v342
    %v344 = vrot.slane %v134, 2
    %v345 = vrot.slane %v135, 2
    %v346 = vsel %vm322, %v344, %v345
    %v347 = vrot.slane %v140, 2
    %v348 = vrot.slane %v141, 2
    %v349 = vsel %vm322, %v347, %v348
    %v350 = vrot.slane %v142, 2
    %v351 = vrot.slane %v143, 2
    %v352 = vsel %vm322, %v350, %v351
    %v353 = vrot.slane %v144, 2
    %v354 = vrot.slane %v145, 2
    %v355 = vsel %vm322, %v353, %v354
    %v356 = vrot.slane %v146, 2
    %v357 = vrot.slane %v147, 2
    %v358 = vsel %vm322, %v356, %v357
    %v359 = vrot.slane %v148, 2
    %v360 = vrot.slane %v149, 2
    %v361 = vsel %vm322, %v359, %v360
    %v362 = vrot.slane %v150, 2
    %v363 = vrot.slane %v151, 2
    %v364 = vsel %vm322, %v362, %v363
    %v365 = vrot.slane %v152, 2
    %v366 = vrot.slane %v153, 2
    %v367 = vsel %vm322, %v365, %v366
    %v368 = vrot.slane %v154, 2
    %v369 = vrot.slane %v155, 2
    %v370 = vsel %vm322, %v368, %v369
    %371 = vrot.lane.b32.xlu0 %v325, 8
    %v372 = vpop.permute.xlu0 %371
    %373 = vrot.lane.b32.xlu0 %v328, 8
    %v374 = vpop.permute.xlu0 %373
    %375 = vrot.lane.b32.xlu0 %v331, 8
    %v376 = vpop.permute.xlu0 %375
    %377 = vrot.lane.b32.xlu0 %v334, 8
    %v378 = vpop.permute.xlu0 %377
    %379 = vrot.lane.b32.xlu0 %v337, 8
    %v380 = vpop.permute.xlu0 %379
    %381 = vrot.lane.b32.xlu0 %v340, 8
    %v382 = vpop.permute.xlu0 %381
    %383 = vrot.lane.b32.xlu0 %v343, 8
    %v384 = vpop.permute.xlu0 %383
    %385 = vrot.lane.b32.xlu0 %v346, 8
    %v386 = vpop.permute.xlu0 %385
    %387 = vrot.lane.b32.xlu0 %v349, 8
    %v388 = vpop.permute.xlu0 %387
    %389 = vrot.lane.b32.xlu0 %v352, 8
    %v390 = vpop.permute.xlu0 %389
    %391 = vrot.lane.b32.xlu0 %v355, 8
    %v392 = vpop.permute.xlu0 %391
    %393 = vrot.lane.b32.xlu0 %v358, 8
    %v394 = vpop.permute.xlu0 %393
    %395 = vrot.lane.b32.xlu0 %v361, 8
    %v396 = vpop.permute.xlu0 %395
    %397 = vrot.lane.b32.xlu0 %v364, 8
    %v398 = vpop.permute.xlu0 %397
    %399 = vrot.lane.b32.xlu0 %v367, 8
    %v400 = vpop.permute.xlu0 %399
    %401 = vrot.lane.b32.xlu0 %v370, 8
    %v402 = vpop.permute.xlu0 %401
    %vm419 = vcmask 97344
    %420 = vst.msk [vmem:[#allocation3] sm:$0xff] %vm419, %v372
    %421 = vst.msk [vmem:[#allocation3 + $0x8] sm:$0xff] %vm419, %v374
    %422 = vst.msk [vmem:[#allocation3 + $0x10] sm:$0xff] %vm419, %v376
    %423 = vst.msk [vmem:[#allocation3 + $0x18] sm:$0xff] %vm419, %v378
    %424 = vst.msk [vmem:[#allocation3 + $0x20] sm:$0xff] %vm419, %v380
    %425 = vst.msk [vmem:[#allocation3 + $0x28] sm:$0xff] %vm419, %v382
    %426 = vst.msk [vmem:[#allocation3 + $0x30] sm:$0xff] %vm419, %v384
    %427 = vst.msk [vmem:[#allocation3 + $0x38] sm:$0xff] %vm419, %v386
    %428 = vst.msk [vmem:[#allocation3 + $0x40] sm:$0xff] %vm419, %v388
    %429 = vst.msk [vmem:[#allocation3 + $0x48] sm:$0xff] %vm419, %v390
    %430 = vst.msk [vmem:[#allocation3 + $0x50] sm:$0xff] %vm419, %v392
    %431 = vst.msk [vmem:[#allocation3 + $0x58] sm:$0xff] %vm419, %v394
    %432 = vst.msk [vmem:[#allocation3 + $0x60] sm:$0xff] %vm419, %v396
    %433 = vst.msk [vmem:[#allocation3 + $0x68] sm:$0xff] %vm419, %v398
    %434 = vst.msk [vmem:[#allocation3 + $0x70] sm:$0xff] %vm419, %v400
    %435 = vst.msk [vmem:[#allocation3 + $0x78] sm:$0xff] %vm419, %v402
    %438 = vrot.lane.b32.xlu0 %v122, 12
    %v439 = vpop.permute.xlu0 %438
    %440 = vrot.lane.b32.xlu0 %v124, 12
    %v441 = vpop.permute.xlu0 %440
    %442 = vrot.lane.b32.xlu0 %v126, 12
    %v443 = vpop.permute.xlu0 %442
    %444 = vrot.lane.b32.xlu0 %v128, 12
    %v445 = vpop.permute.xlu0 %444
    %446 = vrot.lane.b32.xlu0 %v130, 12
    %v447 = vpop.permute.xlu0 %446
    %448 = vrot.lane.b32.xlu0 %v132, 12
    %v449 = vpop.permute.xlu0 %448
    %450 = vrot.lane.b32.xlu0 %v134, 12
    %v451 = vpop.permute.xlu0 %450
    %452 = vrot.lane.b32.xlu0 %v136, 12
    %v453 = vpop.permute.xlu0 %452
    %454 = vrot.lane.b32.xlu0 %v142, 12
    %v455 = vpop.permute.xlu0 %454
    %456 = vrot.lane.b32.xlu0 %v144, 12
    %v457 = vpop.permute.xlu0 %456
    %458 = vrot.lane.b32.xlu0 %v146, 12
    %v459 = vpop.permute.xlu0 %458
    %460 = vrot.lane.b32.xlu0 %v148, 12
    %v461 = vpop.permute.xlu0 %460
    %462 = vrot.lane.b32.xlu0 %v150, 12
    %v463 = vpop.permute.xlu0 %462
    %464 = vrot.lane.b32.xlu0 %v152, 12
    %v465 = vpop.permute.xlu0 %464
    %466 = vrot.lane.b32.xlu0 %v154, 12
    %v467 = vpop.permute.xlu0 %466
    %468 = vrot.lane.b32.xlu0 %v156, 12
    %v469 = vpop.permute.xlu0 %468
    %vm486 = vcmask 130144
    %487 = vst.msk [vmem:[#allocation3] sm:$0xff] %vm486, %v439
    %488 = vst.msk [vmem:[#allocation3 + $0x8] sm:$0xff] %vm486, %v441
    %489 = vst.msk [vmem:[#allocation3 + $0x10] sm:$0xff] %vm486, %v443
    %490 = vst.msk [vmem:[#allocation3 + $0x18] sm:$0xff] %vm486, %v445
    %491 = vst.msk [vmem:[#allocation3 + $0x20] sm:$0xff] %vm486, %v447
    %492 = vst.msk [vmem:[#allocation3 + $0x28] sm:$0xff] %vm486, %v449
    %493 = vst.msk [vmem:[#allocation3 + $0x30] sm:$0xff] %vm486, %v451
    %494 = vst.msk [vmem:[#allocation3 + $0x38] sm:$0xff] %vm486, %v453
    %495 = vst.msk [vmem:[#allocation3 + $0x40] sm:$0xff] %vm486, %v455
    %496 = vst.msk [vmem:[#allocation3 + $0x48] sm:$0xff] %vm486, %v457
    %497 = vst.msk [vmem:[#allocation3 + $0x50] sm:$0xff] %vm486, %v459
    %498 = vst.msk [vmem:[#allocation3 + $0x58] sm:$0xff] %vm486, %v461
    %499 = vst.msk [vmem:[#allocation3 + $0x60] sm:$0xff] %vm486, %v463
    %500 = vst.msk [vmem:[#allocation3 + $0x68] sm:$0xff] %vm486, %v465
    %501 = vst.msk [vmem:[#allocation3 + $0x70] sm:$0xff] %vm486, %v467
    %502 = vst.msk [vmem:[#allocation3 + $0x78] sm:$0xff] %vm486, %v469
    %v505 = vrot.slane %v136, 1
    %v506 = vrot.slane %v137, 1
    %v507 = vsel %vm208, %v505, %v506
    %v508 = vrot.slane %v156, 1
    %v509 = vrot.slane %v157, 1
    %v510 = vsel %vm208, %v508, %v509
    %511 = vrot.lane.b32.xlu0 %v214, 16
    %v512 = vpop.permute.xlu0 %511
    %513 = vrot.lane.b32.xlu0 %v217, 16
    %v514 = vpop.permute.xlu0 %513
    %515 = vrot.lane.b32.xlu0 %v220, 16
    %v516 = vpop.permute.xlu0 %515
    %517 = vrot.lane.b32.xlu0 %v223, 16
    %v518 = vpop.permute.xlu0 %517
    %519 = vrot.lane.b32.xlu0 %v226, 16
    %v520 = vpop.permute.xlu0 %519
    %521 = vrot.lane.b32.xlu0 %v229, 16
    %v522 = vpop.permute.xlu0 %521
    %523 = vrot.lane.b32.xlu0 %v232, 16
    %v524 = vpop.permute.xlu0 %523
    %525 = vrot.lane.b32.xlu0 %v507, 16
    %v526 = vpop.permute.xlu0 %525
    %527 = vrot.lane.b32.xlu0 %v238, 16
    %v528 = vpop.permute.xlu0 %527
    %529 = vrot.lane.b32.xlu0 %v241, 16
    %v530 = vpop.permute.xlu0 %529
    %531 = vrot.lane.b32.xlu0 %v244, 16
    %v532 = vpop.permute.xlu0 %531
    %533 = vrot.lane.b32.xlu0 %v247, 16
    %v534 = vpop.permute.xlu0 %533
    %535 = vrot.lane.b32.xlu0 %v250, 16
    %v536 = vpop.permute.xlu0 %535
    %537 = vrot.lane.b32.xlu0 %v253, 16
    %v538 = vpop.permute.xlu0 %537
    %539 = vrot.lane.b32.xlu0 %v256, 16
    %v540 = vpop.permute.xlu0 %539
    %541 = vrot.lane.b32.xlu0 %v510, 16
    %v542 = vpop.permute.xlu0 %541
    %vm559 = vcmask 162944
    %560 = vst.msk [vmem:[#allocation3] sm:$0xff] %vm559, %v512
    %561 = vst.msk [vmem:[#allocation3 + $0x8] sm:$0xff] %vm559, %v514
    %562 = vst.msk [vmem:[#allocation3 + $0x10] sm:$0xff] %vm559, %v516
    %563 = vst.msk [vmem:[#allocation3 + $0x18] sm:$0xff] %vm559, %v518
    %564 = vst.msk [vmem:[#allocation3 + $0x20] sm:$0xff] %vm559, %v520
    %565 = vst.msk [vmem:[#allocation3 + $0x28] sm:$0xff] %vm559, %v522
    %566 = vst.msk [vmem:[#allocation3 + $0x30] sm:$0xff] %vm559, %v524
    %567 = vst.msk [vmem:[#allocation3 + $0x38] sm:$0xff] %vm559, %v526
    %568 = vst.msk [vmem:[#allocation3 + $0x40] sm:$0xff] %vm559, %v528
    %569 = vst.msk [vmem:[#allocation3 + $0x48] sm:$0xff] %vm559, %v530
    %570 = vst.msk [vmem:[#allocation3 + $0x50] sm:$0xff] %vm559, %v532
    %571 = vst.msk [vmem:[#allocation3 + $0x58] sm:$0xff] %vm559, %v534
    %572 = vst.msk [vmem:[#allocation3 + $0x60] sm:$0xff] %vm559, %v536
    %573 = vst.msk [vmem:[#allocation3 + $0x68] sm:$0xff] %vm559, %v538
    %574 = vst.msk [vmem:[#allocation3 + $0x70] sm:$0xff] %vm559, %v540
    %575 = vst.msk [vmem:[#allocation3 + $0x78] sm:$0xff] %vm559, %v542
    %v576 = vrot.slane %v136, 2
    %v577 = vrot.slane %v137, 2
    %v578 = vsel %vm322, %v576, %v577
    %v579 = vrot.slane %v156, 2
    %v580 = vrot.slane %v157, 2
    %v581 = vsel %vm322, %v579, %v580
    %582 = vrot.lane.b32.xlu0 %v328, 20
    %v583 = vpop.permute.xlu0 %582
    %584 = vrot.lane.b32.xlu0 %v331, 20
    %v585 = vpop.permute.xlu0 %584
    %586 = vrot.lane.b32.xlu0 %v334, 20
    %v587 = vpop.permute.xlu0 %586
    %588 = vrot.lane.b32.xlu0 %v337, 20
    %v589 = vpop.permute.xlu0 %588
    %590 = vrot.lane.b32.xlu0 %v340, 20
    %v591 = vpop.permute.xlu0 %590
    %592 = vrot.lane.b32.xlu0 %v343, 20
    %v593 = vpop.permute.xlu0 %592
    %594 = vrot.lane.b32.xlu0 %v346, 20
    %v595 = vpop.permute.xlu0 %594
    %596 = vrot.lane.b32.xlu0 %v578, 20
    %v597 = vpop.permute.xlu0 %596
    %598 = vrot.lane.b32.xlu0 %v352, 20
    %v599 = vpop.permute.xlu0 %598
    %600 = vrot.lane.b32.xlu0 %v355, 20
    %v601 = vpop.permute.xlu0 %600
    %602 = vrot.lane.b32.xlu0 %v358, 20
    %v603 = vpop.permute.xlu0 %602
    %604 = vrot.lane.b32.xlu0 %v361, 20
    %v605 = vpop.permute.xlu0 %604
    %606 = vrot.lane.b32.xlu0 %v364, 20
    %v607 = vpop.permute.xlu0 %606
    %608 = vrot.lane.b32.xlu0 %v367, 20
    %v609 = vpop.permute.xlu0 %608
    %610 = vrot.lane.b32.xlu0 %v370, 20
    %v611 = vpop.permute.xlu0 %610
    %612 = vrot.lane.b32.xlu0 %v581, 20
    %v613 = vpop.permute.xlu0 %612
    %vm630 = vcmask 195744
    %631 = vst.msk [vmem:[#allocation3] sm:$0xff] %vm630, %v583
    %632 = vst.msk [vmem:[#allocation3 + $0x8] sm:$0xff] %vm630, %v585
    %633 = vst.msk [vmem:[#allocation3 + $0x10] sm:$0xff] %vm630, %v587
    %634 = vst.msk [vmem:[#allocation3 + $0x18] sm:$0xff] %vm630, %v589
    %635 = vst.msk [vmem:[#allocation3 + $0x20] sm:$0xff] %vm630, %v591
    %636 = vst.msk [vmem:[#allocation3 + $0x28] sm:$0xff] %vm630, %v593
    %637 = vst.msk [vmem:[#allocation3 + $0x30] sm:$0xff] %vm630, %v595
    %638 = vst.msk [vmem:[#allocation3 + $0x38] sm:$0xff] %vm630, %v597
    %639 = vst.msk [vmem:[#allocation3 + $0x40] sm:$0xff] %vm630, %v599
    %640 = vst.msk [vmem:[#allocation3 + $0x48] sm:$0xff] %vm630, %v601
    %641 = vst.msk [vmem:[#allocation3 + $0x50] sm:$0xff] %vm630, %v603
    %642 = vst.msk [vmem:[#allocation3 + $0x58] sm:$0xff] %vm630, %v605
    %643 = vst.msk [vmem:[#allocation3 + $0x60] sm:$0xff] %vm630, %v607
    %644 = vst.msk [vmem:[#allocation3 + $0x68] sm:$0xff] %vm630, %v609
    %645 = vst.msk [vmem:[#allocation3 + $0x70] sm:$0xff] %vm630, %v611
    %646 = vst.msk [vmem:[#allocation3 + $0x78] sm:$0xff] %vm630, %v613
    %649 = vrot.lane.b32.xlu0 %v124, 24
    %v650 = vpop.permute.xlu0 %649
    %651 = vrot.lane.b32.xlu0 %v126, 24
    %v652 = vpop.permute.xlu0 %651
    %653 = vrot.lane.b32.xlu0 %v128, 24
    %v654 = vpop.permute.xlu0 %653
    %655 = vrot.lane.b32.xlu0 %v130, 24
    %v656 = vpop.permute.xlu0 %655
    %657 = vrot.lane.b32.xlu0 %v132, 24
    %v658 = vpop.permute.xlu0 %657
    %659 = vrot.lane.b32.xlu0 %v134, 24
    %v660 = vpop.permute.xlu0 %659
    %661 = vrot.lane.b32.xlu0 %v136, 24
    %v662 = vpop.permute.xlu0 %661
    %663 = vrot.lane.b32.xlu0 %v138, 24
    %v664 = vpop.permute.xlu0 %663
    %665 = vrot.lane.b32.xlu0 %v144, 24
    %v666 = vpop.permute.xlu0 %665
    %667 = vrot.lane.b32.xlu0 %v146, 24
    %v668 = vpop.permute.xlu0 %667
    %669 = vrot.lane.b32.xlu0 %v148, 24
    %v670 = vpop.permute.xlu0 %669
    %671 = vrot.lane.b32.xlu0 %v150, 24
    %v672 = vpop.permute.xlu0 %671
    %673 = vrot.lane.b32.xlu0 %v152, 24
    %v674 = vpop.permute.xlu0 %673
    %675 = vrot.lane.b32.xlu0 %v154, 24
    %v676 = vpop.permute.xlu0 %675
    %677 = vrot.lane.b32.xlu0 %v156, 24
    %v678 = vpop.permute.xlu0 %677
    %679 = vrot.lane.b32.xlu0 %v158, 24
    %v680 = vpop.permute.xlu0 %679
    %vm697 = vcmask 228544
    %698 = vst.msk [vmem:[#allocation3] sm:$0xff] %vm697, %v650
    %699 = vst.msk [vmem:[#allocation3 + $0x8] sm:$0xff] %vm697, %v652
    %700 = vst.msk [vmem:[#allocation3 + $0x10] sm:$0xff] %vm697, %v654
    %701 = vst.msk [vmem:[#allocation3 + $0x18] sm:$0xff] %vm697, %v656
    %702 = vst.msk [vmem:[#allocation3 + $0x20] sm:$0xff] %vm697, %v658
    %703 = vst.msk [vmem:[#allocation3 + $0x28] sm:$0xff] %vm697, %v660
    %704 = vst.msk [vmem:[#allocation3 + $0x30] sm:$0xff] %vm697, %v662
    %705 = vst.msk [vmem:[#allocation3 + $0x38] sm:$0xff] %vm697, %v664
    %706 = vst.msk [vmem:[#allocation3 + $0x40] sm:$0xff] %vm697, %v666
    %707 = vst.msk [vmem:[#allocation3 + $0x48] sm:$0xff] %vm697, %v668
    %708 = vst.msk [vmem:[#allocation3 + $0x50] sm:$0xff] %vm697, %v670
    %709 = vst.msk [vmem:[#allocation3 + $0x58] sm:$0xff] %vm697, %v672
    %710 = vst.msk [vmem:[#allocation3 + $0x60] sm:$0xff] %vm697, %v674
    %711 = vst.msk [vmem:[#allocation3 + $0x68] sm:$0xff] %vm697, %v676
    %712 = vst.msk [vmem:[#allocation3 + $0x70] sm:$0xff] %vm697, %v678
    %713 = vst.msk [vmem:[#allocation3 + $0x78] sm:$0xff] %vm697, %v680
    %v716 = vrot.slane %v138, 1
    %v717 = vrot.slane %v139, 1
    %v718 = vsel %vm208, %v716, %v717
    %v719 = vrot.slane %v158, 1
    %v720 = vrot.slane %v159, 1
    %v721 = vsel %vm208, %v719, %v720
    %722 = vrot.lane.b32.xlu0 %v217, 28
    %v723 = vpop.permute.xlu0 %722
    %724 = vrot.lane.b32.xlu0 %v220, 28
    %v725 = vpop.permute.xlu0 %724
    %726 = vrot.lane.b32.xlu0 %v223, 28
    %v727 = vpop.permute.xlu0 %726
    %728 = vrot.lane.b32.xlu0 %v226, 28
    %v729 = vpop.permute.xlu0 %728
    %730 = vrot.lane.b32.xlu0 %v229, 28
    %v731 = vpop.permute.xlu0 %730
    %732 = vrot.lane.b32.xlu0 %v232, 28
    %v733 = vpop.permute.xlu0 %732
    %734 = vrot.lane.b32.xlu0 %v507, 28
    %v735 = vpop.permute.xlu0 %734
    %736 = vrot.lane.b32.xlu0 %v718, 28
    %v737 = vpop.permute.xlu0 %736
    %738 = vrot.lane.b32.xlu0 %v241, 28
    %v739 = vpop.permute.xlu0 %738
    %740 = vrot.lane.b32.xlu0 %v244, 28
    %v741 = vpop.permute.xlu0 %740
    %742 = vrot.lane.b32.xlu0 %v247, 28
    %v743 = vpop.permute.xlu0 %742
    %744 = vrot.lane.b32.xlu0 %v250, 28
    %v745 = vpop.permute.xlu0 %744
    %746 = vrot.lane.b32.xlu0 %v253, 28
    %v747 = vpop.permute.xlu0 %746
    %748 = vrot.lane.b32.xlu0 %v256, 28
    %v749 = vpop.permute.xlu0 %748
    %750 = vrot.lane.b32.xlu0 %v510, 28
    %v751 = vpop.permute.xlu0 %750
    %752 = vrot.lane.b32.xlu0 %v721, 28
    %v753 = vpop.permute.xlu0 %752
    %vm770 = vcmask 261344
    %771 = vst.msk [vmem:[#allocation3] sm:$0xff] %vm770, %v723
    %772 = vst.msk [vmem:[#allocation3 + $0x8] sm:$0xff] %vm770, %v725
    %773 = vst.msk [vmem:[#allocation3 + $0x10] sm:$0xff] %vm770, %v727
    %774 = vst.msk [vmem:[#allocation3 + $0x18] sm:$0xff] %vm770, %v729
    %775 = vst.msk [vmem:[#allocation3 + $0x20] sm:$0xff] %vm770, %v731
    %776 = vst.msk [vmem:[#allocation3 + $0x28] sm:$0xff] %vm770, %v733
    %777 = vst.msk [vmem:[#allocation3 + $0x30] sm:$0xff] %vm770, %v735
    %778 = vst.msk [vmem:[#allocation3 + $0x38] sm:$0xff] %vm770, %v737
    %779 = vst.msk [vmem:[#allocation3 + $0x40] sm:$0xff] %vm770, %v739
    %780 = vst.msk [vmem:[#allocation3 + $0x48] sm:$0xff] %vm770, %v741
    %781 = vst.msk [vmem:[#allocation3 + $0x50] sm:$0xff] %vm770, %v743
    %782 = vst.msk [vmem:[#allocation3 + $0x58] sm:$0xff] %vm770, %v745
    %783 = vst.msk [vmem:[#allocation3 + $0x60] sm:$0xff] %vm770, %v747
    %784 = vst.msk [vmem:[#allocation3 + $0x68] sm:$0xff] %vm770, %v749
    %785 = vst.msk [vmem:[#allocation3 + $0x70] sm:$0xff] %vm770, %v751
    %786 = vst.msk [vmem:[#allocation3 + $0x78] sm:$0xff] %vm770, %v753
    %v787 = vrot.slane %v138, 2
    %v788 = vrot.slane %v139, 2
    %v789 = vsel %vm322, %v787, %v788
    %v790 = vrot.slane %v158, 2
    %v791 = vrot.slane %v159, 2
    %v792 = vsel %vm322, %v790, %v791
    %793 = vrot.lane.b32.xlu0 %v331, 32
    %v794 = vpop.permute.xlu0 %793
    %795 = vrot.lane.b32.xlu0 %v334, 32
    %v796 = vpop.permute.xlu0 %795
    %797 = vrot.lane.b32.xlu0 %v337, 32
    %v798 = vpop.permute.xlu0 %797
    %799 = vrot.lane.b32.xlu0 %v340, 32
    %v800 = vpop.permute.xlu0 %799
    %801 = vrot.lane.b32.xlu0 %v343, 32
    %v802 = vpop.permute.xlu0 %801
    %803 = vrot.lane.b32.xlu0 %v346, 32
    %v804 = vpop.permute.xlu0 %803
    %805 = vrot.lane.b32.xlu0 %v578, 32
    %v806 = vpop.permute.xlu0 %805
    %807 = vrot.lane.b32.xlu0 %v789, 32
    %v808 = vpop.permute.xlu0 %807
    %809 = vrot.lane.b32.xlu0 %v355, 32
    %v810 = vpop.permute.xlu0 %809
    %811 = vrot.lane.b32.xlu0 %v358, 32
    %v812 = vpop.permute.xlu0 %811
    %813 = vrot.lane.b32.xlu0 %v361, 32
    %v814 = vpop.permute.xlu0 %813
    %815 = vrot.lane.b32.xlu0 %v364, 32
    %v816 = vpop.permute.xlu0 %815
    %817 = vrot.lane.b32.xlu0 %v367, 32
    %v818 = vpop.permute.xlu0 %817
    %819 = vrot.lane.b32.xlu0 %v370, 32
    %v820 = vpop.permute.xlu0 %819
    %821 = vrot.lane.b32.xlu0 %v581, 32
    %v822 = vpop.permute.xlu0 %821
    %823 = vrot.lane.b32.xlu0 %v792, 32
    %v824 = vpop.permute.xlu0 %823
    %vm841 = vcmask 294144
    %842 = vst.msk [vmem:[#allocation3] sm:$0xff] %vm841, %v794
    %843 = vst.msk [vmem:[#allocation3 + $0x8] sm:$0xff] %vm841, %v796
    %844 = vst.msk [vmem:[#allocation3 + $0x10] sm:$0xff] %vm841, %v798
    %845 = vst.msk [vmem:[#allocation3 + $0x18] sm:$0xff] %vm841, %v800
    %846 = vst.msk [vmem:[#allocation3 + $0x20] sm:$0xff] %vm841, %v802
    %847 = vst.msk [vmem:[#allocation3 + $0x28] sm:$0xff] %vm841, %v804
    %848 = vst.msk [vmem:[#allocation3 + $0x30] sm:$0xff] %vm841, %v806
    %849 = vst.msk [vmem:[#allocation3 + $0x38] sm:$0xff] %vm841, %v808
    %850 = vst.msk [vmem:[#allocation3 + $0x40] sm:$0xff] %vm841, %v810
    %851 = vst.msk [vmem:[#allocation3 + $0x48] sm:$0xff] %vm841, %v812
    %852 = vst.msk [vmem:[#allocation3 + $0x50] sm:$0xff] %vm841, %v814
    %853 = vst.msk [vmem:[#allocation3 + $0x58] sm:$0xff] %vm841, %v816
    %854 = vst.msk [vmem:[#allocation3 + $0x60] sm:$0xff] %vm841, %v818
    %855 = vst.msk [vmem:[#allocation3 + $0x68] sm:$0xff] %vm841, %v820
    %856 = vst.msk [vmem:[#allocation3 + $0x70] sm:$0xff] %vm841, %v822
    %857 = vst.msk [vmem:[#allocation3 + $0x78] sm:$0xff] %vm841, %v824
    %v858 = vld [vmem:[#allocation3] sm:$0xff]
    %v859 = vld [vmem:[#allocation3 + $0x8] sm:$0xff]
    %v860 = vld [vmem:[#allocation3 + $0x10] sm:$0xff]
    %v861 = vld [vmem:[#allocation3 + $0x18] sm:$0xff]
    %v862 = vld [vmem:[#allocation3 + $0x20] sm:$0xff]
    %v863 = vld [vmem:[#allocation3 + $0x28] sm:$0xff]
    %v864 = vld [vmem:[#allocation3 + $0x30] sm:$0xff]
    %v865 = vld [vmem:[#allocation3 + $0x38] sm:$0xff]
    %v866 = vld [vmem:[#allocation3 + $0x40] sm:$0xff]
    %v867 = vld [vmem:[#allocation3 + $0x48] sm:$0xff]
    %v868 = vld [vmem:[#allocation3 + $0x50] sm:$0xff]
    %v869 = vld [vmem:[#allocation3 + $0x58] sm:$0xff]
    %v870 = vld [vmem:[#allocation3 + $0x60] sm:$0xff]
    %v871 = vld [vmem:[#allocation3 + $0x68] sm:$0xff]
    %v872 = vld [vmem:[#allocation3 + $0x70] sm:$0xff]
    %v873 = vld [vmem:[#allocation3 + $0x78] sm:$0xff]
    %v874 = vld [vmem:[%s2] sm:$0xff]
    %v875 = vld [vmem:[%s2 + $0x8] sm:$0xff]
    %v876 = vld [vmem:[%s2 + $0x10] sm:$0xff]
    %v877 = vld [vmem:[%s2 + $0x18] sm:$0xff]
    %v878 = vld [vmem:[%s2 + $0x20] sm:$0xf]
    %v879 = vld [vmem:[%s3] sm:$0x1]
    %v881 = vlaneseq
    %v882 = vshrl.u32 %v881, 7
    %v883 = vsub.s32 0, %v882
    %v884 = vrot.slane %v879, %v883
    %vm886 = vcmask 293888
    %v888 = vsel %vm886, %v858, 0
    %v891 = vsel %vm886, %v859, 0
    %v894 = vsel %vm886, %v860, 0
    %v897 = vsel %vm886, %v861, 0
    %v900 = vsel %vm886, %v862, 0
    %v903 = vsel %vm886, %v863, 0
    %v906 = vsel %vm886, %v864, 0
    %v909 = vsel %vm886, %v865, 0
    %v912 = vsel %vm886, %v866, 0
    %v915 = vsel %vm886, %v867, 0
    %v918 = vsel %vm886, %v868, 0
    %v921 = vsel %vm886, %v869, 0
    %v924 = vsel %vm886, %v870, 0
    %v927 = vsel %vm886, %v871, 0
    %v930 = vsel %vm886, %v872, 0
    %v933 = vsel %vm886, %v873, 0
    %vm935 = vcmask 1043456
    %v937 = vsel %vm935, %v878, 0
    %939 = vmatprep.subr.mxu0 0.0
    %940 = vmatpush1.msra.mxu0 %v874
    %941 = vmatprep.subr.mxu0 0.0
    %942 = vmatpush1.msra.mxu0 %v875
    %943 = vmatprep.subr.mxu0 0.0
    %944 = vmatpush1.msra.mxu0 %v876
    %945 = vmatprep.subr.mxu0 0.0
    %946 = vmatpush1.msra.mxu0 %v877
    %947 = vmatprep.subr.mxu0 0.0
    %948 = vmatpush1.msra.mxu0 %v937
    %949 = vmatprep.subr.mxu0 0.0
    %950 = vmatpush1.msra.mxu0 0.0
    %951 = vmatprep.subr.mxu0 0.0
    %952 = vmatpush1.msra.mxu0 0.0
    %953 = vmatprep.subr.mxu0 0.0
    %954 = vmatpush1.msra.mxu0 0.0
    %955 = vmatprep.subr.mxu0 0.0
    %956 = vmatpush1.msra.mxu0 0.0
    %957 = vmatprep.subr.mxu0 0.0
    %958 = vmatpush1.msra.mxu0 0.0
    %959 = vmatprep.subr.mxu0 0.0
    %960 = vmatpush1.msra.mxu0 0.0
    %961 = vmatprep.subr.mxu0 0.0
    %962 = vmatpush1.msra.mxu0 0.0
    %963 = vmatprep.subr.mxu0 0.0
    %964 = vmatpush1.msra.mxu0 0.0
    %965 = vmatprep.subr.mxu0 0.0
    %966 = vmatpush1.msra.mxu0 0.0
    %967 = vmatprep.subr.mxu0 0.0
    %968 = vmatpush1.msra.mxu0 0.0
    %969 = vmatprep.subr.mxu0 0.0
    %970 = vmatpush1.msra.mxu0 0.0
    %971 = vmatprep.subr.mxu0 0.0
    %972 = vmatpush1.msra.mxu0 0.0
    %973 = vmatprep.subr.mxu0 0.0
    %974 = vmatpush1.msra.mxu0 0.0
    %975 = vmatprep.subr.mxu0 0.0
    %976 = vmatpush1.msra.mxu0 0.0
    %977 = vmatprep.subr.mxu0 0.0
    %978 = vmatpush1.msra.mxu0 0.0
    %979 = vmatprep.subr.mxu0 0.0
    %980 = vmatpush1.msra.mxu0 0.0
    %981 = vmatprep.subr.mxu0 0.0
    %982 = vmatpush1.msra.mxu0 0.0
    %983 = vmatprep.subr.mxu0 0.0
    %984 = vmatpush1.msra.mxu0 0.0
    %985 = vmatprep.subr.mxu0 0.0
    %986 = vmatpush1.msra.mxu0 0.0
    %987 = vmatprep.subr.mxu0 0.0
    %988 = vmatpush1.msra.mxu0 0.0
    %989 = vmatprep.subr.mxu0 0.0
    %990 = vmatpush1.msra.mxu0 0.0
    %991 = vmatprep.subr.mxu0 0.0
    %992 = vmatpush1.msra.mxu0 0.0
    %993 = vmatprep.subr.mxu0 0.0
    %994 = vmatpush1.msra.mxu0 0.0
    %995 = vmatprep.subr.mxu0 0.0
    %996 = vmatpush1.msra.mxu0 0.0
    %997 = vmatprep.subr.mxu0 0.0
    %998 = vmatpush1.msra.mxu0 0.0
    %999 = vmatprep.subr.mxu0 0.0
    %1000 = vmatpush1.msra.mxu0 0.0
    %1001 = vmatprep.subr.mxu0 0.0
    %1002 = vmatpush1.msra.mxu0 0.0
    %1003 = vmatprep.mubr.f32.mxu0 0.0
    %1004 = vmatmul.mubr.f32.gmra.mrb[0].mxu0 %v888
    %v1005 = vpop.f32.mrb[0].mxu0
    %v1006 = vadd.f32 %v884, %v1005
    %v1007 = vpop.f32.mrb[0].mxu0
    %1008 = vmatprep.mubr.f32.mxu0 0.0
    %1009 = vmatmul.mubr.f32.gmra.mrb[0].mxu0 %v891
    %v1010 = vpop.f32.mrb[0].mxu0
    %v1011 = vadd.f32 %v884, %v1010
    %v1012 = vpop.f32.mrb[0].mxu0
    %1013 = vmatprep.mubr.f32.mxu0 0.0
    %1014 = vmatmul.mubr.f32.gmra.mrb[0].mxu0 %v894
    %v1015 = vpop.f32.mrb[0].mxu0
    %v1016 = vadd.f32 %v884, %v1015
    %v1017 = vpop.f32.mrb[0].mxu0
    %1018 = vmatprep.mubr.f32.mxu0 0.0
    %1019 = vmatmul.mubr.f32.gmra.mrb[0].mxu0 %v897
    %v1020 = vpop.f32.mrb[0].mxu0
    %v1021 = vadd.f32 %v884, %v1020
    %v1022 = vpop.f32.mrb[0].mxu0
    %1023 = vmatprep.mubr.f32.mxu0 0.0
    %1024 = vmatmul.mubr.f32.gmra.mrb[0].mxu0 %v900
    %v1025 = vpop.f32.mrb[0].mxu0
    %v1026 = vadd.f32 %v884, %v1025
    %v1027 = vpop.f32.mrb[0].mxu0
    %1028 = vmatprep.mubr.f32.mxu0 0.0
    %1029 = vmatmul.mubr.f32.gmra.mrb[0].mxu0 %v903
    %v1030 = vpop.f32.mrb[0].mxu0
    %v1031 = vadd.f32 %v884, %v1030
    %v1032 = vpop.f32.mrb[0].mxu0
    %1033 = vmatprep.mubr.f32.mxu0 0.0
    %1034 = vmatmul.mubr.f32.gmra.mrb[0].mxu0 %v906
    %v1035 = vpop.f32.mrb[0].mxu0
    %v1036 = vadd.f32 %v884, %v1035
    %v1037 = vpop.f32.mrb[0].mxu0
    %1038 = vmatprep.mubr.f32.mxu0 0.0
    %1039 = vmatmul.mubr.f32.gmra.mrb[0].mxu0 %v909
    %v1040 = vpop.f32.mrb[0].mxu0
    %v1041 = vadd.f32 %v884, %v1040
    %v1042 = vpop.f32.mrb[0].mxu0
    %1043 = vmatprep.mubr.f32.mxu0 0.0
    %1044 = vmatmul.mubr.f32.gmra.mrb[0].mxu0 %v912
    %v1045 = vpop.f32.mrb[0].mxu0
    %v1046 = vadd.f32 %v884, %v1045
    %v1047 = vpop.f32.mrb[0].mxu0
    %1048 = vmatprep.mubr.f32.mxu0 0.0
    %1049 = vmatmul.mubr.f32.gmra.mrb[0].mxu0 %v915
    %v1050 = vpop.f32.mrb[0].mxu0
    %v1051 = vadd.f32 %v884, %v1050
    %v1052 = vpop.f32.mrb[0].mxu0
    %1053 = vmatprep.mubr.f32.mxu0 0.0
    %1054 = vmatmul.mubr.f32.gmra.mrb[0].mxu0 %v918
    %v1055 = vpop.f32.mrb[0].mxu0
    %v1056 = vadd.f32 %v884, %v1055
    %v1057 = vpop.f32.mrb[0].mxu0
    %1058 = vmatprep.mubr.f32.mxu0 0.0
    %1059 = vmatmul.mubr.f32.gmra.mrb[0].mxu0 %v921
    %v1060 = vpop.f32.mrb[0].mxu0
    %v1061 = vadd.f32 %v884, %v1060
    %v1062 = vpop.f32.mrb[0].mxu0
    %1063 = vmatprep.mubr.f32.mxu0 0.0
    %1064 = vmatmul.mubr.f32.gmra.mrb[0].mxu0 %v924
    %v1065 = vpop.f32.mrb[0].mxu0
    %v1066 = vadd.f32 %v884, %v1065
    %v1067 = vpop.f32.mrb[0].mxu0
    %1068 = vmatprep.mubr.f32.mxu0 0.0
    %1069 = vmatmul.mubr.f32.gmra.mrb[0].mxu0 %v927
    %v1070 = vpop.f32.mrb[0].mxu0
    %v1071 = vadd.f32 %v884, %v1070
    %v1072 = vpop.f32.mrb[0].mxu0
    %1073 = vmatprep.mubr.f32.mxu0 0.0
    %1074 = vmatmul.mubr.f32.gmra.mrb[0].mxu0 %v930
    %v1075 = vpop.f32.mrb[0].mxu0
    %v1076 = vadd.f32 %v884, %v1075
    %v1077 = vpop.f32.mrb[0].mxu0
    %1078 = vmatprep.mubr.f32.mxu0 0.0
    %1079 = vmatmul.mubr.f32.gmra.mrb[0].mxu0 %v933
    %v1080 = vpop.f32.mrb[0].mxu0
    %v1081 = vadd.f32 %v884, %v1080
    %v1082 = vpop.f32.mrb[0].mxu0
    %1083 = vdwg.mxu0
    %v1084 = vmax.f32 %v1006, 0.0
    %v1085 = vmax.f32 %v1011, 0.0
    %v1086 = vmax.f32 %v1016, 0.0
    %v1087 = vmax.f32 %v1021, 0.0
    %v1088 = vmax.f32 %v1026, 0.0
    %v1089 = vmax.f32 %v1031, 0.0
    %v1090 = vmax.f32 %v1036, 0.0
    %v1091 = vmax.f32 %v1041, 0.0
    %v1092 = vmax.f32 %v1046, 0.0
    %v1093 = vmax.f32 %v1051, 0.0
    %v1094 = vmax.f32 %v1056, 0.0
    %v1095 = vmax.f32 %v1061, 0.0
    %v1096 = vmax.f32 %v1066, 0.0
    %v1097 = vmax.f32 %v1071, 0.0
    %v1098 = vmax.f32 %v1076, 0.0
    %v1099 = vmax.f32 %v1081, 0.0
    %vm1100 = vcmask 130048
    %1101 = vst.msk [vmem:[#allocation4] sm:$0xff] %vm1100, 0.0
    %vm1102 = vcmask 123904
    %1103 = vst.msk [vmem:[#allocation4 + $0x8] sm:$0x3] %vm1102, 0.0
    %1104 = vst.msk [vmem:[#allocation4 + $0x10] sm:$0xff] %vm1100, 0.0
    %1105 = vst.msk [vmem:[#allocation4 + $0x18] sm:$0x3] %vm1102, 0.0
    %1106 = vst.msk [vmem:[#allocation4 + $0x20] sm:$0xff] %vm1100, 0.0
    %1107 = vst.msk [vmem:[#allocation4 + $0x28] sm:$0x3] %vm1102, 0.0
    %1108 = vst.msk [vmem:[#allocation4 + $0x30] sm:$0xff] %vm1100, 0.0
    %1109 = vst.msk [vmem:[#allocation4 + $0x38] sm:$0x3] %vm1102, 0.0
    %1110 = vst.msk [vmem:[#allocation4 + $0x40] sm:$0xff] %vm1100, 0.0
    %1111 = vst.msk [vmem:[#allocation4 + $0x48] sm:$0x3] %vm1102, 0.0
    %1112 = vst.msk [vmem:[#allocation4 + $0x50] sm:$0xff] %vm1100, 0.0
    %1113 = vst.msk [vmem:[#allocation4 + $0x58] sm:$0x3] %vm1102, 0.0
    %1114 = vst.msk [vmem:[#allocation4 + $0x60] sm:$0xff] %vm1100, 0.0
    %1115 = vst.msk [vmem:[#allocation4 + $0x68] sm:$0x3] %vm1102, 0.0
    %1116 = vst.msk [vmem:[#allocation4 + $0x70] sm:$0xff] %vm1100, 0.0
    %1117 = vst.msk [vmem:[#allocation4 + $0x78] sm:$0x3] %vm1102, 0.0
    %1118 = vst.msk [vmem:[#allocation4 + $0x80] sm:$0xff] %vm1100, 0.0
    %1119 = vst.msk [vmem:[#allocation4 + $0x88] sm:$0x3] %vm1102, 0.0
    %1120 = vst.msk [vmem:[#allocation4 + $0x90] sm:$0xff] %vm1100, 0.0
    %1121 = vst.msk [vmem:[#allocation4 + $0x98] sm:$0x3] %vm1102, 0.0
    %1122 = vst.msk [vmem:[#allocation4 + $0xa0] sm:$0xff] %vm1100, 0.0
    %1123 = vst.msk [vmem:[#allocation4 + $0xa8] sm:$0x3] %vm1102, 0.0
    %1124 = vst.msk [vmem:[#allocation4 + $0xb0] sm:$0xff] %vm1100, 0.0
    %1125 = vst.msk [vmem:[#allocation4 + $0xb8] sm:$0x3] %vm1102, 0.0
    %1126 = vst.msk [vmem:[#allocation4 + $0xc0] sm:$0xff] %vm1100, 0.0
    %1127 = vst.msk [vmem:[#allocation4 + $0xc8] sm:$0x3] %vm1102, 0.0
    %1128 = vst.msk [vmem:[#allocation4 + $0xd0] sm:$0xff] %vm1100, 0.0
    %1129 = vst.msk [vmem:[#allocation4 + $0xd8] sm:$0x3] %vm1102, 0.0
    %1130 = vst.msk [vmem:[#allocation4 + $0xe0] sm:$0xff] %vm1100, 0.0
    %1131 = vst.msk [vmem:[#allocation4 + $0xe8] sm:$0x3] %vm1102, 0.0
    %1132 = vst.msk [vmem:[#allocation4 + $0xf0] sm:$0xff] %vm1100, 0.0
    %1133 = vst.msk [vmem:[#allocation4 + $0xf8] sm:$0x3] %vm1102, 0.0
    %1134 = vst.msk [vmem:[#allocation4 + $0x100] sm:$0xff] %vm1100, 0.0
    %1135 = vst.msk [vmem:[#allocation4 + $0x108] sm:$0x3] %vm1102, 0.0
    %1136 = vst.msk [vmem:[#allocation4 + $0x110] sm:$0xff] %vm1100, 0.0
    %1137 = vst.msk [vmem:[#allocation4 + $0x118] sm:$0x3] %vm1102, 0.0
    %1138 = vst.msk [vmem:[#allocation4 + $0x120] sm:$0xff] %vm1100, 0.0
    %1139 = vst.msk [vmem:[#allocation4 + $0x128] sm:$0x3] %vm1102, 0.0
    %1140 = vst.msk [vmem:[#allocation4 + $0x130] sm:$0xff] %vm1100, 0.0
    %1141 = vst.msk [vmem:[#allocation4 + $0x138] sm:$0x3] %vm1102, 0.0
    %s1142 = scalar_lea.vmem [#allocation4], 16
    %1143 = vst.msk [vmem:[%s1142 + $0x1] sm:$0xff] %vm1100, %v1084
    %1144 = vst.msk [vmem:[%s1142 + $0x11] sm:$0xff] %vm1100, %v1085
    %1145 = vst.msk [vmem:[%s1142 + $0x21] sm:$0xff] %vm1100, %v1086
    %1146 = vst.msk [vmem:[%s1142 + $0x31] sm:$0xff] %vm1100, %v1087
    %1147 = vst.msk [vmem:[%s1142 + $0x41] sm:$0xff] %vm1100, %v1088
    %1148 = vst.msk [vmem:[%s1142 + $0x51] sm:$0xff] %vm1100, %v1089
    %1149 = vst.msk [vmem:[%s1142 + $0x61] sm:$0xff] %vm1100, %v1090
    %1150 = vst.msk [vmem:[%s1142 + $0x71] sm:$0xff] %vm1100, %v1091
    %1151 = vst.msk [vmem:[%s1142 + $0xa1] sm:$0xff] %vm1100, %v1092
    %1152 = vst.msk [vmem:[%s1142 + $0xb1] sm:$0xff] %vm1100, %v1093
    %1153 = vst.msk [vmem:[%s1142 + $0xc1] sm:$0xff] %vm1100, %v1094
    %1154 = vst.msk [vmem:[%s1142 + $0xd1] sm:$0xff] %vm1100, %v1095
    %1155 = vst.msk [vmem:[%s1142 + $0xe1] sm:$0xff] %vm1100, %v1096
    %1156 = vst.msk [vmem:[%s1142 + $0xf1] sm:$0xff] %vm1100, %v1097
    %1157 = vst.msk [vmem:[%s1142 + $0x101] sm:$0xff] %vm1100, %v1098
    %1158 = vst.msk [vmem:[%s1142 + $0x111] sm:$0xff] %vm1100, %v1099
    %v1159 = vld [vmem:[#allocation4] sm:$0xff]
    %v1160 = vld [vmem:[#allocation4 + $0x8] sm:$0x3]
    %v1161 = vld [vmem:[#allocation4 + $0x10] sm:$0xff]
    %v1162 = vld [vmem:[#allocation4 + $0x18] sm:$0x3]
    %v1163 = vld [vmem:[#allocation4 + $0x20] sm:$0xff]
    %v1164 = vld [vmem:[#allocation4 + $0x28] sm:$0x3]
    %v1165 = vld [vmem:[#allocation4 + $0x30] sm:$0xff]
    %v1166 = vld [vmem:[#allocation4 + $0x38] sm:$0x3]
    %v1167 = vld [vmem:[#allocation4 + $0x40] sm:$0xff]
    %v1168 = vld [vmem:[#allocation4 + $0x48] sm:$0x3]
    %v1169 = vld [vmem:[#allocation4 + $0x50] sm:$0xff]
    %v1170 = vld [vmem:[#allocation4 + $0x58] sm:$0x3]
    %v1171 = vld [vmem:[#allocation4 + $0x60] sm:$0xff]
    %v1172 = vld [vmem:[#allocation4 + $0x68] sm:$0x3]
    %v1173 = vld [vmem:[#allocation4 + $0x70] sm:$0xff]
    %v1174 = vld [vmem:[#allocation4 + $0x78] sm:$0x3]
    %v1175 = vld [vmem:[#allocation4 + $0x80] sm:$0xff]
    %v1176 = vld [vmem:[#allocation4 + $0x88] sm:$0x3]
    %v1177 = vld [vmem:[#allocation4 + $0x90] sm:$0xff]
    %v1178 = vld [vmem:[#allocation4 + $0x98] sm:$0x3]
    %v1179 = vld [vmem:[#allocation4 + $0xa0] sm:$0xff]
    %v1180 = vld [vmem:[#allocation4 + $0xa8] sm:$0x3]
    %v1181 = vld [vmem:[#allocation4 + $0xb0] sm:$0xff]
    %v1182 = vld [vmem:[#allocation4 + $0xb8] sm:$0x3]
    %v1183 = vld [vmem:[#allocation4 + $0xc0] sm:$0xff]
    %v1184 = vld [vmem:[#allocation4 + $0xc8] sm:$0x3]
    %v1185 = vld [vmem:[#allocation4 + $0xd0] sm:$0xff]
    %v1186 = vld [vmem:[#allocation4 + $0xd8] sm:$0x3]
    %v1187 = vld [vmem:[#allocation4 + $0xe0] sm:$0xff]
    %v1188 = vld [vmem:[#allocation4 + $0xe8] sm:$0x3]
    %v1189 = vld [vmem:[#allocation4 + $0xf0] sm:$0xff]
    %v1190 = vld [vmem:[#allocation4 + $0xf8] sm:$0x3]
    %v1191 = vld [vmem:[#allocation4 + $0x100] sm:$0xff]
    %v1192 = vld [vmem:[#allocation4 + $0x108] sm:$0x3]
    %v1193 = vld [vmem:[#allocation4 + $0x110] sm:$0xff]
    %v1194 = vld [vmem:[#allocation4 + $0x118] sm:$0x3]
    %v1195 = vld [vmem:[#allocation4 + $0x120] sm:$0xff]
    %v1196 = vld [vmem:[#allocation4 + $0x128] sm:$0x3]
    %v1197 = vld [vmem:[#allocation4 + $0x130] sm:$0xff]
    %v1198 = vld [vmem:[#allocation4 + $0x138] sm:$0x3]
    %1199 = vst.msk [vmem:[#allocation5] sm:$0xff] %vm1100, %v1159
    %1200 = vst.msk [vmem:[#allocation5 + $0x10] sm:$0xff] %vm1100, %v1161
    %1201 = vst.msk [vmem:[#allocation5 + $0x20] sm:$0xff] %vm1100, %v1163
    %1202 = vst.msk [vmem:[#allocation5 + $0x30] sm:$0xff] %vm1100, %v1165
    %1203 = vst.msk [vmem:[#allocation5 + $0x40] sm:$0xff] %vm1100, %v1167
    %1204 = vst.msk [vmem:[#allocation5 + $0x50] sm:$0xff] %vm1100, %v1169
    %1205 = vst.msk [vmem:[#allocation5 + $0x60] sm:$0xff] %vm1100, %v1171
    %1206 = vst.msk [vmem:[#allocation5 + $0x70] sm:$0xff] %vm1100, %v1173
    %1207 = vst.msk [vmem:[#allocation5 + $0x80] sm:$0xff] %vm1100, %v1179
    %1208 = vst.msk [vmem:[#allocation5 + $0x90] sm:$0xff] %vm1100, %v1181
    %1209 = vst.msk [vmem:[#allocation5 + $0xa0] sm:$0xff] %vm1100, %v1183
    %1210 = vst.msk [vmem:[#allocation5 + $0xb0] sm:$0xff] %vm1100, %v1185
    %1211 = vst.msk [vmem:[#allocation5 + $0xc0] sm:$0xff] %vm1100, %v1187
    %1212 = vst.msk [vmem:[#allocation5 + $0xd0] sm:$0xff] %vm1100, %v1189
    %1213 = vst.msk [vmem:[#allocation5 + $0xe0] sm:$0xff] %vm1100, %v1191
    %1214 = vst.msk [vmem:[#allocation5 + $0xf0] sm:$0xff] %vm1100, %v1193
    %v1247 = vrot.slane %v1159, 1
    %v1248 = vrot.slane %v1160, 1
    %v1249 = vsel %vm208, %v1247, %v1248
    %v1250 = vrot.slane %v1161, 1
    %v1251 = vrot.slane %v1162, 1
    %v1252 = vsel %vm208, %v1250, %v1251
    %v1253 = vrot.slane %v1163, 1
    %v1254 = vrot.slane %v1164, 1
    %v1255 = vsel %vm208, %v1253, %v1254
    %v1256 = vrot.slane %v1165, 1
    %v1257 = vrot.slane %v1166, 1
    %v1258 = vsel %vm208, %v1256, %v1257
    %v1259 = vrot.slane %v1167, 1
    %v1260 = vrot.slane %v1168, 1
    %v1261 = vsel %vm208, %v1259, %v1260
    %v1262 = vrot.slane %v1169, 1
    %v1263 = vrot.slane %v1170, 1
    %v1264 = vsel %vm208, %v1262, %v1263
    %v1265 = vrot.slane %v1171, 1
    %v1266 = vrot.slane %v1172, 1
    %v1267 = vsel %vm208, %v1265, %v1266
    %v1268 = vrot.slane %v1173, 1
    %v1269 = vrot.slane %v1174, 1
    %v1270 = vsel %vm208, %v1268, %v1269
    %v1271 = vrot.slane %v1179, 1
    %v1272 = vrot.slane %v1180, 1
    %v1273 = vsel %vm208, %v1271, %v1272
    %v1274 = vrot.slane %v1181, 1
    %v1275 = vrot.slane %v1182, 1
    %v1276 = vsel %vm208, %v1274, %v1275
    %v1277 = vrot.slane %v1183, 1
    %v1278 = vrot.slane %v1184, 1
    %v1279 = vsel %vm208, %v1277, %v1278
    %v1280 = vrot.slane %v1185, 1
    %v1281 = vrot.slane %v1186, 1
    %v1282 = vsel %vm208, %v1280, %v1281
    %v1283 = vrot.slane %v1187, 1
    %v1284 = vrot.slane %v1188, 1
    %v1285 = vsel %vm208, %v1283, %v1284
    %v1286 = vrot.slane %v1189, 1
    %v1287 = vrot.slane %v1190, 1
    %v1288 = vsel %vm208, %v1286, %v1287
    %v1289 = vrot.slane %v1191, 1
    %v1290 = vrot.slane %v1192, 1
    %v1291 = vsel %vm208, %v1289, %v1290
    %v1292 = vrot.slane %v1193, 1
    %v1293 = vrot.slane %v1194, 1
    %v1294 = vsel %vm208, %v1292, %v1293
    %1295 = vrot.lane.b32.xlu0 %v1249, 16
    %v1296 = vpop.permute.xlu0 %1295
    %1297 = vrot.lane.b32.xlu0 %v1252, 16
    %v1298 = vpop.permute.xlu0 %1297
    %1299 = vrot.lane.b32.xlu0 %v1255, 16
    %v1300 = vpop.permute.xlu0 %1299
    %1301 = vrot.lane.b32.xlu0 %v1258, 16
    %v1302 = vpop.permute.xlu0 %1301
    %1303 = vrot.lane.b32.xlu0 %v1261, 16
    %v1304 = vpop.permute.xlu0 %1303
    %1305 = vrot.lane.b32.xlu0 %v1264, 16
    %v1306 = vpop.permute.xlu0 %1305
    %1307 = vrot.lane.b32.xlu0 %v1267, 16
    %v1308 = vpop.permute.xlu0 %1307
    %1309 = vrot.lane.b32.xlu0 %v1270, 16
    %v1310 = vpop.permute.xlu0 %1309
    %1311 = vrot.lane.b32.xlu0 %v1273, 16
    %v1312 = vpop.permute.xlu0 %1311
    %1313 = vrot.lane.b32.xlu0 %v1276, 16
    %v1314 = vpop.permute.xlu0 %1313
    %1315 = vrot.lane.b32.xlu0 %v1279, 16
    %v1316 = vpop.permute.xlu0 %1315
    %1317 = vrot.lane.b32.xlu0 %v1282, 16
    %v1318 = vpop.permute.xlu0 %1317
    %1319 = vrot.lane.b32.xlu0 %v1285, 16
    %v1320 = vpop.permute.xlu0 %1319
    %1321 = vrot.lane.b32.xlu0 %v1288, 16
    %v1322 = vpop.permute.xlu0 %1321
    %1323 = vrot.lane.b32.xlu0 %v1291, 16
    %v1324 = vpop.permute.xlu0 %1323
    %1325 = vrot.lane.b32.xlu0 %v1294, 16
    %v1326 = vpop.permute.xlu0 %1325
    %vm1343 = vcmask 261248
    %1344 = vst.msk [vmem:[#allocation5] sm:$0xff] %vm1343, %v1296
    %1345 = vst.msk [vmem:[#allocation5 + $0x10] sm:$0xff] %vm1343, %v1298
    %1346 = vst.msk [vmem:[#allocation5 + $0x20] sm:$0xff] %vm1343, %v1300
    %1347 = vst.msk [vmem:[#allocation5 + $0x30] sm:$0xff] %vm1343, %v1302
    %1348 = vst.msk [vmem:[#allocation5 + $0x40] sm:$0xff] %vm1343, %v1304
    %1349 = vst.msk [vmem:[#allocation5 + $0x50] sm:$0xff] %vm1343, %v1306
    %1350 = vst.msk [vmem:[#allocation5 + $0x60] sm:$0xff] %vm1343, %v1308
    %1351 = vst.msk [vmem:[#allocation5 + $0x70] sm:$0xff] %vm1343, %v1310
    %1352 = vst.msk [vmem:[#allocation5 + $0x80] sm:$0xff] %vm1343, %v1312
    %1353 = vst.msk [vmem:[#allocation5 + $0x90] sm:$0xff] %vm1343, %v1314
    %1354 = vst.msk [vmem:[#allocation5 + $0xa0] sm:$0xff] %vm1343, %v1316
    %1355 = vst.msk [vmem:[#allocation5 + $0xb0] sm:$0xff] %vm1343, %v1318
    %1356 = vst.msk [vmem:[#allocation5 + $0xc0] sm:$0xff] %vm1343, %v1320
    %1357 = vst.msk [vmem:[#allocation5 + $0xd0] sm:$0xff] %vm1343, %v1322
    %1358 = vst.msk [vmem:[#allocation5 + $0xe0] sm:$0xff] %vm1343, %v1324
    %1359 = vst.msk [vmem:[#allocation5 + $0xf0] sm:$0xff] %vm1343, %v1326
    %v1360 = vrot.slane %v1159, 2
    %v1361 = vrot.slane %v1160, 2
    %v1362 = vsel %vm322, %v1360, %v1361
    %v1363 = vrot.slane %v1161, 2
    %v1364 = vrot.slane %v1162, 2
    %v1365 = vsel %vm322, %v1363, %v1364
    %v1366 = vrot.slane %v1163, 2
    %v1367 = vrot.slane %v1164, 2
    %v1368 = vsel %vm322, %v1366, %v1367
    %v1369 = vrot.slane %v1165, 2
    %v1370 = vrot.slane %v1166, 2
    %v1371 = vsel %vm322, %v1369, %v1370
    %v1372 = vrot.slane %v1167, 2
    %v1373 = vrot.slane %v1168, 2
    %v1374 = vsel %vm322, %v1372, %v1373
    %v1375 = vrot.slane %v1169, 2
    %v1376 = vrot.slane %v1170, 2
    %v1377 = vsel %vm322, %v1375, %v1376
    %v1378 = vrot.slane %v1171, 2
    %v1379 = vrot.slane %v1172, 2
    %v1380 = vsel %vm322, %v1378, %v1379
    %v1381 = vrot.slane %v1173, 2
    %v1382 = vrot.slane %v1174, 2
    %v1383 = vsel %vm322, %v1381, %v1382
    %v1384 = vrot.slane %v1179, 2
    %v1385 = vrot.slane %v1180, 2
    %v1386 = vsel %vm322, %v1384, %v1385
    %v1387 = vrot.slane %v1181, 2
    %v1388 = vrot.slane %v1182, 2
    %v1389 = vsel %vm322, %v1387, %v1388
    %v1390 = vrot.slane %v1183, 2
    %v1391 = vrot.slane %v1184, 2
    %v1392 = vsel %vm322, %v1390, %v1391
    %v1393 = vrot.slane %v1185, 2
    %v1394 = vrot.slane %v1186, 2
    %v1395 = vsel %vm322, %v1393, %v1394
    %v1396 = vrot.slane %v1187, 2
    %v1397 = vrot.slane %v1188, 2
    %v1398 = vsel %vm322, %v1396, %v1397
    %v1399 = vrot.slane %v1189, 2
    %v1400 = vrot.slane %v1190, 2
    %v1401 = vsel %vm322, %v1399, %v1400
    %v1402 = vrot.slane %v1191, 2
    %v1403 = vrot.slane %v1192, 2
    %v1404 = vsel %vm322, %v1402, %v1403
    %v1405 = vrot.slane %v1193, 2
    %v1406 = vrot.slane %v1194, 2
    %v1407 = vsel %vm322, %v1405, %v1406
    %1408 = vrot.lane.b32.xlu0 %v1362, 32
    %v1409 = vpop.permute.xlu0 %1408
    %1410 = vrot.lane.b32.xlu0 %v1365, 32
    %v1411 = vpop.permute.xlu0 %1410
    %1412 = vrot.lane.b32.xlu0 %v1368, 32
    %v1413 = vpop.permute.xlu0 %1412
    %1414 = vrot.lane.b32.xlu0 %v1371, 32
    %v1415 = vpop.permute.xlu0 %1414
    %1416 = vrot.lane.b32.xlu0 %v1374, 32
    %v1417 = vpop.permute.xlu0 %1416
    %1418 = vrot.lane.b32.xlu0 %v1377, 32
    %v1419 = vpop.permute.xlu0 %1418
    %1420 = vrot.lane.b32.xlu0 %v1380, 32
    %v1421 = vpop.permute.xlu0 %1420
    %1422 = vrot.lane.b32.xlu0 %v1383, 32
    %v1423 = vpop.permute.xlu0 %1422
    %1424 = vrot.lane.b32.xlu0 %v1386, 32
    %v1425 = vpop.permute.xlu0 %1424
    %1426 = vrot.lane.b32.xlu0 %v1389, 32
    %v1427 = vpop.permute.xlu0 %1426
    %1428 = vrot.lane.b32.xlu0 %v1392, 32
    %v1429 = vpop.permute.xlu0 %1428
    %1430 = vrot.lane.b32.xlu0 %v1395, 32
    %v1431 = vpop.permute.xlu0 %1430
    %1432 = vrot.lane.b32.xlu0 %v1398, 32
    %v1433 = vpop.permute.xlu0 %1432
    %1434 = vrot.lane.b32.xlu0 %v1401, 32
    %v1435 = vpop.permute.xlu0 %1434
    %1436 = vrot.lane.b32.xlu0 %v1404, 32
    %v1437 = vpop.permute.xlu0 %1436
    %1438 = vrot.lane.b32.xlu0 %v1407, 32
    %v1439 = vpop.permute.xlu0 %1438
    %vm1456 = vcmask 392448
    %1457 = vst.msk [vmem:[#allocation5] sm:$0xff] %vm1456, %v1409
    %1458 = vst.msk [vmem:[#allocation5 + $0x10] sm:$0xff] %vm1456, %v1411
    %1459 = vst.msk [vmem:[#allocation5 + $0x20] sm:$0xff] %vm1456, %v1413
    %1460 = vst.msk [vmem:[#allocation5 + $0x30] sm:$0xff] %vm1456, %v1415
    %1461 = vst.msk [vmem:[#allocation5 + $0x40] sm:$0xff] %vm1456, %v1417
    %1462 = vst.msk [vmem:[#allocation5 + $0x50] sm:$0xff] %vm1456, %v1419
    %1463 = vst.msk [vmem:[#allocation5 + $0x60] sm:$0xff] %vm1456, %v1421
    %1464 = vst.msk [vmem:[#allocation5 + $0x70] sm:$0xff] %vm1456, %v1423
    %1465 = vst.msk [vmem:[#allocation5 + $0x80] sm:$0xff] %vm1456, %v1425
    %1466 = vst.msk [vmem:[#allocation5 + $0x90] sm:$0xff] %vm1456, %v1427
    %1467 = vst.msk [vmem:[#allocation5 + $0xa0] sm:$0xff] %vm1456, %v1429
    %1468 = vst.msk [vmem:[#allocation5 + $0xb0] sm:$0xff] %vm1456, %v1431
    %1469 = vst.msk [vmem:[#allocation5 + $0xc0] sm:$0xff] %vm1456, %v1433
    %1470 = vst.msk [vmem:[#allocation5 + $0xd0] sm:$0xff] %vm1456, %v1435
    %1471 = vst.msk [vmem:[#allocation5 + $0xe0] sm:$0xff] %vm1456, %v1437
    %1472 = vst.msk [vmem:[#allocation5 + $0xf0] sm:$0xff] %vm1456, %v1439
    %1475 = vrot.lane.b32.xlu0 %v1161, 48
    %v1476 = vpop.permute.xlu0 %1475
    %1477 = vrot.lane.b32.xlu0 %v1163, 48
    %v1478 = vpop.permute.xlu0 %1477
    %1479 = vrot.lane.b32.xlu0 %v1165, 48
    %v1480 = vpop.permute.xlu0 %1479
    %1481 = vrot.lane.b32.xlu0 %v1167, 48
    %v1482 = vpop.permute.xlu0 %1481
    %1483 = vrot.lane.b32.xlu0 %v1169, 48
    %v1484 = vpop.permute.xlu0 %1483
    %1485 = vrot.lane.b32.xlu0 %v1171, 48
    %v1486 = vpop.permute.xlu0 %1485
    %1487 = vrot.lane.b32.xlu0 %v1173, 48
    %v1488 = vpop.permute.xlu0 %1487
    %1489 = vrot.lane.b32.xlu0 %v1175, 48
    %v1490 = vpop.permute.xlu0 %1489
    %1491 = vrot.lane.b32.xlu0 %v1181, 48
    %v1492 = vpop.permute.xlu0 %1491
    %1493 = vrot.lane.b32.xlu0 %v1183, 48
    %v1494 = vpop.permute.xlu0 %1493
    %1495 = vrot.lane.b32.xlu0 %v1185, 48
    %v1496 = vpop.permute.xlu0 %1495
    %1497 = vrot.lane.b32.xlu0 %v1187, 48
    %v1498 = vpop.permute.xlu0 %1497
    %1499 = vrot.lane.b32.xlu0 %v1189, 48
    %v1500 = vpop.permute.xlu0 %1499
    %1501 = vrot.lane.b32.xlu0 %v1191, 48
    %v1502 = vpop.permute.xlu0 %1501
    %1503 = vrot.lane.b32.xlu0 %v1193, 48
    %v1504 = vpop.permute.xlu0 %1503
    %1505 = vrot.lane.b32.xlu0 %v1195, 48
    %v1506 = vpop.permute.xlu0 %1505
    %vm1523 = vcmask 523648
    %1524 = vst.msk [vmem:[#allocation5] sm:$0xff] %vm1523, %v1476
    %1525 = vst.msk [vmem:[#allocation5 + $0x10] sm:$0xff] %vm1523, %v1478
    %1526 = vst.msk [vmem:[#allocation5 + $0x20] sm:$0xff] %vm1523, %v1480
    %1527 = vst.msk [vmem:[#allocation5 + $0x30] sm:$0xff] %vm1523, %v1482
    %1528 = vst.msk [vmem:[#allocation5 + $0x40] sm:$0xff] %vm1523, %v1484
    %1529 = vst.msk [vmem:[#allocation5 + $0x50] sm:$0xff] %vm1523, %v1486
    %1530 = vst.msk [vmem:[#allocation5 + $0x60] sm:$0xff] %vm1523, %v1488
    %1531 = vst.msk [vmem:[#allocation5 + $0x70] sm:$0xff] %vm1523, %v1490
    %1532 = vst.msk [vmem:[#allocation5 + $0x80] sm:$0xff] %vm1523, %v1492
    %1533 = vst.msk [vmem:[#allocation5 + $0x90] sm:$0xff] %vm1523, %v1494
    %1534 = vst.msk [vmem:[#allocation5 + $0xa0] sm:$0xff] %vm1523, %v1496
    %1535 = vst.msk [vmem:[#allocation5 + $0xb0] sm:$0xff] %vm1523, %v1498
    %1536 = vst.msk [vmem:[#allocation5 + $0xc0] sm:$0xff] %vm1523, %v1500
    %1537 = vst.msk [vmem:[#allocation5 + $0xd0] sm:$0xff] %vm1523, %v1502
    %1538 = vst.msk [vmem:[#allocation5 + $0xe0] sm:$0xff] %vm1523, %v1504
    %1539 = vst.msk [vmem:[#allocation5 + $0xf0] sm:$0xff] %vm1523, %v1506
    %v1542 = vrot.slane %v1175, 1
    %v1543 = vrot.slane %v1176, 1
    %v1544 = vsel %vm208, %v1542, %v1543
    %v1545 = vrot.slane %v1195, 1
    %v1546 = vrot.slane %v1196, 1
    %v1547 = vsel %vm208, %v1545, %v1546
    %1548 = vrot.lane.b32.xlu0 %v1252, 64
    %v1549 = vpop.permute.xlu0 %1548
    %1550 = vrot.lane.b32.xlu0 %v1255, 64
    %v1551 = vpop.permute.xlu0 %1550
    %1552 = vrot.lane.b32.xlu0 %v1258, 64
    %v1553 = vpop.permute.xlu0 %1552
    %1554 = vrot.lane.b32.xlu0 %v1261, 64
    %v1555 = vpop.permute.xlu0 %1554
    %1556 = vrot.lane.b32.xlu0 %v1264, 64
    %v1557 = vpop.permute.xlu0 %1556
    %1558 = vrot.lane.b32.xlu0 %v1267, 64
    %v1559 = vpop.permute.xlu0 %1558
    %1560 = vrot.lane.b32.xlu0 %v1270, 64
    %v1561 = vpop.permute.xlu0 %1560
    %1562 = vrot.lane.b32.xlu0 %v1544, 64
    %v1563 = vpop.permute.xlu0 %1562
    %1564 = vrot.lane.b32.xlu0 %v1276, 64
    %v1565 = vpop.permute.xlu0 %1564
    %1566 = vrot.lane.b32.xlu0 %v1279, 64
    %v1567 = vpop.permute.xlu0 %1566
    %1568 = vrot.lane.b32.xlu0 %v1282, 64
    %v1569 = vpop.permute.xlu0 %1568
    %1570 = vrot.lane.b32.xlu0 %v1285, 64
    %v1571 = vpop.permute.xlu0 %1570
    %1572 = vrot.lane.b32.xlu0 %v1288, 64
    %v1573 = vpop.permute.xlu0 %1572
    %1574 = vrot.lane.b32.xlu0 %v1291, 64
    %v1575 = vpop.permute.xlu0 %1574
    %1576 = vrot.lane.b32.xlu0 %v1294, 64
    %v1577 = vpop.permute.xlu0 %1576
    %1578 = vrot.lane.b32.xlu0 %v1547, 64
    %v1579 = vpop.permute.xlu0 %1578
    %vm1596 = vcmask 654848
    %1597 = vst.msk [vmem:[#allocation5] sm:$0xff] %vm1596, %v1549
    %1598 = vst.msk [vmem:[#allocation5 + $0x10] sm:$0xff] %vm1596, %v1551
    %1599 = vst.msk [vmem:[#allocation5 + $0x20] sm:$0xff] %vm1596, %v1553
    %1600 = vst.msk [vmem:[#allocation5 + $0x30] sm:$0xff] %vm1596, %v1555
    %1601 = vst.msk [vmem:[#allocation5 + $0x40] sm:$0xff] %vm1596, %v1557
    %1602 = vst.msk [vmem:[#allocation5 + $0x50] sm:$0xff] %vm1596, %v1559
    %1603 = vst.msk [vmem:[#allocation5 + $0x60] sm:$0xff] %vm1596, %v1561
    %1604 = vst.msk [vmem:[#allocation5 + $0x70] sm:$0xff] %vm1596, %v1563
    %1605 = vst.msk [vmem:[#allocation5 + $0x80] sm:$0xff] %vm1596, %v1565
    %1606 = vst.msk [vmem:[#allocation5 + $0x90] sm:$0xff] %vm1596, %v1567
    %1607 = vst.msk [vmem:[#allocation5 + $0xa0] sm:$0xff] %vm1596, %v1569
    %1608 = vst.msk [vmem:[#allocation5 + $0xb0] sm:$0xff] %vm1596, %v1571
    %1609 = vst.msk [vmem:[#allocation5 + $0xc0] sm:$0xff] %vm1596, %v1573
    %1610 = vst.msk [vmem:[#allocation5 + $0xd0] sm:$0xff] %vm1596, %v1575
    %1611 = vst.msk [vmem:[#allocation5 + $0xe0] sm:$0xff] %vm1596, %v1577
    %1612 = vst.msk [vmem:[#allocation5 + $0xf0] sm:$0xff] %vm1596, %v1579
    %v1613 = vrot.slane %v1175, 2
    %v1614 = vrot.slane %v1176, 2
    %v1615 = vsel %vm322, %v1613, %v1614
    %v1616 = vrot.slane %v1195, 2
    %v1617 = vrot.slane %v1196, 2
    %v1618 = vsel %vm322, %v1616, %v1617
    %1619 = vrot.lane.b32.xlu0 %v1365, 80
    %v1620 = vpop.permute.xlu0 %1619
    %1621 = vrot.lane.b32.xlu0 %v1368, 80
    %v1622 = vpop.permute.xlu0 %1621
    %1623 = vrot.lane.b32.xlu0 %v1371, 80
    %v1624 = vpop.permute.xlu0 %1623
    %1625 = vrot.lane.b32.xlu0 %v1374, 80
    %v1626 = vpop.permute.xlu0 %1625
    %1627 = vrot.lane.b32.xlu0 %v1377, 80
    %v1628 = vpop.permute.xlu0 %1627
    %1629 = vrot.lane.b32.xlu0 %v1380, 80
    %v1630 = vpop.permute.xlu0 %1629
    %1631 = vrot.lane.b32.xlu0 %v1383, 80
    %v1632 = vpop.permute.xlu0 %1631
    %1633 = vrot.lane.b32.xlu0 %v1615, 80
    %v1634 = vpop.permute.xlu0 %1633
    %1635 = vrot.lane.b32.xlu0 %v1389, 80
    %v1636 = vpop.permute.xlu0 %1635
    %1637 = vrot.lane.b32.xlu0 %v1392, 80
    %v1638 = vpop.permute.xlu0 %1637
    %1639 = vrot.lane.b32.xlu0 %v1395, 80
    %v1640 = vpop.permute.xlu0 %1639
    %1641 = vrot.lane.b32.xlu0 %v1398, 80
    %v1642 = vpop.permute.xlu0 %1641
    %1643 = vrot.lane.b32.xlu0 %v1401, 80
    %v1644 = vpop.permute.xlu0 %1643
    %1645 = vrot.lane.b32.xlu0 %v1404, 80
    %v1646 = vpop.permute.xlu0 %1645
    %1647 = vrot.lane.b32.xlu0 %v1407, 80
    %v1648 = vpop.permute.xlu0 %1647
    %1649 = vrot.lane.b32.xlu0 %v1618, 80
    %v1650 = vpop.permute.xlu0 %1649
    %vm1667 = vcmask 786048
    %1668 = vst.msk [vmem:[#allocation5] sm:$0xff] %vm1667, %v1620
    %1669 = vst.msk [vmem:[#allocation5 + $0x10] sm:$0xff] %vm1667, %v1622
    %1670 = vst.msk [vmem:[#allocation5 + $0x20] sm:$0xff] %vm1667, %v1624
    %1671 = vst.msk [vmem:[#allocation5 + $0x30] sm:$0xff] %vm1667, %v1626
    %1672 = vst.msk [vmem:[#allocation5 + $0x40] sm:$0xff] %vm1667, %v1628
    %1673 = vst.msk [vmem:[#allocation5 + $0x50] sm:$0xff] %vm1667, %v1630
    %1674 = vst.msk [vmem:[#allocation5 + $0x60] sm:$0xff] %vm1667, %v1632
    %1675 = vst.msk [vmem:[#allocation5 + $0x70] sm:$0xff] %vm1667, %v1634
    %1676 = vst.msk [vmem:[#allocation5 + $0x80] sm:$0xff] %vm1667, %v1636
    %1677 = vst.msk [vmem:[#allocation5 + $0x90] sm:$0xff] %vm1667, %v1638
    %1678 = vst.msk [vmem:[#allocation5 + $0xa0] sm:$0xff] %vm1667, %v1640
    %1679 = vst.msk [vmem:[#allocation5 + $0xb0] sm:$0xff] %vm1667, %v1642
    %1680 = vst.msk [vmem:[#allocation5 + $0xc0] sm:$0xff] %vm1667, %v1644
    %1681 = vst.msk [vmem:[#allocation5 + $0xd0] sm:$0xff] %vm1667, %v1646
    %1682 = vst.msk [vmem:[#allocation5 + $0xe0] sm:$0xff] %vm1667, %v1648
    %1683 = vst.msk [vmem:[#allocation5 + $0xf0] sm:$0xff] %vm1667, %v1650
    %1686 = vrot.lane.b32.xlu0 %v1163, 96
    %v1687 = vpop.permute.xlu0 %1686
    %1688 = vrot.lane.b32.xlu0 %v1165, 96
    %v1689 = vpop.permute.xlu0 %1688
    %1690 = vrot.lane.b32.xlu0 %v1167, 96
    %v1691 = vpop.permute.xlu0 %1690
    %1692 = vrot.lane.b32.xlu0 %v1169, 96
    %v1693 = vpop.permute.xlu0 %1692
    %1694 = vrot.lane.b32.xlu0 %v1171, 96
    %v1695 = vpop.permute.xlu0 %1694
    %1696 = vrot.lane.b32.xlu0 %v1173, 96
    %v1697 = vpop.permute.xlu0 %1696
    %1698 = vrot.lane.b32.xlu0 %v1175, 96
    %v1699 = vpop.permute.xlu0 %1698
    %1700 = vrot.lane.b32.xlu0 %v1177, 96
    %v1701 = vpop.permute.xlu0 %1700
    %1702 = vrot.lane.b32.xlu0 %v1183, 96
    %v1703 = vpop.permute.xlu0 %1702
    %1704 = vrot.lane.b32.xlu0 %v1185, 96
    %v1705 = vpop.permute.xlu0 %1704
    %1706 = vrot.lane.b32.xlu0 %v1187, 96
    %v1707 = vpop.permute.xlu0 %1706
    %1708 = vrot.lane.b32.xlu0 %v1189, 96
    %v1709 = vpop.permute.xlu0 %1708
    %1710 = vrot.lane.b32.xlu0 %v1191, 96
    %v1711 = vpop.permute.xlu0 %1710
    %1712 = vrot.lane.b32.xlu0 %v1193, 96
    %v1713 = vpop.permute.xlu0 %1712
    %1714 = vrot.lane.b32.xlu0 %v1195, 96
    %v1715 = vpop.permute.xlu0 %1714
    %1716 = vrot.lane.b32.xlu0 %v1197, 96
    %v1717 = vpop.permute.xlu0 %1716
    %vm1734 = vcmask 917248
    %1735 = vst.msk [vmem:[#allocation5] sm:$0xff] %vm1734, %v1687
    %1736 = vst.msk [vmem:[#allocation5 + $0x10] sm:$0xff] %vm1734, %v1689
    %1737 = vst.msk [vmem:[#allocation5 + $0x20] sm:$0xff] %vm1734, %v1691
    %1738 = vst.msk [vmem:[#allocation5 + $0x30] sm:$0xff] %vm1734, %v1693
    %1739 = vst.msk [vmem:[#allocation5 + $0x40] sm:$0xff] %vm1734, %v1695
    %1740 = vst.msk [vmem:[#allocation5 + $0x50] sm:$0xff] %vm1734, %v1697
    %1741 = vst.msk [vmem:[#allocation5 + $0x60] sm:$0xff] %vm1734, %v1699
    %1742 = vst.msk [vmem:[#allocation5 + $0x70] sm:$0xff] %vm1734, %v1701
    %1743 = vst.msk [vmem:[#allocation5 + $0x80] sm:$0xff] %vm1734, %v1703
    %1744 = vst.msk [vmem:[#allocation5 + $0x90] sm:$0xff] %vm1734, %v1705
    %1745 = vst.msk [vmem:[#allocation5 + $0xa0] sm:$0xff] %vm1734, %v1707
    %1746 = vst.msk [vmem:[#allocation5 + $0xb0] sm:$0xff] %vm1734, %v1709
    %1747 = vst.msk [vmem:[#allocation5 + $0xc0] sm:$0xff] %vm1734, %v1711
    %1748 = vst.msk [vmem:[#allocation5 + $0xd0] sm:$0xff] %vm1734, %v1713
    %1749 = vst.msk [vmem:[#allocation5 + $0xe0] sm:$0xff] %vm1734, %v1715
    %1750 = vst.msk [vmem:[#allocation5 + $0xf0] sm:$0xff] %vm1734, %v1717
    %v1753 = vrot.slane %v1177, 1
    %v1754 = vrot.slane %v1178, 1
    %v1755 = vsel %vm208, %v1753, %v1754
    %v1756 = vrot.slane %v1197, 1
    %v1757 = vrot.slane %v1198, 1
    %v1758 = vsel %vm208, %v1756, %v1757
    %1759 = vrot.lane.b32.xlu0 %v1255, 112
    %v1760 = vpop.permute.xlu0 %1759
    %1761 = vrot.lane.b32.xlu0 %v1258, 112
    %v1762 = vpop.permute.xlu0 %1761
    %1763 = vrot.lane.b32.xlu0 %v1261, 112
    %v1764 = vpop.permute.xlu0 %1763
    %1765 = vrot.lane.b32.xlu0 %v1264, 112
    %v1766 = vpop.permute.xlu0 %1765
    %1767 = vrot.lane.b32.xlu0 %v1267, 112
    %v1768 = vpop.permute.xlu0 %1767
    %1769 = vrot.lane.b32.xlu0 %v1270, 112
    %v1770 = vpop.permute.xlu0 %1769
    %1771 = vrot.lane.b32.xlu0 %v1544, 112
    %v1772 = vpop.permute.xlu0 %1771
    %1773 = vrot.lane.b32.xlu0 %v1755, 112
    %v1774 = vpop.permute.xlu0 %1773
    %1775 = vrot.lane.b32.xlu0 %v1279, 112
    %v1776 = vpop.permute.xlu0 %1775
    %1777 = vrot.lane.b32.xlu0 %v1282, 112
    %v1778 = vpop.permute.xlu0 %1777
    %1779 = vrot.lane.b32.xlu0 %v1285, 112
    %v1780 = vpop.permute.xlu0 %1779
    %1781 = vrot.lane.b32.xlu0 %v1288, 112
    %v1782 = vpop.permute.xlu0 %1781
    %1783 = vrot.lane.b32.xlu0 %v1291, 112
    %v1784 = vpop.permute.xlu0 %1783
    %1785 = vrot.lane.b32.xlu0 %v1294, 112
    %v1786 = vpop.permute.xlu0 %1785
    %1787 = vrot.lane.b32.xlu0 %v1547, 112
    %v1788 = vpop.permute.xlu0 %1787
    %1789 = vrot.lane.b32.xlu0 %v1758, 112
    %v1790 = vpop.permute.xlu0 %1789
    %vm1807 = vcmask 1048448
    %1808 = vst.msk [vmem:[#allocation5] sm:$0xff] %vm1807, %v1760
    %1809 = vst.msk [vmem:[#allocation5 + $0x10] sm:$0xff] %vm1807, %v1762
    %1810 = vst.msk [vmem:[#allocation5 + $0x20] sm:$0xff] %vm1807, %v1764
    %1811 = vst.msk [vmem:[#allocation5 + $0x30] sm:$0xff] %vm1807, %v1766
    %1812 = vst.msk [vmem:[#allocation5 + $0x40] sm:$0xff] %vm1807, %v1768
    %1813 = vst.msk [vmem:[#allocation5 + $0x50] sm:$0xff] %vm1807, %v1770
    %1814 = vst.msk [vmem:[#allocation5 + $0x60] sm:$0xff] %vm1807, %v1772
    %1815 = vst.msk [vmem:[#allocation5 + $0x70] sm:$0xff] %vm1807, %v1774
    %1816 = vst.msk [vmem:[#allocation5 + $0x80] sm:$0xff] %vm1807, %v1776
    %1817 = vst.msk [vmem:[#allocation5 + $0x90] sm:$0xff] %vm1807, %v1778
    %1818 = vst.msk [vmem:[#allocation5 + $0xa0] sm:$0xff] %vm1807, %v1780
    %1819 = vst.msk [vmem:[#allocation5 + $0xb0] sm:$0xff] %vm1807, %v1782
    %1820 = vst.msk [vmem:[#allocation5 + $0xc0] sm:$0xff] %vm1807, %v1784
    %1821 = vst.msk [vmem:[#allocation5 + $0xd0] sm:$0xff] %vm1807, %v1786
    %1822 = vst.msk [vmem:[#allocation5 + $0xe0] sm:$0xff] %vm1807, %v1788
    %1823 = vst.msk [vmem:[#allocation5 + $0xf0] sm:$0xff] %vm1807, %v1790
    %v1824 = vrot.slane %v1177, 2
    %v1825 = vrot.slane %v1178, 2
    %v1826 = vsel %vm322, %v1824, %v1825
    %v1827 = vrot.slane %v1197, 2
    %v1828 = vrot.slane %v1198, 2
    %v1829 = vsel %vm322, %v1827, %v1828
    %1846 = vst.msk [vmem:[#allocation5 + $0x8] sm:$0xff] %vm1100, %v1368
    %1847 = vst.msk [vmem:[#allocation5 + $0x18] sm:$0xff] %vm1100, %v1371
    %1848 = vst.msk [vmem:[#allocation5 + $0x28] sm:$0xff] %vm1100, %v1374
    %1849 = vst.msk [vmem:[#allocation5 + $0x38] sm:$0xff] %vm1100, %v1377
    %1850 = vst.msk [vmem:[#allocation5 + $0x48] sm:$0xff] %vm1100, %v1380
    %1851 = vst.msk [vmem:[#allocation5 + $0x58] sm:$0xff] %vm1100, %v1383
    %1852 = vst.msk [vmem:[#allocation5 + $0x68] sm:$0xff] %vm1100, %v1615
    %1853 = vst.msk [vmem:[#allocation5 + $0x78] sm:$0xff] %vm1100, %v1826
    %1854 = vst.msk [vmem:[#allocation5 + $0x88] sm:$0xff] %vm1100, %v1392
    %1855 = vst.msk [vmem:[#allocation5 + $0x98] sm:$0xff] %vm1100, %v1395
    %1856 = vst.msk [vmem:[#allocation5 + $0xa8] sm:$0xff] %vm1100, %v1398
    %1857 = vst.msk [vmem:[#allocation5 + $0xb8] sm:$0xff] %vm1100, %v1401
    %1858 = vst.msk [vmem:[#allocation5 + $0xc8] sm:$0xff] %vm1100, %v1404
    %1859 = vst.msk [vmem:[#allocation5 + $0xd8] sm:$0xff] %vm1100, %v1407
    %1860 = vst.msk [vmem:[#allocation5 + $0xe8] sm:$0xff] %vm1100, %v1618
    %1861 = vst.msk [vmem:[#allocation5 + $0xf8] sm:$0xff] %vm1100, %v1829
    %v1862 = vld [vmem:[#allocation5] sm:$0xff]
    %v1863 = vld [vmem:[#allocation5 + $0x8] sm:$0xff]
    %v1864 = vld [vmem:[#allocation5 + $0x10] sm:$0xff]
    %v1865 = vld [vmem:[#allocation5 + $0x18] sm:$0xff]
    %v1866 = vld [vmem:[#allocation5 + $0x20] sm:$0xff]
    %v1867 = vld [vmem:[#allocation5 + $0x28] sm:$0xff]
    %v1868 = vld [vmem:[#allocation5 + $0x30] sm:$0xff]
    %v1869 = vld [vmem:[#allocation5 + $0x38] sm:$0xff]
    %v1870 = vld [vmem:[#allocation5 + $0x40] sm:$0xff]
    %v1871 = vld [vmem:[#allocation5 + $0x48] sm:$0xff]
    %v1872 = vld [vmem:[#allocation5 + $0x50] sm:$0xff]
    %v1873 = vld [vmem:[#allocation5 + $0x58] sm:$0xff]
    %v1874 = vld [vmem:[#allocation5 + $0x60] sm:$0xff]
    %v1875 = vld [vmem:[#allocation5 + $0x68] sm:$0xff]
    %v1876 = vld [vmem:[#allocation5 + $0x70] sm:$0xff]
    %v1877 = vld [vmem:[#allocation5 + $0x78] sm:$0xff]
    %v1878 = vld [vmem:[#allocation5 + $0x80] sm:$0xff]
    %v1879 = vld [vmem:[#allocation5 + $0x88] sm:$0xff]
    %v1880 = vld [vmem:[#allocation5 + $0x90] sm:$0xff]
    %v1881 = vld [vmem:[#allocation5 + $0x98] sm:$0xff]
    %v1882 = vld [vmem:[#allocation5 + $0xa0] sm:$0xff]
    %v1883 = vld [vmem:[#allocation5 + $0xa8] sm:$0xff]
    %v1884 = vld [vmem:[#allocation5 + $0xb0] sm:$0xff]
    %v1885 = vld [vmem:[#allocation5 + $0xb8] sm:$0xff]
    %v1886 = vld [vmem:[#allocation5 + $0xc0] sm:$0xff]
    %v1887 = vld [vmem:[#allocation5 + $0xc8] sm:$0xff]
    %v1888 = vld [vmem:[#allocation5 + $0xd0] sm:$0xff]
    %v1889 = vld [vmem:[#allocation5 + $0xd8] sm:$0xff]
    %v1890 = vld [vmem:[#allocation5 + $0xe0] sm:$0xff]
    %v1891 = vld [vmem:[#allocation5 + $0xe8] sm:$0xff]
    %v1892 = vld [vmem:[#allocation5 + $0xf0] sm:$0xff]
    %v1893 = vld [vmem:[#allocation5 + $0xf8] sm:$0xff]
    %v1894 = vld [vmem:[%s4] sm:$0xff]
    %v1895 = vld [vmem:[%s4 + $0x8] sm:$0xff]
    %v1896 = vld [vmem:[%s4 + $0x10] sm:$0xff]
    %v1897 = vld [vmem:[%s4 + $0x18] sm:$0xff]
    %v1898 = vld [vmem:[%s4 + $0x20] sm:$0xff]
    %v1899 = vld [vmem:[%s4 + $0x28] sm:$0xff]
    %v1900 = vld [vmem:[%s4 + $0x30] sm:$0xff]
    %v1901 = vld [vmem:[%s4 + $0x38] sm:$0xff]
    %v1902 = vld [vmem:[%s4 + $0x40] sm:$0xff]
    %v1903 = vld [vmem:[%s4 + $0x48] sm:$0xff]
    %v1904 = vld [vmem:[%s4 + $0x50] sm:$0xff]
    %v1905 = vld [vmem:[%s4 + $0x58] sm:$0xff]
    %v1906 = vld [vmem:[%s4 + $0x60] sm:$0xff]
    %v1907 = vld [vmem:[%s4 + $0x68] sm:$0xff]
    %v1908 = vld [vmem:[%s4 + $0x70] sm:$0xff]
    %v1909 = vld [vmem:[%s4 + $0x78] sm:$0xff]
    %v1910 = vld [vmem:[%s4 + $0x80] sm:$0xff]
    %v1911 = vld [vmem:[%s4 + $0x88] sm:$0xff]
    %v1912 = vld [vmem:[%s5] sm:$0x1]
    %v1914 = vlaneseq
    %v1915 = vshrl.u32 %v1914, 7
    %v1916 = vsub.s32 0, %v1915
    %v1917 = vrot.slane %v1912, %v1916
    %v1920 = vsel %vm1100, %v1863, 0
    %v1923 = vsel %vm1100, %v1865, 0
    %v1926 = vsel %vm1100, %v1867, 0
    %v1929 = vsel %vm1100, %v1869, 0
    %v1932 = vsel %vm1100, %v1871, 0
    %v1935 = vsel %vm1100, %v1873, 0
    %v1938 = vsel %vm1100, %v1875, 0
    %v1941 = vsel %vm1100, %v1877, 0
    %v1944 = vsel %vm1100, %v1879, 0
    %v1947 = vsel %vm1100, %v1881, 0
    %v1950 = vsel %vm1100, %v1883, 0
    %v1953 = vsel %vm1100, %v1885, 0
    %v1956 = vsel %vm1100, %v1887, 0
    %v1959 = vsel %vm1100, %v1889, 0
    %v1962 = vsel %vm1100, %v1891, 0
    %v1965 = vsel %vm1100, %v1893, 0
    %1967 = vmatprep.subr.mxu0 0.0
    %1968 = vmatpush1.msra.mxu0 %v1894
    %1969 = vmatprep.subr.mxu0 0.0
    %1970 = vmatpush1.msra.mxu0 %v1895
    %1971 = vmatprep.subr.mxu0 0.0
    %1972 = vmatpush1.msra.mxu0 %v1896
    %1973 = vmatprep.subr.mxu0 0.0
    %1974 = vmatpush1.msra.mxu0 %v1897
    %1975 = vmatprep.subr.mxu0 0.0
    %1976 = vmatpush1.msra.mxu0 %v1898
    %1977 = vmatprep.subr.mxu0 0.0
    %1978 = vmatpush1.msra.mxu0 %v1899
    %1979 = vmatprep.subr.mxu0 0.0
    %1980 = vmatpush1.msra.mxu0 %v1900
    %1981 = vmatprep.subr.mxu0 0.0
    %1982 = vmatpush1.msra.mxu0 %v1901
    %1983 = vmatprep.subr.mxu0 0.0
    %1984 = vmatpush1.msra.mxu0 %v1902
    %1985 = vmatprep.subr.mxu0 0.0
    %1986 = vmatpush1.msra.mxu0 %v1903
    %1987 = vmatprep.subr.mxu0 0.0
    %1988 = vmatpush1.msra.mxu0 %v1904
    %1989 = vmatprep.subr.mxu0 0.0
    %1990 = vmatpush1.msra.mxu0 %v1905
    %1991 = vmatprep.subr.mxu0 0.0
    %1992 = vmatpush1.msra.mxu0 %v1906
    %1993 = vmatprep.subr.mxu0 0.0
    %1994 = vmatpush1.msra.mxu0 %v1907
    %1995 = vmatprep.subr.mxu0 0.0
    %1996 = vmatpush1.msra.mxu0 %v1908
    %1997 = vmatprep.subr.mxu0 0.0
    %1998 = vmatpush1.msra.mxu0 %v1909
    %1999 = vmatprep.subr.mxu0 0.0
    %2000 = vmatpush1.msra.mxu0 %v1910
    %2001 = vmatprep.subr.mxu0 0.0
    %2002 = vmatpush1.msra.mxu0 %v1911
    %2003 = vmatprep.subr.mxu0 0.0
    %2004 = vmatpush1.msra.mxu0 0.0
    %2005 = vmatprep.subr.mxu0 0.0
    %2006 = vmatpush1.msra.mxu0 0.0
    %2007 = vmatprep.subr.mxu0 0.0
    %2008 = vmatpush1.msra.mxu0 0.0
    %2009 = vmatprep.subr.mxu0 0.0
    %2010 = vmatpush1.msra.mxu0 0.0
    %2011 = vmatprep.subr.mxu0 0.0
    %2012 = vmatpush1.msra.mxu0 0.0
    %2013 = vmatprep.subr.mxu0 0.0
    %2014 = vmatpush1.msra.mxu0 0.0
    %2015 = vmatprep.subr.mxu0 0.0
    %2016 = vmatpush1.msra.mxu0 0.0
    %2017 = vmatprep.subr.mxu0 0.0
    %2018 = vmatpush1.msra.mxu0 0.0
    %2019 = vmatprep.subr.mxu0 0.0
    %2020 = vmatpush1.msra.mxu0 0.0
    %2021 = vmatprep.subr.mxu0 0.0
    %2022 = vmatpush1.msra.mxu0 0.0
    %2023 = vmatprep.subr.mxu0 0.0
    %2024 = vmatpush1.msra.mxu0 0.0
    %2025 = vmatprep.subr.mxu0 0.0
    %2026 = vmatpush1.msra.mxu0 0.0
    %2027 = vmatprep.subr.mxu0 0.0
    %2028 = vmatpush1.msra.mxu0 0.0
    %2029 = vmatprep.subr.mxu0 0.0
    %2030 = vmatpush1.msra.mxu0 0.0
    %2031 = vmatprep.mubr.f32.mxu0 %v1920
    %2032 = vmatmul.mubr.f32.gmra.mrb[0].mxu0 %v1862
    %v2033 = vpop.f32.mrb[0].mxu0
    %v2034 = vadd.f32 %v1917, %v2033
    %v2035 = vpop.f32.mrb[0].mxu0
    %2036 = vmatprep.mubr.f32.mxu0 %v1923
    %2037 = vmatmul.mubr.f32.gmra.mrb[0].mxu0 %v1864
    %v2038 = vpop.f32.mrb[0].mxu0
    %v2039 = vadd.f32 %v1917, %v2038
    %v2040 = vpop.f32.mrb[0].mxu0
    %2041 = vmatprep.mubr.f32.mxu0 %v1926
    %2042 = vmatmul.mubr.f32.gmra.mrb[0].mxu0 %v1866
    %v2043 = vpop.f32.mrb[0].mxu0
    %v2044 = vadd.f32 %v1917, %v2043
    %v2045 = vpop.f32.mrb[0].mxu0
    %2046 = vmatprep.mubr.f32.mxu0 %v1929
    %2047 = vmatmul.mubr.f32.gmra.mrb[0].mxu0 %v1868
    %v2048 = vpop.f32.mrb[0].mxu0
    %v2049 = vadd.f32 %v1917, %v2048
    %v2050 = vpop.f32.mrb[0].mxu0
    %2051 = vmatprep.mubr.f32.mxu0 %v1932
    %2052 = vmatmul.mubr.f32.gmra.mrb[0].mxu0 %v1870
    %v2053 = vpop.f32.mrb[0].mxu0
    %v2054 = vadd.f32 %v1917, %v2053
    %v2055 = vpop.f32.mrb[0].mxu0
    %2056 = vmatprep.mubr.f32.mxu0 %v1935
    %2057 = vmatmul.mubr.f32.gmra.mrb[0].mxu0 %v1872
    %v2058 = vpop.f32.mrb[0].mxu0
    %v2059 = vadd.f32 %v1917, %v2058
    %v2060 = vpop.f32.mrb[0].mxu0
    %2061 = vmatprep.mubr.f32.mxu0 %v1938
    %2062 = vmatmul.mubr.f32.gmra.mrb[0].mxu0 %v1874
    %v2063 = vpop.f32.mrb[0].mxu0
    %v2064 = vadd.f32 %v1917, %v2063
    %v2065 = vpop.f32.mrb[0].mxu0
    %2066 = vmatprep.mubr.f32.mxu0 %v1941
    %2067 = vmatmul.mubr.f32.gmra.mrb[0].mxu0 %v1876
    %v2068 = vpop.f32.mrb[0].mxu0
    %v2069 = vadd.f32 %v1917, %v2068
    %v2070 = vpop.f32.mrb[0].mxu0
    %2071 = vmatprep.mubr.f32.mxu0 %v1944
    %2072 = vmatmul.mubr.f32.gmra.mrb[0].mxu0 %v1878
    %v2073 = vpop.f32.mrb[0].mxu0
    %v2074 = vadd.f32 %v1917, %v2073
    %v2075 = vpop.f32.mrb[0].mxu0
    %2076 = vmatprep.mubr.f32.mxu0 %v1947
    %2077 = vmatmul.mubr.f32.gmra.mrb[0].mxu0 %v1880
    %v2078 = vpop.f32.mrb[0].mxu0
    %v2079 = vadd.f32 %v1917, %v2078
    %v2080 = vpop.f32.mrb[0].mxu0
    %2081 = vmatprep.mubr.f32.mxu0 %v1950
    %2082 = vmatmul.mubr.f32.gmra.mrb[0].mxu0 %v1882
    %v2083 = vpop.f32.mrb[0].mxu0
    %v2084 = vadd.f32 %v1917, %v2083
    %v2085 = vpop.f32.mrb[0].mxu0
    %2086 = vmatprep.mubr.f32.mxu0 %v1953
    %2087 = vmatmul.mubr.f32.gmra.mrb[0].mxu0 %v1884
    %v2088 = vpop.f32.mrb[0].mxu0
    %v2089 = vadd.f32 %v1917, %v2088
    %v2090 = vpop.f32.mrb[0].mxu0
    %2091 = vmatprep.mubr.f32.mxu0 %v1956
    %2092 = vmatmul.mubr.f32.gmra.mrb[0].mxu0 %v1886
    %v2093 = vpop.f32.mrb[0].mxu0
    %v2094 = vadd.f32 %v1917, %v2093
    %v2095 = vpop.f32.mrb[0].mxu0
    %2096 = vmatprep.mubr.f32.mxu0 %v1959
    %2097 = vmatmul.mubr.f32.gmra.mrb[0].mxu0 %v1888
    %v2098 = vpop.f32.mrb[0].mxu0
    %v2099 = vadd.f32 %v1917, %v2098
    %v2100 = vpop.f32.mrb[0].mxu0
    %2101 = vmatprep.mubr.f32.mxu0 %v1962
    %2102 = vmatmul.mubr.f32.gmra.mrb[0].mxu0 %v1890
    %v2103 = vpop.f32.mrb[0].mxu0
    %v2104 = vadd.f32 %v1917, %v2103
    %v2105 = vpop.f32.mrb[0].mxu0
    %2106 = vmatprep.mubr.f32.mxu0 %v1965
    %2107 = vmatmul.mubr.f32.gmra.mrb[0].mxu0 %v1892
    %v2108 = vpop.f32.mrb[0].mxu0
    %v2109 = vadd.f32 %v1917, %v2108
    %v2110 = vpop.f32.mrb[0].mxu0
    %2111 = vdwg.mxu0
    %v2112 = vmax.f32 %v2034, 0.0
    %v2113 = vmax.f32 %v2039, 0.0
    %v2114 = vmax.f32 %v2044, 0.0
    %v2115 = vmax.f32 %v2049, 0.0
    %v2116 = vmax.f32 %v2054, 0.0
    %v2117 = vmax.f32 %v2059, 0.0
    %v2118 = vmax.f32 %v2064, 0.0
    %v2119 = vmax.f32 %v2069, 0.0
    %v2120 = vmax.f32 %v2074, 0.0
    %v2121 = vmax.f32 %v2079, 0.0
    %v2122 = vmax.f32 %v2084, 0.0
    %v2123 = vmax.f32 %v2089, 0.0
    %v2124 = vmax.f32 %v2094, 0.0
    %v2125 = vmax.f32 %v2099, 0.0
    %v2126 = vmax.f32 %v2104, 0.0
    %v2127 = vmax.f32 %v2109, 0.0
    %2128 = vxpose.xlu0.b32.start [1/16] %v2112, 128
    %2129 = vxpose.xlu0.b32.cont [2/16] %v2113, 128
    %2130 = vxpose.xlu0.b32.cont [3/16] %v2114, 128
    %2131 = vxpose.xlu0.b32.cont [4/16] %v2115, 128
    %2132 = vxpose.xlu0.b32.cont [5/16] %v2116, 128
    %2133 = vxpose.xlu0.b32.cont [6/16] %v2117, 128
    %2134 = vxpose.xlu0.b32.cont [7/16] %v2118, 128
    %2135 = vxpose.xlu0.b32.cont [8/16] %v2119, 128
    %2136 = vxpose.xlu0.b32.cont [9/16] %v2120, 128
    %2137 = vxpose.xlu0.b32.cont [10/16] %v2121, 128
    %2138 = vxpose.xlu0.b32.cont [11/16] %v2122, 128
    %2139 = vxpose.xlu0.b32.cont [12/16] %v2123, 128
    %2140 = vxpose.xlu0.b32.cont [13/16] %v2124, 128
    %2141 = vxpose.xlu0.b32.cont [14/16] %v2125, 128
    %2142 = vxpose.xlu0.b32.cont [15/16] %v2126, 128
    %2143 = vxpose.xlu0.b32.end [16/16] %v2127, 128
    %v2144 = vpop.trf.xlu0
    %v2145 = vpop.trf.xlu0
    %v2146 = vpop.trf.xlu0
    %v2147 = vpop.trf.xlu0
    %v2148 = vpop.trf.xlu0
    %v2149 = vpop.trf.xlu0
    %v2150 = vpop.trf.xlu0
    %v2151 = vpop.trf.xlu0
    %v2152 = vpop.trf.xlu0
    %v2153 = vpop.trf.xlu0
    %v2154 = vpop.trf.xlu0
    %v2155 = vpop.trf.xlu0
    %v2156 = vpop.trf.xlu0
    %v2157 = vpop.trf.xlu0
    %v2158 = vpop.trf.xlu0
    %v2159 = vpop.trf.xlu0
    %v2160 = vld [vmem:[%s6] sm:$0xff]
    %v2161 = vld [vmem:[%s6 + $0x8] sm:$0xff]
    %v2162 = vld [vmem:[%s6 + $0x10] sm:$0xff]
    %v2163 = vld [vmem:[%s6 + $0x18] sm:$0xff]
    %v2164 = vld [vmem:[%s6 + $0x20] sm:$0xff]
    %v2165 = vld [vmem:[%s6 + $0x28] sm:$0xff]
    %v2166 = vld [vmem:[%s6 + $0x30] sm:$0xff]
    %v2167 = vld [vmem:[%s6 + $0x38] sm:$0xff]
    %v2168 = vld [vmem:[%s6 + $0x40] sm:$0xff]
    %v2169 = vld [vmem:[%s6 + $0x48] sm:$0xff]
    %v2170 = vld [vmem:[%s6 + $0x50] sm:$0xff]
    %v2171 = vld [vmem:[%s6 + $0x58] sm:$0xff]
    %v2172 = vld [vmem:[%s6 + $0x60] sm:$0xff]
    %v2173 = vld [vmem:[%s6 + $0x68] sm:$0xff]
    %v2174 = vld [vmem:[%s6 + $0x70] sm:$0xff]
    %v2175 = vld [vmem:[%s6 + $0x78] sm:$0xff]
    %v2176 = vld [vmem:[%s6 + $0x80] sm:$0xff]
    %v2177 = vld [vmem:[%s6 + $0x88] sm:$0xff]
    %v2178 = vld [vmem:[%s6 + $0x90] sm:$0xff]
    %v2179 = vld [vmem:[%s6 + $0x98] sm:$0xff]
    %v2180 = vld [vmem:[%s6 + $0xa0] sm:$0xff]
    %v2181 = vld [vmem:[%s6 + $0xa8] sm:$0xff]
    %v2182 = vld [vmem:[%s6 + $0xb0] sm:$0xff]
    %v2183 = vld [vmem:[%s6 + $0xb8] sm:$0xff]
    %v2184 = vld [vmem:[%s6 + $0xc0] sm:$0xff]
    %v2185 = vld [vmem:[%s6 + $0xc8] sm:$0xff]
    %v2186 = vld [vmem:[%s6 + $0xd0] sm:$0xff]
    %v2187 = vld [vmem:[%s6 + $0xd8] sm:$0xff]
    %v2188 = vld [vmem:[%s6 + $0xe0] sm:$0xff]
    %v2189 = vld [vmem:[%s6 + $0xe8] sm:$0xff]
    %v2190 = vld [vmem:[%s6 + $0xf0] sm:$0xff]
    %v2191 = vld [vmem:[%s6 + $0xf8] sm:$0xff]
    %v2192 = vld [vmem:[%s6 + $0x100] sm:$0xff]
    %v2193 = vld [vmem:[%s6 + $0x108] sm:$0xff]
    %v2194 = vld [vmem:[%s6 + $0x110] sm:$0xff]
    %v2195 = vld [vmem:[%s6 + $0x118] sm:$0xff]
    %v2196 = vld [vmem:[%s6 + $0x120] sm:$0xff]
    %v2197 = vld [vmem:[%s6 + $0x128] sm:$0xff]
    %v2198 = vld [vmem:[%s6 + $0x130] sm:$0xff]
    %v2199 = vld [vmem:[%s6 + $0x138] sm:$0xff]
    %v2200 = vld [vmem:[%s6 + $0x140] sm:$0xff]
    %v2201 = vld [vmem:[%s6 + $0x148] sm:$0xff]
    %v2202 = vld [vmem:[%s6 + $0x150] sm:$0xff]
    %v2203 = vld [vmem:[%s6 + $0x158] sm:$0xff]
    %v2204 = vld [vmem:[%s6 + $0x160] sm:$0xff]
    %v2205 = vld [vmem:[%s6 + $0x168] sm:$0xff]
    %v2206 = vld [vmem:[%s6 + $0x170] sm:$0xff]
    %v2207 = vld [vmem:[%s6 + $0x178] sm:$0xff]
    %v2208 = vld [vmem:[%s6 + $0x180] sm:$0xff]
    %v2209 = vld [vmem:[%s6 + $0x188] sm:$0xff]
    %v2210 = vld [vmem:[%s6 + $0x190] sm:$0xff]
    %v2211 = vld [vmem:[%s6 + $0x198] sm:$0xff]
    %v2212 = vld [vmem:[%s6 + $0x1a0] sm:$0xff]
    %v2213 = vld [vmem:[%s6 + $0x1a8] sm:$0xff]
    %v2214 = vld [vmem:[%s6 + $0x1b0] sm:$0xff]
    %v2215 = vld [vmem:[%s6 + $0x1b8] sm:$0xff]
    %v2216 = vld [vmem:[%s6 + $0x1c0] sm:$0xff]
    %v2217 = vld [vmem:[%s6 + $0x1c8] sm:$0xff]
    %v2218 = vld [vmem:[%s6 + $0x1d0] sm:$0xff]
    %v2219 = vld [vmem:[%s6 + $0x1d8] sm:$0xff]
    %v2220 = vld [vmem:[%s6 + $0x1e0] sm:$0xff]
    %v2221 = vld [vmem:[%s6 + $0x1e8] sm:$0xff]
    %v2222 = vld [vmem:[%s6 + $0x1f0] sm:$0xff]
    %v2223 = vld [vmem:[%s6 + $0x1f8] sm:$0xff]
    %vm2224 = vcmask 523264
    %v2226 = vsel %vm2224, %v2144, 0
    %v2229 = vsel %vm2224, %v2145, 0
    %2231 = vmatprep.subr.mxu0 %v2161
    %2232 = vmatpush1.msra.mxu0 %v2160
    %2233 = vmatprep.subr.mxu0 %v2169
    %2234 = vmatpush1.msra.mxu0 %v2168
    %2235 = vmatprep.subr.mxu0 %v2177
    %2236 = vmatpush1.msra.mxu0 %v2176
    %2237 = vmatprep.subr.mxu0 %v2185
    %2238 = vmatpush1.msra.mxu0 %v2184
    %2239 = vmatprep.subr.mxu0 %v2193
    %2240 = vmatpush1.msra.mxu0 %v2192
    %2241 = vmatprep.subr.mxu0 %v2201
    %2242 = vmatpush1.msra.mxu0 %v2200
    %2243 = vmatprep.subr.mxu0 %v2209
    %2244 = vmatpush1.msra.mxu0 %v2208
    %2245 = vmatprep.subr.mxu0 %v2217
    %2246 = vmatpush1.msra.mxu0 %v2216
    %2247 = vmatprep.subr.mxu0 0.0
    %2248 = vmatpush1.msra.mxu0 0.0
    %2249 = vmatprep.subr.mxu0 0.0
    %2250 = vmatpush1.msra.mxu0 0.0
    %2251 = vmatprep.subr.mxu0 0.0
    %2252 = vmatpush1.msra.mxu0 0.0
    %2253 = vmatprep.subr.mxu0 0.0
    %2254 = vmatpush1.msra.mxu0 0.0
    %2255 = vmatprep.subr.mxu0 0.0
    %2256 = vmatpush1.msra.mxu0 0.0
    %2257 = vmatprep.subr.mxu0 0.0
    %2258 = vmatpush1.msra.mxu0 0.0
    %2259 = vmatprep.subr.mxu0 0.0
    %2260 = vmatpush1.msra.mxu0 0.0
    %2261 = vmatprep.subr.mxu0 0.0
    %2262 = vmatpush1.msra.mxu0 0.0
    %2263 = vmatprep.subr.mxu0 0.0
    %2264 = vmatpush1.msra.mxu0 0.0
    %2265 = vmatprep.subr.mxu0 0.0
    %2266 = vmatpush1.msra.mxu0 0.0
    %2267 = vmatprep.subr.mxu0 0.0
    %2268 = vmatpush1.msra.mxu0 0.0
    %2269 = vmatprep.subr.mxu0 0.0
    %2270 = vmatpush1.msra.mxu0 0.0
    %2271 = vmatprep.subr.mxu0 0.0
    %2272 = vmatpush1.msra.mxu0 0.0
    %2273 = vmatprep.subr.mxu0 0.0
    %2274 = vmatpush1.msra.mxu0 0.0
    %2275 = vmatprep.subr.mxu0 0.0
    %2276 = vmatpush1.msra.mxu0 0.0
    %2277 = vmatprep.subr.mxu0 0.0
    %2278 = vmatpush1.msra.mxu0 0.0
    %2279 = vmatprep.subr.mxu0 0.0
    %2280 = vmatpush1.msra.mxu0 0.0
    %2281 = vmatprep.subr.mxu0 0.0
    %2282 = vmatpush1.msra.mxu0 0.0
    %2283 = vmatprep.subr.mxu0 0.0
    %2284 = vmatpush1.msra.mxu0 0.0
    %2285 = vmatprep.subr.mxu0 0.0
    %2286 = vmatpush1.msra.mxu0 0.0
    %2287 = vmatprep.subr.mxu0 0.0
    %2288 = vmatpush1.msra.mxu0 0.0
    %2289 = vmatprep.subr.mxu0 0.0
    %2290 = vmatpush1.msra.mxu0 0.0
    %2291 = vmatprep.subr.mxu0 0.0
    %2292 = vmatpush1.msra.mxu0 0.0
    %2293 = vmatprep.subr.mxu0 0.0
    %2294 = vmatpush1.msra.mxu0 0.0
    %2295 = vmatprep.mubr.f32.mxu0 0.0
    %2296 = vmatmul.mubr.f32.gmra.mrb[0].mxu0 %v2226
    %v2297 = vpop.f32.mrb[0].mxu0
    %v2298 = vadd.f32 0.0, %v2297
    %v2299 = vpop.f32.mrb[0].mxu0
    %v2300 = vadd.f32 0.0, %v2299
    %2301 = vmatprep.mubr.f32.mxu0 0.0
    %2302 = vmatmul.mubr.f32.gmra.mrb[0].mxu0 %v2229
    %v2303 = vpop.f32.mrb[0].mxu0
    %v2304 = vpop.f32.mrb[0].mxu0
    %2305 = vdwg.mxu0
    %2306 = vmatprep.subr.mxu0 %v2163
    %2307 = vmatpush1.msra.mxu0 %v2162
    %2308 = vmatprep.subr.mxu0 %v2171
    %2309 = vmatpush1.msra.mxu0 %v2170
    %2310 = vmatprep.subr.mxu0 %v2179
    %2311 = vmatpush1.msra.mxu0 %v2178
    %2312 = vmatprep.subr.mxu0 %v2187
    %2313 = vmatpush1.msra.mxu0 %v2186
    %2314 = vmatprep.subr.mxu0 %v2195
    %2315 = vmatpush1.msra.mxu0 %v2194
    %2316 = vmatprep.subr.mxu0 %v2203
    %2317 = vmatpush1.msra.mxu0 %v2202
    %2318 = vmatprep.subr.mxu0 %v2211
    %2319 = vmatpush1.msra.mxu0 %v2210
    %2320 = vmatprep.subr.mxu0 %v2219
    %2321 = vmatpush1.msra.mxu0 %v2218
    %2322 = vmatprep.subr.mxu0 0.0
    %2323 = vmatpush1.msra.mxu0 0.0
    %2324 = vmatprep.subr.mxu0 0.0
    %2325 = vmatpush1.msra.mxu0 0.0
    %2326 = vmatprep.subr.mxu0 0.0
    %2327 = vmatpush1.msra.mxu0 0.0
    %2328 = vmatprep.subr.mxu0 0.0
    %2329 = vmatpush1.msra.mxu0 0.0
    %2330 = vmatprep.subr.mxu0 0.0
    %2331 = vmatpush1.msra.mxu0 0.0
    %2332 = vmatprep.subr.mxu0 0.0
    %2333 = vmatpush1.msra.mxu0 0.0
    %2334 = vmatprep.subr.mxu0 0.0
    %2335 = vmatpush1.msra.mxu0 0.0
    %2336 = vmatprep.subr.mxu0 0.0
    %2337 = vmatpush1.msra.mxu0 0.0
    %2338 = vmatprep.subr.mxu0 0.0
    %2339 = vmatpush1.msra.mxu0 0.0
    %2340 = vmatprep.subr.mxu0 0.0
    %2341 = vmatpush1.msra.mxu0 0.0
    %2342 = vmatprep.subr.mxu0 0.0
    %2343 = vmatpush1.msra.mxu0 0.0
    %2344 = vmatprep.subr.mxu0 0.0
    %2345 = vmatpush1.msra.mxu0 0.0
    %2346 = vmatprep.subr.mxu0 0.0
    %2347 = vmatpush1.msra.mxu0 0.0
    %2348 = vmatprep.subr.mxu0 0.0
    %2349 = vmatpush1.msra.mxu0 0.0
    %2350 = vmatprep.subr.mxu0 0.0
    %2351 = vmatpush1.msra.mxu0 0.0
    %2352 = vmatprep.subr.mxu0 0.0
    %2353 = vmatpush1.msra.mxu0 0.0
    %2354 = vmatprep.subr.mxu0 0.0
    %2355 = vmatpush1.msra.mxu0 0.0
    %2356 = vmatprep.subr.mxu0 0.0
    %2357 = vmatpush1.msra.mxu0 0.0
    %2358 = vmatprep.subr.mxu0 0.0
    %2359 = vmatpush1.msra.mxu0 0.0
    %2360 = vmatprep.subr.mxu0 0.0
    %2361 = vmatpush1.msra.mxu0 0.0
    %2362 = vmatprep.subr.mxu0 0.0
    %2363 = vmatpush1.msra.mxu0 0.0
    %2364 = vmatprep.subr.mxu0 0.0
    %2365 = vmatpush1.msra.mxu0 0.0
    %2366 = vmatprep.subr.mxu0 0.0
    %2367 = vmatpush1.msra.mxu0 0.0
    %2368 = vmatprep.subr.mxu0 0.0
    %2369 = vmatpush1.msra.mxu0 0.0
    %2370 = vmatprep.mubr.f32.mxu0 0.0
    %2371 = vmatmul.mubr.f32.gmra.mrb[0].mxu0 %v2226
    %v2372 = vpop.f32.mrb[0].mxu0
    %v2373 = vadd.f32 0.0, %v2372
    %v2374 = vpop.f32.mrb[0].mxu0
    %v2375 = vadd.f32 0.0, %v2374
    %2376 = vmatprep.mubr.f32.mxu0 0.0
    %2377 = vmatmul.mubr.f32.gmra.mrb[0].mxu0 %v2229
    %v2378 = vpop.f32.mrb[0].mxu0
    %v2379 = vpop.f32.mrb[0].mxu0
    %2380 = vdwg.mxu0
    %2381 = vmatprep.subr.mxu0 %v2165
    %2382 = vmatpush1.msra.mxu0 %v2164
    %2383 = vmatprep.subr.mxu0 %v2173
    %2384 = vmatpush1.msra.mxu0 %v2172
    %2385 = vmatprep.subr.mxu0 %v2181
    %2386 = vmatpush1.msra.mxu0 %v2180
    %2387 = vmatprep.subr.mxu0 %v2189
    %2388 = vmatpush1.msra.mxu0 %v2188
    %2389 = vmatprep.subr.mxu0 %v2197
    %2390 = vmatpush1.msra.mxu0 %v2196
    %2391 = vmatprep.subr.mxu0 %v2205
    %2392 = vmatpush1.msra.mxu0 %v2204
    %2393 = vmatprep.subr.mxu0 %v2213
    %2394 = vmatpush1.msra.mxu0 %v2212
    %2395 = vmatprep.subr.mxu0 %v2221
    %2396 = vmatpush1.msra.mxu0 %v2220
    %2397 = vmatprep.subr.mxu0 0.0
    %2398 = vmatpush1.msra.mxu0 0.0
    %2399 = vmatprep.subr.mxu0 0.0
    %2400 = vmatpush1.msra.mxu0 0.0
    %2401 = vmatprep.subr.mxu0 0.0
    %2402 = vmatpush1.msra.mxu0 0.0
    %2403 = vmatprep.subr.mxu0 0.0
    %2404 = vmatpush1.msra.mxu0 0.0
    %2405 = vmatprep.subr.mxu0 0.0
    %2406 = vmatpush1.msra.mxu0 0.0
    %2407 = vmatprep.subr.mxu0 0.0
    %2408 = vmatpush1.msra.mxu0 0.0
    %2409 = vmatprep.subr.mxu0 0.0
    %2410 = vmatpush1.msra.mxu0 0.0
    %2411 = vmatprep.subr.mxu0 0.0
    %2412 = vmatpush1.msra.mxu0 0.0
    %2413 = vmatprep.subr.mxu0 0.0
    %2414 = vmatpush1.msra.mxu0 0.0
    %2415 = vmatprep.subr.mxu0 0.0
    %2416 = vmatpush1.msra.mxu0 0.0
    %2417 = vmatprep.subr.mxu0 0.0
    %2418 = vmatpush1.msra.mxu0 0.0
    %2419 = vmatprep.subr.mxu0 0.0
    %2420 = vmatpush1.msra.mxu0 0.0
    %2421 = vmatprep.subr.mxu0 0.0
    %2422 = vmatpush1.msra.mxu0 0.0
    %2423 = vmatprep.subr.mxu0 0.0
    %2424 = vmatpush1.msra.mxu0 0.0
    %2425 = vmatprep.subr.mxu0 0.0
    %2426 = vmatpush1.msra.mxu0 0.0
    %2427 = vmatprep.subr.mxu0 0.0
    %2428 = vmatpush1.msra.mxu0 0.0
    %2429 = vmatprep.subr.mxu0 0.0
    %2430 = vmatpush1.msra.mxu0 0.0
    %2431 = vmatprep.subr.mxu0 0.0
    %2432 = vmatpush1.msra.mxu0 0.0
    %2433 = vmatprep.subr.mxu0 0.0
    %2434 = vmatpush1.msra.mxu0 0.0
    %2435 = vmatprep.subr.mxu0 0.0
    %2436 = vmatpush1.msra.mxu0 0.0
    %2437 = vmatprep.subr.mxu0 0.0
    %2438 = vmatpush1.msra.mxu0 0.0
    %2439 = vmatprep.subr.mxu0 0.0
    %2440 = vmatpush1.msra.mxu0 0.0
    %2441 = vmatprep.subr.mxu0 0.0
    %2442 = vmatpush1.msra.mxu0 0.0
    %2443 = vmatprep.subr.mxu0 0.0
    %2444 = vmatpush1.msra.mxu0 0.0
    %2445 = vmatprep.mubr.f32.mxu0 0.0
    %2446 = vmatmul.mubr.f32.gmra.mrb[0].mxu0 %v2226
    %v2447 = vpop.f32.mrb[0].mxu0
    %v2448 = vpop.f32.mrb[0].mxu0
    %2449 = vmatprep.mubr.f32.mxu0 0.0
    %2450 = vmatmul.mubr.f32.gmra.mrb[0].mxu0 %v2229
    %v2451 = vpop.f32.mrb[0].mxu0
    %v2452 = vadd.f32 0.0, %v2451
    %v2453 = vpop.f32.mrb[0].mxu0
    %v2454 = vadd.f32 0.0, %v2453
    %2455 = vdwg.mxu0
    %2456 = vmatprep.subr.mxu0 %v2167
    %2457 = vmatpush1.msra.mxu0 %v2166
    %2458 = vmatprep.subr.mxu0 %v2175
    %2459 = vmatpush1.msra.mxu0 %v2174
    %2460 = vmatprep.subr.mxu0 %v2183
    %2461 = vmatpush1.msra.mxu0 %v2182
    %2462 = vmatprep.subr.mxu0 %v2191
    %2463 = vmatpush1.msra.mxu0 %v2190
    %2464 = vmatprep.subr.mxu0 %v2199
    %2465 = vmatpush1.msra.mxu0 %v2198
    %2466 = vmatprep.subr.mxu0 %v2207
    %2467 = vmatpush1.msra.mxu0 %v2206
    %2468 = vmatprep.subr.mxu0 %v2215
    %2469 = vmatpush1.msra.mxu0 %v2214
    %2470 = vmatprep.subr.mxu0 %v2223
    %2471 = vmatpush1.msra.mxu0 %v2222
    %2472 = vmatprep.subr.mxu0 0.0
    %2473 = vmatpush1.msra.mxu0 0.0
    %2474 = vmatprep.subr.mxu0 0.0
    %2475 = vmatpush1.msra.mxu0 0.0
    %2476 = vmatprep.subr.mxu0 0.0
    %2477 = vmatpush1.msra.mxu0 0.0
    %2478 = vmatprep.subr.mxu0 0.0
    %2479 = vmatpush1.msra.mxu0 0.0
    %2480 = vmatprep.subr.mxu0 0.0
    %2481 = vmatpush1.msra.mxu0 0.0
    %2482 = vmatprep.subr.mxu0 0.0
    %2483 = vmatpush1.msra.mxu0 0.0
    %2484 = vmatprep.subr.mxu0 0.0
    %2485 = vmatpush1.msra.mxu0 0.0
    %2486 = vmatprep.subr.mxu0 0.0
    %2487 = vmatpush1.msra.mxu0 0.0
    %2488 = vmatprep.subr.mxu0 0.0
    %2489 = vmatpush1.msra.mxu0 0.0
    %2490 = vmatprep.subr.mxu0 0.0
    %2491 = vmatpush1.msra.mxu0 0.0
    %2492 = vmatprep.subr.mxu0 0.0
    %2493 = vmatpush1.msra.mxu0 0.0
    %2494 = vmatprep.subr.mxu0 0.0
    %2495 = vmatpush1.msra.mxu0 0.0
    %2496 = vmatprep.subr.mxu0 0.0
    %2497 = vmatpush1.msra.mxu0 0.0
    %2498 = vmatprep.subr.mxu0 0.0
    %2499 = vmatpush1.msra.mxu0 0.0
    %2500 = vmatprep.subr.mxu0 0.0
    %2501 = vmatpush1.msra.mxu0 0.0
    %2502 = vmatprep.subr.mxu0 0.0
    %2503 = vmatpush1.msra.mxu0 0.0
    %2504 = vmatprep.subr.mxu0 0.0
    %2505 = vmatpush1.msra.mxu0 0.0
    %2506 = vmatprep.subr.mxu0 0.0
    %2507 = vmatpush1.msra.mxu0 0.0
    %2508 = vmatprep.subr.mxu0 0.0
    %2509 = vmatpush1.msra.mxu0 0.0
    %2510 = vmatprep.subr.mxu0 0.0
    %2511 = vmatpush1.msra.mxu0 0.0
    %2512 = vmatprep.subr.mxu0 0.0
    %2513 = vmatpush1.msra.mxu0 0.0
    %2514 = vmatprep.subr.mxu0 0.0
    %2515 = vmatpush1.msra.mxu0 0.0
    %2516 = vmatprep.subr.mxu0 0.0
    %2517 = vmatpush1.msra.mxu0 0.0
    %2518 = vmatprep.subr.mxu0 0.0
    %2519 = vmatpush1.msra.mxu0 0.0
    %2520 = vmatprep.mubr.f32.mxu0 0.0
    %2521 = vmatmul.mubr.f32.gmra.mrb[0].mxu0 %v2226
    %v2522 = vpop.f32.mrb[0].mxu0
    %v2523 = vpop.f32.mrb[0].mxu0
    %2524 = vmatprep.mubr.f32.mxu0 0.0
    %2525 = vmatmul.mubr.f32.gmra.mrb[0].mxu0 %v2229
    %v2526 = vpop.f32.mrb[0].mxu0
    %v2527 = vadd.f32 0.0, %v2526
    %v2528 = vpop.f32.mrb[0].mxu0
    %v2529 = vadd.f32 0.0, %v2528
    %2530 = vdwg.mxu0
    %v2531 = vadd.f32 %v2298, 0.0
    %v2533 = vrot.slane %v2298, 1
    %2534 = vrot.lane.b32.xlu0 %v2533, 64
    %v2535 = vpop.permute.xlu0 %2534
    %v2537 = vadd.f32 %v2531, %v2535
    %v2539 = vrot.slane %v2300, 2
    %v2541 = vadd.f32 %v2537, %v2539
    %v2542 = vrot.slane %v2300, 3
    %2543 = vrot.lane.b32.xlu0 %v2542, 64
    %v2544 = vpop.permute.xlu0 %2543
    %v2546 = vadd.f32 %v2541, %v2544
    %v2548 = vrot.slane %v2373, 4
    %v2550 = vadd.f32 %v2546, %v2548
    %v2551 = vrot.slane %v2373, 5
    %2552 = vrot.lane.b32.xlu0 %v2551, 64
    %v2553 = vpop.permute.xlu0 %2552
    %v2555 = vadd.f32 %v2550, %v2553
    %v2557 = vrot.slane %v2375, 6
    %v2559 = vadd.f32 %v2555, %v2557
    %v2560 = vrot.slane %v2375, 7
    %2561 = vrot.lane.b32.xlu0 %v2560, 64
    %v2562 = vpop.permute.xlu0 %2561
    %v2564 = vadd.f32 %v2559, %v2562
    %v2565 = vadd.f32 %v2564, %v2452
    %v2567 = vrot.slane %v2452, 1
    %2568 = vrot.lane.b32.xlu0 %v2567, 64
    %v2569 = vpop.permute.xlu0 %2568
    %v2571 = vadd.f32 %v2565, %v2569
    %v2573 = vrot.slane %v2454, 2
    %v2575 = vadd.f32 %v2571, %v2573
    %v2576 = vrot.slane %v2454, 3
    %2577 = vrot.lane.b32.xlu0 %v2576, 64
    %v2578 = vpop.permute.xlu0 %2577
    %v2580 = vadd.f32 %v2575, %v2578
    %v2582 = vrot.slane %v2527, 4
    %v2584 = vadd.f32 %v2580, %v2582
    %v2585 = vrot.slane %v2527, 5
    %2586 = vrot.lane.b32.xlu0 %v2585, 64
    %v2587 = vpop.permute.xlu0 %2586
    %v2589 = vadd.f32 %v2584, %v2587
    %v2591 = vrot.slane %v2529, 6
    %v2593 = vadd.f32 %v2589, %v2591
    %v2594 = vrot.slane %v2529, 7
    %2595 = vrot.lane.b32.xlu0 %v2594, 64
    %v2596 = vpop.permute.xlu0 %2595
    %v2598 = vadd.f32 %v2593, %v2596
    %vm2599 = vcmask 516096
    %2600 = vst.msk [vmem:[#allocation6] sm:$0x1] %vm2599, %v2598
    %v2601 = vld [vmem:[%s6] sm:$0xff]
    %v2602 = vld [vmem:[%s6 + $0x8] sm:$0xff]
    %v2603 = vld [vmem:[%s6 + $0x10] sm:$0xff]
    %v2604 = vld [vmem:[%s6 + $0x18] sm:$0xff]
    %v2605 = vld [vmem:[%s6 + $0x20] sm:$0xff]
    %v2606 = vld [vmem:[%s6 + $0x28] sm:$0xff]
    %v2607 = vld [vmem:[%s6 + $0x30] sm:$0xff]
    %v2608 = vld [vmem:[%s6 + $0x38] sm:$0xff]
    %v2609 = vld [vmem:[%s6 + $0x40] sm:$0xff]
    %v2610 = vld [vmem:[%s6 + $0x48] sm:$0xff]
    %v2611 = vld [vmem:[%s6 + $0x50] sm:$0xff]
    %v2612 = vld [vmem:[%s6 + $0x58] sm:$0xff]
    %v2613 = vld [vmem:[%s6 + $0x60] sm:$0xff]
    %v2614 = vld [vmem:[%s6 + $0x68] sm:$0xff]
    %v2615 = vld [vmem:[%s6 + $0x70] sm:$0xff]
    %v2616 = vld [vmem:[%s6 + $0x78] sm:$0xff]
    %v2617 = vld [vmem:[%s6 + $0x80] sm:$0xff]
    %v2618 = vld [vmem:[%s6 + $0x88] sm:$0xff]
    %v2619 = vld [vmem:[%s6 + $0x90] sm:$0xff]
    %v2620 = vld [vmem:[%s6 + $0x98] sm:$0xff]
    %v2621 = vld [vmem:[%s6 + $0xa0] sm:$0xff]
    %v2622 = vld [vmem:[%s6 + $0xa8] sm:$0xff]
    %v2623 = vld [vmem:[%s6 + $0xb0] sm:$0xff]
    %v2624 = vld [vmem:[%s6 + $0xb8] sm:$0xff]
    %v2625 = vld [vmem:[%s6 + $0xc0] sm:$0xff]
    %v2626 = vld [vmem:[%s6 + $0xc8] sm:$0xff]
    %v2627 = vld [vmem:[%s6 + $0xd0] sm:$0xff]
    %v2628 = vld [vmem:[%s6 + $0xd8] sm:$0xff]
    %v2629 = vld [vmem:[%s6 + $0xe0] sm:$0xff]
    %v2630 = vld [vmem:[%s6 + $0xe8] sm:$0xff]
    %v2631 = vld [vmem:[%s6 + $0xf0] sm:$0xff]
    %v2632 = vld [vmem:[%s6 + $0xf8] sm:$0xff]
    %v2633 = vld [vmem:[%s6 + $0x100] sm:$0xff]
    %v2634 = vld [vmem:[%s6 + $0x108] sm:$0xff]
    %v2635 = vld [vmem:[%s6 + $0x110] sm:$0xff]
    %v2636 = vld [vmem:[%s6 + $0x118] sm:$0xff]
    %v2637 = vld [vmem:[%s6 + $0x120] sm:$0xff]
    %v2638 = vld [vmem:[%s6 + $0x128] sm:$0xff]
    %v2639 = vld [vmem:[%s6 + $0x130] sm:$0xff]
    %v2640 = vld [vmem:[%s6 + $0x138] sm:$0xff]
    %v2641 = vld [vmem:[%s6 + $0x140] sm:$0xff]
    %v2642 = vld [vmem:[%s6 + $0x148] sm:$0xff]
    %v2643 = vld [vmem:[%s6 + $0x150] sm:$0xff]
    %v2644 = vld [vmem:[%s6 + $0x158] sm:$0xff]
    %v2645 = vld [vmem:[%s6 + $0x160] sm:$0xff]
    %v2646 = vld [vmem:[%s6 + $0x168] sm:$0xff]
    %v2647 = vld [vmem:[%s6 + $0x170] sm:$0xff]
    %v2648 = vld [vmem:[%s6 + $0x178] sm:$0xff]
    %v2649 = vld [vmem:[%s6 + $0x180] sm:$0xff]
    %v2650 = vld [vmem:[%s6 + $0x188] sm:$0xff]
    %v2651 = vld [vmem:[%s6 + $0x190] sm:$0xff]
    %v2652 = vld [vmem:[%s6 + $0x198] sm:$0xff]
    %v2653 = vld [vmem:[%s6 + $0x1a0] sm:$0xff]
    %v2654 = vld [vmem:[%s6 + $0x1a8] sm:$0xff]
    %v2655 = vld [vmem:[%s6 + $0x1b0] sm:$0xff]
    %v2656 = vld [vmem:[%s6 + $0x1b8] sm:$0xff]
    %v2657 = vld [vmem:[%s6 + $0x1c0] sm:$0xff]
    %v2658 = vld [vmem:[%s6 + $0x1c8] sm:$0xff]
    %v2659 = vld [vmem:[%s6 + $0x1d0] sm:$0xff]
    %v2660 = vld [vmem:[%s6 + $0x1d8] sm:$0xff]
    %v2661 = vld [vmem:[%s6 + $0x1e0] sm:$0xff]
    %v2662 = vld [vmem:[%s6 + $0x1e8] sm:$0xff]
    %v2663 = vld [vmem:[%s6 + $0x1f0] sm:$0xff]
    %v2664 = vld [vmem:[%s6 + $0x1f8] sm:$0xff]
    %2665 = vrot.lane.b32.xlu0 %v2144, 64
    %v2666 = vpop.permute.xlu0 %2665
    %2667 = vrot.lane.b32.xlu0 %v2145, 64
    %v2668 = vpop.permute.xlu0 %2667
    %v2669 = vsel %vm2224, %v2666, 0
    %v2671 = vsel %vm2224, %v2668, 0
    %2673 = vmatprep.subr.mxu0 %v2602
    %2674 = vmatpush1.msra.mxu0 %v2601
    %2675 = vmatprep.subr.mxu0 %v2610
    %2676 = vmatpush1.msra.mxu0 %v2609
    %2677 = vmatprep.subr.mxu0 %v2618
    %2678 = vmatpush1.msra.mxu0 %v2617
    %2679 = vmatprep.subr.mxu0 %v2626
    %2680 = vmatpush1.msra.mxu0 %v2625
    %2681 = vmatprep.subr.mxu0 %v2634
    %2682 = vmatpush1.msra.mxu0 %v2633
    %2683 = vmatprep.subr.mxu0 %v2642
    %2684 = vmatpush1.msra.mxu0 %v2641
    %2685 = vmatprep.subr.mxu0 %v2650
    %2686 = vmatpush1.msra.mxu0 %v2649
    %2687 = vmatprep.subr.mxu0 %v2658
    %2688 = vmatpush1.msra.mxu0 %v2657
    %2689 = vmatprep.subr.mxu0 0.0
    %2690 = vmatpush1.msra.mxu0 0.0
    %2691 = vmatprep.subr.mxu0 0.0
    %2692 = vmatpush1.msra.mxu0 0.0
    %2693 = vmatprep.subr.mxu0 0.0
    %2694 = vmatpush1.msra.mxu0 0.0
    %2695 = vmatprep.subr.mxu0 0.0
    %2696 = vmatpush1.msra.mxu0 0.0
    %2697 = vmatprep.subr.mxu0 0.0
    %2698 = vmatpush1.msra.mxu0 0.0
    %2699 = vmatprep.subr.mxu0 0.0
    %2700 = vmatpush1.msra.mxu0 0.0
    %2701 = vmatprep.subr.mxu0 0.0
    %2702 = vmatpush1.msra.mxu0 0.0
    %2703 = vmatprep.subr.mxu0 0.0
    %2704 = vmatpush1.msra.mxu0 0.0
    %2705 = vmatprep.subr.mxu0 0.0
    %2706 = vmatpush1.msra.mxu0 0.0
    %2707 = vmatprep.subr.mxu0 0.0
    %2708 = vmatpush1.msra.mxu0 0.0
    %2709 = vmatprep.subr.mxu0 0.0
    %2710 = vmatpush1.msra.mxu0 0.0
    %2711 = vmatprep.subr.mxu0 0.0
    %2712 = vmatpush1.msra.mxu0 0.0
    %2713 = vmatprep.subr.mxu0 0.0
    %2714 = vmatpush1.msra.mxu0 0.0
    %2715 = vmatprep.subr.mxu0 0.0
    %2716 = vmatpush1.msra.mxu0 0.0
    %2717 = vmatprep.subr.mxu0 0.0
    %2718 = vmatpush1.msra.mxu0 0.0
    %2719 = vmatprep.subr.mxu0 0.0
    %2720 = vmatpush1.msra.mxu0 0.0
    %2721 = vmatprep.subr.mxu0 0.0
    %2722 = vmatpush1.msra.mxu0 0.0
    %2723 = vmatprep.subr.mxu0 0.0
    %2724 = vmatpush1.msra.mxu0 0.0
    %2725 = vmatprep.subr.mxu0 0.0
    %2726 = vmatpush1.msra.mxu0 0.0
    %2727 = vmatprep.subr.mxu0 0.0
    %2728 = vmatpush1.msra.mxu0 0.0
    %2729 = vmatprep.subr.mxu0 0.0
    %2730 = vmatpush1.msra.mxu0 0.0
    %2731 = vmatprep.subr.mxu0 0.0
    %2732 = vmatpush1.msra.mxu0 0.0
    %2733 = vmatprep.subr.mxu0 0.0
    %2734 = vmatpush1.msra.mxu0 0.0
    %2735 = vmatprep.subr.mxu0 0.0
    %2736 = vmatpush1.msra.mxu0 0.0
    %2737 = vmatprep.mubr.f32.mxu0 0.0
    %2738 = vmatmul.mubr.f32.gmra.mrb[0].mxu0 %v2669
    %v2739 = vpop.f32.mrb[0].mxu0
    %v2740 = vadd.f32 0.0, %v2739
    %v2741 = vpop.f32.mrb[0].mxu0
    %v2742 = vadd.f32 0.0, %v2741
    %2743 = vmatprep.mubr.f32.mxu0 0.0
    %2744 = vmatmul.mubr.f32.gmra.mrb[0].mxu0 %v2671
    %v2745 = vpop.f32.mrb[0].mxu0
    %v2746 = vpop.f32.mrb[0].mxu0
    %2747 = vdwg.mxu0
    %2748 = vmatprep.subr.mxu0 %v2604
    %2749 = vmatpush1.msra.mxu0 %v2603
    %2750 = vmatprep.subr.mxu0 %v2612
    %2751 = vmatpush1.msra.mxu0 %v2611
    %2752 = vmatprep.subr.mxu0 %v2620
    %2753 = vmatpush1.msra.mxu0 %v2619
    %2754 = vmatprep.subr.mxu0 %v2628
    %2755 = vmatpush1.msra.mxu0 %v2627
    %2756 = vmatprep.subr.mxu0 %v2636
    %2757 = vmatpush1.msra.mxu0 %v2635
    %2758 = vmatprep.subr.mxu0 %v2644
    %2759 = vmatpush1.msra.mxu0 %v2643
    %2760 = vmatprep.subr.mxu0 %v2652
    %2761 = vmatpush1.msra.mxu0 %v2651
    %2762 = vmatprep.subr.mxu0 %v2660
    %2763 = vmatpush1.msra.mxu0 %v2659
    %2764 = vmatprep.subr.mxu0 0.0
    %2765 = vmatpush1.msra.mxu0 0.0
    %2766 = vmatprep.subr.mxu0 0.0
    %2767 = vmatpush1.msra.mxu0 0.0
    %2768 = vmatprep.subr.mxu0 0.0
    %2769 = vmatpush1.msra.mxu0 0.0
    %2770 = vmatprep.subr.mxu0 0.0
    %2771 = vmatpush1.msra.mxu0 0.0
    %2772 = vmatprep.subr.mxu0 0.0
    %2773 = vmatpush1.msra.mxu0 0.0
    %2774 = vmatprep.subr.mxu0 0.0
    %2775 = vmatpush1.msra.mxu0 0.0
    %2776 = vmatprep.subr.mxu0 0.0
    %2777 = vmatpush1.msra.mxu0 0.0
    %2778 = vmatprep.subr.mxu0 0.0
    %2779 = vmatpush1.msra.mxu0 0.0
    %2780 = vmatprep.subr.mxu0 0.0
    %2781 = vmatpush1.msra.mxu0 0.0
    %2782 = vmatprep.subr.mxu0 0.0
    %2783 = vmatpush1.msra.mxu0 0.0
    %2784 = vmatprep.subr.mxu0 0.0
    %2785 = vmatpush1.msra.mxu0 0.0
    %2786 = vmatprep.subr.mxu0 0.0
    %2787 = vmatpush1.msra.mxu0 0.0
    %2788 = vmatprep.subr.mxu0 0.0
    %2789 = vmatpush1.msra.mxu0 0.0
    %2790 = vmatprep.subr.mxu0 0.0
    %2791 = vmatpush1.msra.mxu0 0.0
    %2792 = vmatprep.subr.mxu0 0.0
    %2793 = vmatpush1.msra.mxu0 0.0
    %2794 = vmatprep.subr.mxu0 0.0
    %2795 = vmatpush1.msra.mxu0 0.0
    %2796 = vmatprep.subr.mxu0 0.0
    %2797 = vmatpush1.msra.mxu0 0.0
    %2798 = vmatprep.subr.mxu0 0.0
    %2799 = vmatpush1.msra.mxu0 0.0
    %2800 = vmatprep.subr.mxu0 0.0
    %2801 = vmatpush1.msra.mxu0 0.0
    %2802 = vmatprep.subr.mxu0 0.0
    %2803 = vmatpush1.msra.mxu0 0.0
    %2804 = vmatprep.subr.mxu0 0.0
    %2805 = vmatpush1.msra.mxu0 0.0
    %2806 = vmatprep.subr.mxu0 0.0
    %2807 = vmatpush1.msra.mxu0 0.0
    %2808 = vmatprep.subr.mxu0 0.0
    %2809 = vmatpush1.msra.mxu0 0.0
    %2810 = vmatprep.subr.mxu0 0.0
    %2811 = vmatpush1.msra.mxu0 0.0
    %2812 = vmatprep.mubr.f32.mxu0 0.0
    %2813 = vmatmul.mubr.f32.gmra.mrb[0].mxu0 %v2669
    %v2814 = vpop.f32.mrb[0].mxu0
    %v2815 = vadd.f32 0.0, %v2814
    %v2816 = vpop.f32.mrb[0].mxu0
    %v2817 = vadd.f32 0.0, %v2816
    %2818 = vmatprep.mubr.f32.mxu0 0.0
    %2819 = vmatmul.mubr.f32.gmra.mrb[0].mxu0 %v2671
    %v2820 = vpop.f32.mrb[0].mxu0
    %v2821 = vpop.f32.mrb[0].mxu0
    %2822 = vdwg.mxu0
    %2823 = vmatprep.subr.mxu0 %v2606
    %2824 = vmatpush1.msra.mxu0 %v2605
    %2825 = vmatprep.subr.mxu0 %v2614
    %2826 = vmatpush1.msra.mxu0 %v2613
    %2827 = vmatprep.subr.mxu0 %v2622
    %2828 = vmatpush1.msra.mxu0 %v2621
    %2829 = vmatprep.subr.mxu0 %v2630
    %2830 = vmatpush1.msra.mxu0 %v2629
    %2831 = vmatprep.subr.mxu0 %v2638
    %2832 = vmatpush1.msra.mxu0 %v2637
    %2833 = vmatprep.subr.mxu0 %v2646
    %2834 = vmatpush1.msra.mxu0 %v2645
    %2835 = vmatprep.subr.mxu0 %v2654
    %2836 = vmatpush1.msra.mxu0 %v2653
    %2837 = vmatprep.subr.mxu0 %v2662
    %2838 = vmatpush1.msra.mxu0 %v2661
    %2839 = vmatprep.subr.mxu0 0.0
    %2840 = vmatpush1.msra.mxu0 0.0
    %2841 = vmatprep.subr.mxu0 0.0
    %2842 = vmatpush1.msra.mxu0 0.0
    %2843 = vmatprep.subr.mxu0 0.0
    %2844 = vmatpush1.msra.mxu0 0.0
    %2845 = vmatprep.subr.mxu0 0.0
    %2846 = vmatpush1.msra.mxu0 0.0
    %2847 = vmatprep.subr.mxu0 0.0
    %2848 = vmatpush1.msra.mxu0 0.0
    %2849 = vmatprep.subr.mxu0 0.0
    %2850 = vmatpush1.msra.mxu0 0.0
    %2851 = vmatprep.subr.mxu0 0.0
    %2852 = vmatpush1.msra.mxu0 0.0
    %2853 = vmatprep.subr.mxu0 0.0
    %2854 = vmatpush1.msra.mxu0 0.0
    %2855 = vmatprep.subr.mxu0 0.0
    %2856 = vmatpush1.msra.mxu0 0.0
    %2857 = vmatprep.subr.mxu0 0.0
    %2858 = vmatpush1.msra.mxu0 0.0
    %2859 = vmatprep.subr.mxu0 0.0
    %2860 = vmatpush1.msra.mxu0 0.0
    %2861 = vmatprep.subr.mxu0 0.0
    %2862 = vmatpush1.msra.mxu0 0.0
    %2863 = vmatprep.subr.mxu0 0.0
    %2864 = vmatpush1.msra.mxu0 0.0
    %2865 = vmatprep.subr.mxu0 0.0
    %2866 = vmatpush1.msra.mxu0 0.0
    %2867 = vmatprep.subr.mxu0 0.0
    %2868 = vmatpush1.msra.mxu0 0.0
    %2869 = vmatprep.subr.mxu0 0.0
    %2870 = vmatpush1.msra.mxu0 0.0
    %2871 = vmatprep.subr.mxu0 0.0
    %2872 = vmatpush1.msra.mxu0 0.0
    %2873 = vmatprep.subr.mxu0 0.0
    %2874 = vmatpush1.msra.mxu0 0.0
    %2875 = vmatprep.subr.mxu0 0.0
    %2876 = vmatpush1.msra.mxu0 0.0
    %2877 = vmatprep.subr.mxu0 0.0
    %2878 = vmatpush1.msra.mxu0 0.0
    %2879 = vmatprep.subr.mxu0 0.0
    %2880 = vmatpush1.msra.mxu0 0.0
    %2881 = vmatprep.subr.mxu0 0.0
    %2882 = vmatpush1.msra.mxu0 0.0
    %2883 = vmatprep.subr.mxu0 0.0
    %2884 = vmatpush1.msra.mxu0 0.0
    %2885 = vmatprep.subr.mxu0 0.0
    %2886 = vmatpush1.msra.mxu0 0.0
    %2887 = vmatprep.mubr.f32.mxu0 0.0
    %2888 = vmatmul.mubr.f32.gmra.mrb[0].mxu0 %v2669
    %v2889 = vpop.f32.mrb[0].mxu0
    %v2890 = vpop.f32.mrb[0].mxu0
    %2891 = vmatprep.mubr.f32.mxu0 0.0
    %2892 = vmatmul.mubr.f32.gmra.mrb[0].mxu0 %v2671
    %v2893 = vpop.f32.mrb[0].mxu0
    %v2894 = vadd.f32 0.0, %v2893
    %v2895 = vpop.f32.mrb[0].mxu0
    %v2896 = vadd.f32 0.0, %v2895
    %2897 = vdwg.mxu0
    %2898 = vmatprep.subr.mxu0 %v2608
    %2899 = vmatpush1.msra.mxu0 %v2607
    %2900 = vmatprep.subr.mxu0 %v2616
    %2901 = vmatpush1.msra.mxu0 %v2615
    %2902 = vmatprep.subr.mxu0 %v2624
    %2903 = vmatpush1.msra.mxu0 %v2623
    %2904 = vmatprep.subr.mxu0 %v2632
    %2905 = vmatpush1.msra.mxu0 %v2631
    %2906 = vmatprep.subr.mxu0 %v2640
    %2907 = vmatpush1.msra.mxu0 %v2639
    %2908 = vmatprep.subr.mxu0 %v2648
    %2909 = vmatpush1.msra.mxu0 %v2647
    %2910 = vmatprep.subr.mxu0 %v2656
    %2911 = vmatpush1.msra.mxu0 %v2655
    %2912 = vmatprep.subr.mxu0 %v2664
    %2913 = vmatpush1.msra.mxu0 %v2663
    %2914 = vmatprep.subr.mxu0 0.0
    %2915 = vmatpush1.msra.mxu0 0.0
    %2916 = vmatprep.subr.mxu0 0.0
    %2917 = vmatpush1.msra.mxu0 0.0
    %2918 = vmatprep.subr.mxu0 0.0
    %2919 = vmatpush1.msra.mxu0 0.0
    %2920 = vmatprep.subr.mxu0 0.0
    %2921 = vmatpush1.msra.mxu0 0.0
    %2922 = vmatprep.subr.mxu0 0.0
    %2923 = vmatpush1.msra.mxu0 0.0
    %2924 = vmatprep.subr.mxu0 0.0
    %2925 = vmatpush1.msra.mxu0 0.0
    %2926 = vmatprep.subr.mxu0 0.0
    %2927 = vmatpush1.msra.mxu0 0.0
    %2928 = vmatprep.subr.mxu0 0.0
    %2929 = vmatpush1.msra.mxu0 0.0
    %2930 = vmatprep.subr.mxu0 0.0
    %2931 = vmatpush1.msra.mxu0 0.0
    %2932 = vmatprep.subr.mxu0 0.0
    %2933 = vmatpush1.msra.mxu0 0.0
    %2934 = vmatprep.subr.mxu0 0.0
    %2935 = vmatpush1.msra.mxu0 0.0
    %2936 = vmatprep.subr.mxu0 0.0
    %2937 = vmatpush1.msra.mxu0 0.0
    %2938 = vmatprep.subr.mxu0 0.0
    %2939 = vmatpush1.msra.mxu0 0.0
    %2940 = vmatprep.subr.mxu0 0.0
    %2941 = vmatpush1.msra.mxu0 0.0
    %2942 = vmatprep.subr.mxu0 0.0
    %2943 = vmatpush1.msra.mxu0 0.0
    %2944 = vmatprep.subr.mxu0 0.0
    %2945 = vmatpush1.msra.mxu0 0.0
    %2946 = vmatprep.subr.mxu0 0.0
    %2947 = vmatpush1.msra.mxu0 0.0
    %2948 = vmatprep.subr.mxu0 0.0
    %2949 = vmatpush1.msra.mxu0 0.0
    %2950 = vmatprep.subr.mxu0 0.0
    %2951 = vmatpush1.msra.mxu0 0.0
    %2952 = vmatprep.subr.mxu0 0.0
    %2953 = vmatpush1.msra.mxu0 0.0
    %2954 = vmatprep.subr.mxu0 0.0
    %2955 = vmatpush1.msra.mxu0 0.0
    %2956 = vmatprep.subr.mxu0 0.0
    %2957 = vmatpush1.msra.mxu0 0.0
    %2958 = vmatprep.subr.mxu0 0.0
    %2959 = vmatpush1.msra.mxu0 0.0
    %2960 = vmatprep.subr.mxu0 0.0
    %2961 = vmatpush1.msra.mxu0 0.0
    %2962 = vmatprep.mubr.f32.mxu0 0.0
    %2963 = vmatmul.mubr.f32.gmra.mrb[0].mxu0 %v2669
    %v2964 = vpop.f32.mrb[0].mxu0
    %v2965 = vpop.f32.mrb[0].mxu0
    %2966 = vmatprep.mubr.f32.mxu0 0.0
    %2967 = vmatmul.mubr.f32.gmra.mrb[0].mxu0 %v2671
    %v2968 = vpop.f32.mrb[0].mxu0
    %v2969 = vadd.f32 0.0, %v2968
    %v2970 = vpop.f32.mrb[0].mxu0
    %v2971 = vadd.f32 0.0, %v2970
    %2972 = vdwg.mxu0
    %v2973 = vadd.f32 %v2740, 0.0
    %v2975 = vrot.slane %v2740, 1
    %2976 = vrot.lane.b32.xlu0 %v2975, 64
    %v2977 = vpop.permute.xlu0 %2976
    %v2979 = vadd.f32 %v2973, %v2977
    %v2981 = vrot.slane %v2742, 2
    %v2983 = vadd.f32 %v2979, %v2981
    %v2984 = vrot.slane %v2742, 3
    %2985 = vrot.lane.b32.xlu0 %v2984, 64
    %v2986 = vpop.permute.xlu0 %2985
    %v2988 = vadd.f32 %v2983, %v2986
    %v2990 = vrot.slane %v2815, 4
    %v2992 = vadd.f32 %v2988, %v2990
    %v2993 = vrot.slane %v2815, 5
    %2994 = vrot.lane.b32.xlu0 %v2993, 64
    %v2995 = vpop.permute.xlu0 %2994
    %v2997 = vadd.f32 %v2992, %v2995
    %v2999 = vrot.slane %v2817, 6
    %v3001 = vadd.f32 %v2997, %v2999
    %v3002 = vrot.slane %v2817, 7
    %3003 = vrot.lane.b32.xlu0 %v3002, 64
    %v3004 = vpop.permute.xlu0 %3003
    %v3006 = vadd.f32 %v3001, %v3004
    %v3007 = vadd.f32 %v3006, %v2894
    %v3009 = vrot.slane %v2894, 1
    %3010 = vrot.lane.b32.xlu0 %v3009, 64
    %v3011 = vpop.permute.xlu0 %3010
    %v3013 = vadd.f32 %v3007, %v3011
    %v3015 = vrot.slane %v2896, 2
    %v3017 = vadd.f32 %v3013, %v3015
    %v3018 = vrot.slane %v2896, 3
    %3019 = vrot.lane.b32.xlu0 %v3018, 64
    %v3020 = vpop.permute.xlu0 %3019
    %v3022 = vadd.f32 %v3017, %v3020
    %v3024 = vrot.slane %v2969, 4
    %v3026 = vadd.f32 %v3022, %v3024
    %v3027 = vrot.slane %v2969, 5
    %3028 = vrot.lane.b32.xlu0 %v3027, 64
    %v3029 = vpop.permute.xlu0 %3028
    %v3031 = vadd.f32 %v3026, %v3029
    %v3033 = vrot.slane %v2971, 6
    %v3035 = vadd.f32 %v3031, %v3033
    %v3036 = vrot.slane %v2971, 7
    %3037 = vrot.lane.b32.xlu0 %v3036, 64
    %v3038 = vpop.permute.xlu0 %3037
    %v3040 = vadd.f32 %v3035, %v3038
    %3041 = vst.msk [vmem:[#allocation6 + $0x1] sm:$0x1] %vm2599, %v3040
    %v3042 = vld [vmem:[#allocation6] sm:$0x3]
    %v3043 = vld [vmem:[%s1] sm:$0x3]
    %v3044 = vld [vmem:[%s7] sm:$0xff]
    %v3045 = vld [vmem:[%s7 + $0x8] sm:$0xff]
    %v3047 = vsel %vm1100, %v3043, 0
    %3049 = vmatprep.subr.mxu0 0.0
    %3050 = vmatpush1.msra.mxu0 %v3044
    %3051 = vmatprep.subr.mxu0 0.0
    %3052 = vmatpush1.msra.mxu0 %v3045
    %3053 = vmatprep.subr.mxu0 0.0
    %3054 = vmatpush1.msra.mxu0 0.0
    %3055 = vmatprep.subr.mxu0 0.0
    %3056 = vmatpush1.msra.mxu0 0.0
    %3057 = vmatprep.subr.mxu0 0.0
    %3058 = vmatpush1.msra.mxu0 0.0
    %3059 = vmatprep.subr.mxu0 0.0
    %3060 = vmatpush1.msra.mxu0 0.0
    %3061 = vmatprep.subr.mxu0 0.0
    %3062 = vmatpush1.msra.mxu0 0.0
    %3063 = vmatprep.subr.mxu0 0.0
    %3064 = vmatpush1.msra.mxu0 0.0
    %3065 = vmatprep.subr.mxu0 0.0
    %3066 = vmatpush1.msra.mxu0 0.0
    %3067 = vmatprep.subr.mxu0 0.0
    %3068 = vmatpush1.msra.mxu0 0.0
    %3069 = vmatprep.subr.mxu0 0.0
    %3070 = vmatpush1.msra.mxu0 0.0
    %3071 = vmatprep.subr.mxu0 0.0
    %3072 = vmatpush1.msra.mxu0 0.0
    %3073 = vmatprep.subr.mxu0 0.0
    %3074 = vmatpush1.msra.mxu0 0.0
    %3075 = vmatprep.subr.mxu0 0.0
    %3076 = vmatpush1.msra.mxu0 0.0
    %3077 = vmatprep.subr.mxu0 0.0
    %3078 = vmatpush1.msra.mxu0 0.0
    %3079 = vmatprep.subr.mxu0 0.0
    %3080 = vmatpush1.msra.mxu0 0.0
    %3081 = vmatprep.subr.mxu0 0.0
    %3082 = vmatpush1.msra.mxu0 0.0
    %3083 = vmatprep.subr.mxu0 0.0
    %3084 = vmatpush1.msra.mxu0 0.0
    %3085 = vmatprep.subr.mxu0 0.0
    %3086 = vmatpush1.msra.mxu0 0.0
    %3087 = vmatprep.subr.mxu0 0.0
    %3088 = vmatpush1.msra.mxu0 0.0
    %3089 = vmatprep.subr.mxu0 0.0
    %3090 = vmatpush1.msra.mxu0 0.0
    %3091 = vmatprep.subr.mxu0 0.0
    %3092 = vmatpush1.msra.mxu0 0.0
    %3093 = vmatprep.subr.mxu0 0.0
    %3094 = vmatpush1.msra.mxu0 0.0
    %3095 = vmatprep.subr.mxu0 0.0
    %3096 = vmatpush1.msra.mxu0 0.0
    %3097 = vmatprep.subr.mxu0 0.0
    %3098 = vmatpush1.msra.mxu0 0.0
    %3099 = vmatprep.subr.mxu0 0.0
    %3100 = vmatpush1.msra.mxu0 0.0
    %3101 = vmatprep.subr.mxu0 0.0
    %3102 = vmatpush1.msra.mxu0 0.0
    %3103 = vmatprep.subr.mxu0 0.0
    %3104 = vmatpush1.msra.mxu0 0.0
    %3105 = vmatprep.subr.mxu0 0.0
    %3106 = vmatpush1.msra.mxu0 0.0
    %3107 = vmatprep.subr.mxu0 0.0
    %3108 = vmatpush1.msra.mxu0 0.0
    %3109 = vmatprep.subr.mxu0 0.0
    %3110 = vmatpush1.msra.mxu0 0.0
    %3111 = vmatprep.subr.mxu0 0.0
    %3112 = vmatpush1.msra.mxu0 0.0
    %3113 = vmatprep.mubr.f32.mxu0 0.0
    %3114 = vmatmul.mubr.f32.gmra.mrb[0].mxu0 %v3047
    %v3115 = vpop.f32.mrb[0].mxu0
    %v3116 = vadd.f32 0.0, %v3115
    %v3117 = vpop.f32.mrb[0].mxu0
    %3118 = vdwg.mxu0
    %v3119 = vadd.f32 %v3042, %v3116
    %v3120 = vld [vmem:[%s8] sm:$0x1]
    %v3122 = vlaneseq
    %v3123 = vshrl.u32 %v3122, 7
    %v3124 = vsub.s32 0, %v3123
    %v3125 = vrot.slane %v3120, %v3124
    %v3127 = vadd.f32 %v3119, %v3125
    %v3128 = vmax.f32 %v3127, 0.0
    %v3129 = vld [vmem:[%s9] sm:$0xff]
    %v3130 = vld [vmem:[%s9 + $0x8] sm:$0xff]
    %v3131 = vld [vmem:[%s9 + $0x10] sm:$0xff]
    %v3132 = vld [vmem:[%s9 + $0x18] sm:$0xff]
    %v3133 = vld [vmem:[%s9 + $0x20] sm:$0xff]
    %v3134 = vld [vmem:[%s9 + $0x28] sm:$0xff]
    %v3135 = vld [vmem:[%s9 + $0x30] sm:$0xff]
    %v3136 = vld [vmem:[%s9 + $0x38] sm:$0xff]
    %v3137 = vld [vmem:[%s10] sm:$0x1]
    %v3139 = vlaneseq
    %v3140 = vshrl.u32 %v3139, 7
    %v3141 = vsub.s32 0, %v3140
    %v3142 = vrot.slane %v3137, %v3141
    %v3145 = vsel %vm2224, %v3128, 0
    %3147 = vmatprep.subr.mxu0 0.0
    %3148 = vmatpush1.msra.mxu0 %v3129
    %3149 = vmatprep.subr.mxu0 0.0
    %3150 = vmatpush1.msra.mxu0 %v3130
    %3151 = vmatprep.subr.mxu0 0.0
    %3152 = vmatpush1.msra.mxu0 %v3131
    %3153 = vmatprep.subr.mxu0 0.0
    %3154 = vmatpush1.msra.mxu0 %v3132
    %3155 = vmatprep.subr.mxu0 0.0
    %3156 = vmatpush1.msra.mxu0 %v3133
    %3157 = vmatprep.subr.mxu0 0.0
    %3158 = vmatpush1.msra.mxu0 %v3134
    %3159 = vmatprep.subr.mxu0 0.0
    %3160 = vmatpush1.msra.mxu0 %v3135
    %3161 = vmatprep.subr.mxu0 0.0
    %3162 = vmatpush1.msra.mxu0 %v3136
    %3163 = vmatprep.subr.mxu0 0.0
    %3164 = vmatpush1.msra.mxu0 0.0
    %3165 = vmatprep.subr.mxu0 0.0
    %3166 = vmatpush1.msra.mxu0 0.0
    %3167 = vmatprep.subr.mxu0 0.0
    %3168 = vmatpush1.msra.mxu0 0.0
    %3169 = vmatprep.subr.mxu0 0.0
    %3170 = vmatpush1.msra.mxu0 0.0
    %3171 = vmatprep.subr.mxu0 0.0
    %3172 = vmatpush1.msra.mxu0 0.0
    %3173 = vmatprep.subr.mxu0 0.0
    %3174 = vmatpush1.msra.mxu0 0.0
    %3175 = vmatprep.subr.mxu0 0.0
    %3176 = vmatpush1.msra.mxu0 0.0
    %3177 = vmatprep.subr.mxu0 0.0
    %3178 = vmatpush1.msra.mxu0 0.0
    %3179 = vmatprep.subr.mxu0 0.0
    %3180 = vmatpush1.msra.mxu0 0.0
    %3181 = vmatprep.subr.mxu0 0.0
    %3182 = vmatpush1.msra.mxu0 0.0
    %3183 = vmatprep.subr.mxu0 0.0
    %3184 = vmatpush1.msra.mxu0 0.0
    %3185 = vmatprep.subr.mxu0 0.0
    %3186 = vmatpush1.msra.mxu0 0.0
    %3187 = vmatprep.subr.mxu0 0.0
    %3188 = vmatpush1.msra.mxu0 0.0
    %3189 = vmatprep.subr.mxu0 0.0
    %3190 = vmatpush1.msra.mxu0 0.0
    %3191 = vmatprep.subr.mxu0 0.0
    %3192 = vmatpush1.msra.mxu0 0.0
    %3193 = vmatprep.subr.mxu0 0.0
    %3194 = vmatpush1.msra.mxu0 0.0
    %3195 = vmatprep.subr.mxu0 0.0
    %3196 = vmatpush1.msra.mxu0 0.0
    %3197 = vmatprep.subr.mxu0 0.0
    %3198 = vmatpush1.msra.mxu0 0.0
    %3199 = vmatprep.subr.mxu0 0.0
    %3200 = vmatpush1.msra.mxu0 0.0
    %3201 = vmatprep.subr.mxu0 0.0
    %3202 = vmatpush1.msra.mxu0 0.0
    %3203 = vmatprep.subr.mxu0 0.0
    %3204 = vmatpush1.msra.mxu0 0.0
    %3205 = vmatprep.subr.mxu0 0.0
    %3206 = vmatpush1.msra.mxu0 0.0
    %3207 = vmatprep.subr.mxu0 0.0
    %3208 = vmatpush1.msra.mxu0 0.0
    %3209 = vmatprep.subr.mxu0 0.0
    %3210 = vmatpush1.msra.mxu0 0.0
    %3211 = vmatprep.mubr.f32.mxu0 0.0
    %3212 = vmatmul.mubr.f32.gmra.mrb[0].mxu0 %v3145
    %v3213 = vpop.f32.mrb[0].mxu0
    %v3214 = vadd.f32 %v3142, %v3213
    %v3215 = vpop.f32.mrb[0].mxu0
    %3216 = vdwg.mxu0
    %v3217 = vmax.f32 %v3214, 0.0
    %v3218 = vld [vmem:[%s11] sm:$0xff]
    %v3219 = vld [vmem:[%s11 + $0x8] sm:$0xff]
    %v3220 = vld [vmem:[%s11 + $0x10] sm:$0xff]
    %v3221 = vld [vmem:[%s11 + $0x18] sm:$0xff]
    %v3222 = vld [vmem:[%s11 + $0x20] sm:$0xff]
    %v3223 = vld [vmem:[%s11 + $0x28] sm:$0xff]
    %v3224 = vld [vmem:[%s11 + $0x30] sm:$0xff]
    %v3225 = vld [vmem:[%s11 + $0x38] sm:$0xff]
    %v3226 = vld [vmem:[%s12] sm:$0x1]
    %v3228 = vlaneseq
    %v3229 = vshrl.u32 %v3228, 7
    %v3230 = vsub.s32 0, %v3229
    %v3231 = vrot.slane %v3226, %v3230
    %v3234 = vsel %vm2224, %v3217, 0
    %3236 = vmatprep.subr.mxu0 0.0
    %3237 = vmatpush1.msra.mxu0 %v3218
    %3238 = vmatprep.subr.mxu0 0.0
    %3239 = vmatpush1.msra.mxu0 %v3219
    %3240 = vmatprep.subr.mxu0 0.0
    %3241 = vmatpush1.msra.mxu0 %v3220
    %3242 = vmatprep.subr.mxu0 0.0
    %3243 = vmatpush1.msra.mxu0 %v3221
    %3244 = vmatprep.subr.mxu0 0.0
    %3245 = vmatpush1.msra.mxu0 %v3222
    %3246 = vmatprep.subr.mxu0 0.0
    %3247 = vmatpush1.msra.mxu0 %v3223
    %3248 = vmatprep.subr.mxu0 0.0
    %3249 = vmatpush1.msra.mxu0 %v3224
    %3250 = vmatprep.subr.mxu0 0.0
    %3251 = vmatpush1.msra.mxu0 %v3225
    %3252 = vmatprep.subr.mxu0 0.0
    %3253 = vmatpush1.msra.mxu0 0.0
    %3254 = vmatprep.subr.mxu0 0.0
    %3255 = vmatpush1.msra.mxu0 0.0
    %3256 = vmatprep.subr.mxu0 0.0
    %3257 = vmatpush1.msra.mxu0 0.0
    %3258 = vmatprep.subr.mxu0 0.0
    %3259 = vmatpush1.msra.mxu0 0.0
    %3260 = vmatprep.subr.mxu0 0.0
    %3261 = vmatpush1.msra.mxu0 0.0
    %3262 = vmatprep.subr.mxu0 0.0
    %3263 = vmatpush1.msra.mxu0 0.0
    %3264 = vmatprep.subr.mxu0 0.0
    %3265 = vmatpush1.msra.mxu0 0.0
    %3266 = vmatprep.subr.mxu0 0.0
    %3267 = vmatpush1.msra.mxu0 0.0
    %3268 = vmatprep.subr.mxu0 0.0
    %3269 = vmatpush1.msra.mxu0 0.0
    %3270 = vmatprep.subr.mxu0 0.0
    %3271 = vmatpush1.msra.mxu0 0.0
    %3272 = vmatprep.subr.mxu0 0.0
    %3273 = vmatpush1.msra.mxu0 0.0
    %3274 = vmatprep.subr.mxu0 0.0
    %3275 = vmatpush1.msra.mxu0 0.0
    %3276 = vmatprep.subr.mxu0 0.0
    %3277 = vmatpush1.msra.mxu0 0.0
    %3278 = vmatprep.subr.mxu0 0.0
    %3279 = vmatpush1.msra.mxu0 0.0
    %3280 = vmatprep.subr.mxu0 0.0
    %3281 = vmatpush1.msra.mxu0 0.0
    %3282 = vmatprep.subr.mxu0 0.0
    %3283 = vmatpush1.msra.mxu0 0.0
    %3284 = vmatprep.subr.mxu0 0.0
    %3285 = vmatpush1.msra.mxu0 0.0
    %3286 = vmatprep.subr.mxu0 0.0
    %3287 = vmatpush1.msra.mxu0 0.0
    %3288 = vmatprep.subr.mxu0 0.0
    %3289 = vmatpush1.msra.mxu0 0.0
    %3290 = vmatprep.subr.mxu0 0.0
    %3291 = vmatpush1.msra.mxu0 0.0
    %3292 = vmatprep.subr.mxu0 0.0
    %3293 = vmatpush1.msra.mxu0 0.0
    %3294 = vmatprep.subr.mxu0 0.0
    %3295 = vmatpush1.msra.mxu0 0.0
    %3296 = vmatprep.subr.mxu0 0.0
    %3297 = vmatpush1.msra.mxu0 0.0
    %3298 = vmatprep.subr.mxu0 0.0
    %3299 = vmatpush1.msra.mxu0 0.0
    %3300 = vmatprep.mubr.f32.mxu0 0.0
    %3301 = vmatmul.mubr.f32.gmra.mrb[0].mxu0 %v3234
    %v3302 = vpop.f32.mrb[0].mxu0
    %v3303 = vadd.f32 %v3231, %v3302
    %v3304 = vpop.f32.mrb[0].mxu0
    %3305 = vdwg.mxu0
    %vm3306 = vcmask 41984
    %3307 = vst.msk [vmem:[#allocation7] sm:$0x3] %vm3306, %v3303
    // Predicated region
    $region54: #{bc_policy_forward.1} parent=1 // pred_check
      _
    $region55: #{bc_policy_forward.1} parent=1 // pred_check_branch
      %3309 = sbr.rel (0) target = $region57
    $region56: #{bc_policy_forward.1} parent=1 // pred_region
      %s3311 = ssub.s32 32, 32
      %3312 = vsyncadd [#allocation8], %s3311
      %s3314 = sshll.u32 [#allocation7], 4
      %s3315 = int_to_ptr.vmem [resolvable:$true] %s3314
      %3317 = dma.vmem_to_hbm [thread:$0]  %s3315, 32, %s13, [#allocation8]
    $region57: #{bc_policy_forward.1} parent=1 // pred_fallthru
      _
    // Predicated region
    $region58: #{bc_policy_forward.1} parent=1 // pred_check
      _
    $region59: #{bc_policy_forward.1} parent=1 // pred_check_branch
      %3319 = sbr.rel (0) target = $region61
    $region60: #{bc_policy_forward.1} parent=1 // pred_region
      %3320 = dma.done [#allocation8], 32
    $region61: #{bc_policy_forward.1} parent=1 // pred_fallthru
      _
    %3321 = vsyncpa [#allocation8], 1

</llo_original>
